<compile_context>
chip_gen: v5e
topology: v5e:2x2
jax: 0.10.0
libtpu: 0.0.40
codegen_flags: <defaults>
</compile_context>

<pallas_src>
import math

import jax
import jax.numpy as jnp
import numpy as np
from jax.experimental import pallas as pl
from jax.experimental.pallas import tpu as pltpu

DIM = 8        # prior_dim
HID = 64       # hidden width of net_s / net_t
N_LAYERS = 6   # len(mask)
LOG_2PI = math.log(2.0 * math.pi)


def _leaky_relu(h):
    # PyTorch nn.LeakyReLU default negative_slope = 0.01 (equivalent max form)
    return jnp.maximum(h, 0.01 * h)


def _round_up(x, m):
    return ((x + m - 1) // m) * m


# -----------------------------------------------------------------------------
# Kernel (feature-major, fused s/t branches, bf16 MXU matmuls)
# -----------------------------------------------------------------------------
def realnvp_log_prob_kernel(x_ref, mask_ref,
                            W1_ref, b1_ref, W2_ref, b2_ref, W3_ref, b3_ref,
                            out_ref):
    # x_ref: (DIM, TILE_B) feature-major tile of the batch.
    z = x_ref[...].astype(jnp.float32)
    tile_b = z.shape[1]
    s_acc = jnp.zeros((DIM, tile_b), jnp.float32)

    # backward_p: iterate coupling layers in reverse (static unroll, 6 layers;
    # per-layer ref indexing keeps only one layer's weights live at a time).
    for i in reversed(range(N_LAYERS)):
        m = mask_ref[i]                       # (DIM, 1) broadcast along lanes
        om = 1.0 - m
        z_ = m * z                            # (DIM, TILE_B)

        # fused layer 1: (2H, DIM) @ (DIM, TILE_B)   -- bf16 MXU, f32 accumulate
        h = jnp.dot(W1_ref[i], z_.astype(jnp.bfloat16),
                    preferred_element_type=jnp.float32) + b1_ref[i]
        h = _leaky_relu(h)
        # fused layer 2 (block-diagonal): (2H, 2H) @ (2H, TILE_B)
        h = jnp.dot(W2_ref[i], h.astype(jnp.bfloat16),
                    preferred_element_type=jnp.float32) + b2_ref[i]
        h = _leaky_relu(h)
        # fused layer 3 (block-diagonal): (2D, 2H) @ (2H, TILE_B)
        # (1 - mask) masking is pre-folded into W3/b3 rows on the host.
        st = jnp.dot(W3_ref[i], h.astype(jnp.bfloat16),
                     preferred_element_type=jnp.float32) + b3_ref[i]

        # rows 0..DIM-1  -> "s" branch == self.s[i] == net_t (NO final tanh)
        # rows DIM..2DIM -> "t" branch == self.t[i] == net_s (WITH final tanh)
        s = st[:DIM, :]                       # already masked (rows zeroed)
        t = jnp.tanh(st[DIM:, :])             # tanh(0) = 0 keeps mask exact

        z = 1e-8 + om * (z - t) * jnp.exp(-s) + z_
        s_acc = s_acc + s

    # single cross-sublane reduction after the loop (instead of one per layer)
    log_det = -jnp.sum(s_acc, axis=0, keepdims=True)

    # log_prob with standard-normal prior (loc = 0, cov = I)
    # TODO(synk): the PyTorch module's host-side `print('z has nan value')`
    # debug branch has no in-kernel equivalent; nan_to_num semantics are kept.
    z = jnp.nan_to_num(z)
    prior_lp = (-0.5 * jnp.sum(z * z, axis=0, keepdims=True)
                - 0.5 * DIM * LOG_2PI)
    out_ref[...] = jnp.nan_to_num(prior_lp + log_det)


# -----------------------------------------------------------------------------
# Wrapper
# -----------------------------------------------------------------------------
def realnvp_log_prob(x, packed_params, tile_b=2048):
    """x: (B, DIM) float32. packed_params from pack_params(). Returns (B,)."""
    mask, W1, b1, W2, b2, W3, b3 = packed_params
    B, dim = x.shape
    assert dim == DIM

    b_pad = _round_up(max(B, 1), 128)
    tile_b = min(tile_b, b_pad)
    # Keep >=2 grid programs when possible so both v7x TensorCores get work.
    if b_pad >= 256:
        tile_b = min(tile_b, (b_pad // 2) // 128 * 128)
    tile_b = max(tile_b, 128)
    b_pad = _round_up(b_pad, tile_b)

    # Feature-major input, zero-padded along the batch (lane) axis.
    xT = x.T.astype(jnp.float32)
    if b_pad != B:
        xT = jnp.pad(xT, ((0, 0), (0, b_pad - B)))

    grid = (b_pad // tile_b,)
    const3 = lambda i: (0, 0, 0)

    out = pl.pallas_call(
        realnvp_log_prob_kernel,
        out_shape=jax.ShapeDtypeStruct((1, b_pad), jnp.float32),
        grid_spec=pltpu.PrefetchScalarGridSpec(
            num_scalar_prefetch=0,
            grid=grid,
            in_specs=[
                pl.BlockSpec((DIM, tile_b), lambda i: (0, i)),            # x
                pl.BlockSpec((N_LAYERS, DIM, 1), const3),                 # mask
                pl.BlockSpec((N_LAYERS, 2 * HID, DIM), const3),           # W1
                pl.BlockSpec((N_LAYERS, 2 * HID, 1), const3),             # b1
                pl.BlockSpec((N_LAYERS, 2 * HID, 2 * HID), const3),       # W2
                pl.BlockSpec((N_LAYERS, 2 * HID, 1), const3),             # b2
                pl.BlockSpec((N_LAYERS, 2 * DIM, 2 * HID), const3),       # W3
                pl.BlockSpec((N_LAYERS, 2 * DIM, 1), const3),             # b3
            ],
            out_specs=pl.BlockSpec((1, tile_b), lambda i: (0, i)),
        ),
        compiler_params=pltpu.CompilerParams(
            dimension_semantics=("parallel",),
            vmem_limit_bytes=32 * 1024 * 1024),
    )(xT, mask, W1, b1, W2, b2, W3, b3)

    return out[0, :B]


# -----------------------------------------------------------------------------
# Parameter construction / packing
# -----------------------------------------------------------------------------
def init_params(key, dim=DIM, hid=HID, n=N_LAYERS):
    """Deterministic synthetic init mimicking PyTorch's default Linear init.

    Raw layout: W* are (n, in_features, out_features) so y = x @ W + b.
    "s" nets == self.s == net_t (no tanh); "t" nets == self.t == net_s (tanh).
    """
    ks = jax.random.split(key, 12)

    def u(k, shape, fan_in):
        bound = 1.0 / math.sqrt(fan_in)
        return jax.random.uniform(k, shape, jnp.float32, -bound, bound)

    params = dict(
        sW1=u(ks[0], (n, dim, hid), dim), sb1=u(ks[1], (n, hid), dim),
        sW2=u(ks[2], (n, hid, hid), hid), sb2=u(ks[3], (n, hid), hid),
        sW3=u(ks[4], (n, hid, dim), hid), sb3=u(ks[5], (n, dim), hid),
        tW1=u(ks[6], (n, dim, hid), dim), tb1=u(ks[7], (n, hid), dim),
        tW2=u(ks[8], (n, hid, hid), hid), tb2=u(ks[9], (n, hid), hid),
        tW3=u(ks[10], (n, hid, dim), hid), tb3=u(ks[11], (n, dim), hid),
    )
    # mask: rows alternate [1..1,0..0] / [0..0,1..1], repeated 3 times
    mask_half = np.zeros(dim, np.float32)
    mask_half[:round(dim / 2)] = 1.0
    mask = np.stack([mask_half, 1.0 - mask_half] * 3, axis=0).astype(np.float32)
    params["mask"] = jnp.asarray(mask)
    return params


def pack_params(p):
    """Host-side packing: transpose to (out, in), fuse s/t branches, fold the
    (1 - mask) output masking into layer 3, and cast weights to bf16."""
    mask = p["mask"]                       # (n, DIM)
    om = 1.0 - mask                        # (n, DIM)

    # layer 1: concat along out-features -> (n, 2*HID, DIM)
    sW1 = jnp.swapaxes(p["sW1"], 1, 2)
    tW1 = jnp.swapaxes(p["tW1"], 1, 2)
    W1 = jnp.concatenate([sW1, tW1], axis=1)
    b1 = jnp.concatenate([p["sb1"], p["tb1"]], axis=1)[..., None]

    # layer 2: block-diagonal -> (n, 2*HID, 2*HID)
    sW2 = jnp.swapaxes(p["sW2"], 1, 2)
    tW2 = jnp.swapaxes(p["tW2"], 1, 2)
    zH = jnp.zeros_like(sW2)
    W2 = jnp.concatenate([jnp.concatenate([sW2, zH], axis=2),
                          jnp.concatenate([zH, tW2], axis=2)], axis=1)
    b2 = jnp.concatenate([p["sb2"], p["tb2"]], axis=1)[..., None]

    # layer 3: block-diagonal -> (n, 2*DIM, 2*HID), masked output rows zeroed
    # (s-block: s*om exactly; t-block: tanh(0)=0 reproduces om*tanh exactly).
    sW3 = jnp.swapaxes(p["sW3"], 1, 2) * om[:, :, None]
    tW3 = jnp.swapaxes(p["tW3"], 1, 2) * om[:, :, None]
    sb3 = p["sb3"] * om
    tb3 = p["tb3"] * om
    zD = jnp.zeros_like(sW3)
    W3 = jnp.concatenate([jnp.concatenate([sW3, zD], axis=2),
                          jnp.concatenate([zD, tW3], axis=2)], axis=1)
    b3 = jnp.concatenate([sb3, tb3], axis=1)[..., None]

    mask_k = mask[..., None]               # (n, DIM, 1) for lane broadcast

    # bf16 weights (MXU-native); biases and mask stay f32 (added post-MXU).
    W1 = W1.astype(jnp.bfloat16)
    W2 = W2.astype(jnp.bfloat16)
    W3 = W3.astype(jnp.bfloat16)
    return (mask_k, W1, b1.astype(jnp.float32), W2, b2.astype(jnp.float32),
            W3, b3.astype(jnp.float32))


# -----------------------------------------------------------------------------
# Pure-JAX reference (batch-major, un-fused, f32) for correctness checking
# -----------------------------------------------------------------------------
def realnvp_log_prob_ref(x, p):
    dot = lambda a, b: jnp.dot(a, b, precision=jax.lax.Precision.HIGHEST)
    lrelu = lambda h: jnp.where(h > 0, h, 0.01 * h)
    z = x.astype(jnp.float32)
    B, dim = z.shape
    log_det = jnp.zeros((B,), jnp.float32)
    mask = p["mask"]
    for i in reversed(range(N_LAYERS)):
        m = mask[i][None, :]
        om = 1.0 - m
        z_ = m * z
        h = lrelu(dot(z_, p["sW1"][i]) + p["sb1"][i])
        h = lrelu(dot(h, p["sW2"][i]) + p["sb2"][i])
        s = (dot(h, p["sW3"][i]) + p["sb3"][i]) * om
        g = lrelu(dot(z_, p["tW1"][i]) + p["tb1"][i])
        g = lrelu(dot(g, p["tW2"][i]) + p["tb2"][i])
        t = jnp.tanh(dot(g, p["tW3"][i]) + p["tb3"][i]) * om
        z = 1e-8 + om * (z - t) * jnp.exp(-s) + z_
        log_det = log_det - jnp.sum(s, axis=1)
    z = jnp.nan_to_num(z)
    prior_lp = -0.5 * jnp.sum(z * z, axis=1) - 0.5 * dim * LOG_2PI
    return jnp.nan_to_num(prior_lp + log_det)


if __name__ == "__main__":
    key = jax.random.PRNGKey(0)
    kx, kp = jax.random.split(key)

    B = 300  # deliberately not a multiple of the tile to exercise padding/grid
    x = jax.random.normal(kx, (B, DIM), dtype=jnp.float32)
    raw_params = init_params(kp)
    packed = pack_params(raw_params)

    out = realnvp_log_prob(x, packed)          # default tile_b (auto-clamped)
    out = jax.block_until_ready(out)

    ref = realnvp_log_prob_ref(x, raw_params)
    # bf16 MXU matmuls vs f32 HIGHEST reference -> relaxed tolerance.
    np.testing.assert_allclose(np.asarray(out), np.asarray(ref),
                               rtol=2e-2, atol=2e-2)
    print("KERNEL_OK")
</pallas_src>

<mosaic_0001>
module attributes {stable_mosaic.version = 11 : i64} {
  func.func @realnvp_log_prob_kernel(%arg0: i32, %arg1: memref<8x128xf32, #tpu.memory_space<vmem>>, %arg2: memref<6x8x1xf32, #tpu.memory_space<vmem>>, %arg3: memref<6x128x8xbf16, #tpu.memory_space<vmem>>, %arg4: memref<6x128x1xf32, #tpu.memory_space<vmem>>, %arg5: memref<6x128x128xbf16, #tpu.memory_space<vmem>>, %arg6: memref<6x128x1xf32, #tpu.memory_space<vmem>>, %arg7: memref<6x16x128xbf16, #tpu.memory_space<vmem>>, %arg8: memref<6x16x1xf32, #tpu.memory_space<vmem>>, %arg9: memref<1x128xf32, #tpu.memory_space<vmem>>) attributes {dimension_semantics = [#tpu.dimension_semantics<parallel>], iteration_bounds = array<i64: 3>, scalar_prefetch = 0 : i64, scratch_operands = 0 : i64, tpu.core_type = #tpu.core_type<tc>, window_params = [{transform_indices = @transform_0, window_bounds = array<i64: 8, 128>}, {pipeline_mode = #tpu.pipeline_mode<synchronous>, transform_indices = @transform_1, window_bounds = array<i64: 6, 8, 1>}, {pipeline_mode = #tpu.pipeline_mode<synchronous>, transform_indices = @transform_2, window_bounds = array<i64: 6, 128, 8>}, {pipeline_mode = #tpu.pipeline_mode<synchronous>, transform_indices = @transform_3, window_bounds = array<i64: 6, 128, 1>}, {pipeline_mode = #tpu.pipeline_mode<synchronous>, transform_indices = @transform_4, window_bounds = array<i64: 6, 128, 128>}, {pipeline_mode = #tpu.pipeline_mode<synchronous>, transform_indices = @transform_5, window_bounds = array<i64: 6, 128, 1>}, {pipeline_mode = #tpu.pipeline_mode<synchronous>, transform_indices = @transform_6, window_bounds = array<i64: 6, 16, 128>}, {pipeline_mode = #tpu.pipeline_mode<synchronous>, transform_indices = @transform_7, window_bounds = array<i64: 6, 16, 1>}, {transform_indices = @transform_8, window_bounds = array<i64: 1, 128>}]} {
    %c0 = arith.constant 0 : index
    %c0_0 = arith.constant 0 : index
    %0 = vector.load %arg1[%c0, %c0_0] : memref<8x128xf32, #tpu.memory_space<vmem>>, vector<8x128xf32>
    %cst = arith.constant 0.000000e+00 : f32
    %1 = vector.broadcast %cst : f32 to vector<8x128xf32>
    %c5 = arith.constant 5 : index
    %c0_1 = arith.constant 0 : index
    %c0_2 = arith.constant 0 : index
    %2 = vector.load %arg2[%c5, %c0_1, %c0_2] : memref<6x8x1xf32, #tpu.memory_space<vmem>>, vector<1x8x1xf32>
    %3 = vector.shape_cast %2 : vector<1x8x1xf32> to vector<8x1xf32>
    %cst_3 = arith.constant 1.000000e+00 : f32
    %4 = vector.broadcast %cst_3 : f32 to vector<8x1xf32>
    %5 = arith.subf %4, %3 : vector<8x1xf32>
    %6 = vector.broadcast %3 : vector<8x1xf32> to vector<8x128xf32>
    %7 = arith.mulf %6, %0 : vector<8x128xf32>
    %c5_4 = arith.constant 5 : index
    %c0_5 = arith.constant 0 : index
    %c0_6 = arith.constant 0 : index
    %8 = vector.load %arg3[%c5_4, %c0_5, %c0_6] : memref<6x128x8xbf16, #tpu.memory_space<vmem>>, vector<1x128x8xbf16>
    %9 = vector.shape_cast %8 : vector<1x128x8xbf16> to vector<128x8xbf16>
    %10 = arith.truncf %7 : vector<8x128xf32> to vector<8x128xbf16>
    %cst_7 = arith.constant dense<0.000000e+00> : vector<128x128xf32>
    %11 = tpu.matmul %9, %10, %cst_7 {dimension_numbers = #tpu.dot_dimension_numbers<[1], [0], [0], [1], [0, 0, 1, 1], [], []>} : vector<128x8xbf16>, vector<8x128xbf16>, vector<128x128xf32> -> vector<128x128xf32>
    %c5_8 = arith.constant 5 : index
    %c0_9 = arith.constant 0 : index
    %c0_10 = arith.constant 0 : index
    %12 = vector.load %arg4[%c5_8, %c0_9, %c0_10] : memref<6x128x1xf32, #tpu.memory_space<vmem>>, vector<1x128x1xf32>
    %13 = vector.shape_cast %12 : vector<1x128x1xf32> to vector<128x1xf32>
    %14 = vector.broadcast %13 : vector<128x1xf32> to vector<128x128xf32>
    %15 = arith.addf %11, %14 : vector<128x128xf32>
    %cst_11 = arith.constant 0.00999999977 : f32
    %16 = vector.broadcast %cst_11 : f32 to vector<128x128xf32>
    %17 = arith.mulf %16, %15 : vector<128x128xf32>
    %18 = arith.maximumf %15, %17 : vector<128x128xf32>
    %c5_12 = arith.constant 5 : index
    %c0_13 = arith.constant 0 : index
    %c0_14 = arith.constant 0 : index
    %19 = vector.load %arg5[%c5_12, %c0_13, %c0_14] : memref<6x128x128xbf16, #tpu.memory_space<vmem>>, vector<1x128x128xbf16>
    %20 = vector.shape_cast %19 : vector<1x128x128xbf16> to vector<128x128xbf16>
    %21 = arith.truncf %18 : vector<128x128xf32> to vector<128x128xbf16>
    %cst_15 = arith.constant dense<0.000000e+00> : vector<128x128xf32>
    %22 = tpu.matmul %20, %21, %cst_15 {dimension_numbers = #tpu.dot_dimension_numbers<[1], [0], [0], [1], [0, 0, 1, 1], [], []>} : vector<128x128xbf16>, vector<128x128xbf16>, vector<128x128xf32> -> vector<128x128xf32>
    %c5_16 = arith.constant 5 : index
    %c0_17 = arith.constant 0 : index
    %c0_18 = arith.constant 0 : index
    %23 = vector.load %arg6[%c5_16, %c0_17, %c0_18] : memref<6x128x1xf32, #tpu.memory_space<vmem>>, vector<1x128x1xf32>
    %24 = vector.shape_cast %23 : vector<1x128x1xf32> to vector<128x1xf32>
    %25 = vector.broadcast %24 : vector<128x1xf32> to vector<128x128xf32>
    %26 = arith.addf %22, %25 : vector<128x128xf32>
    %cst_19 = arith.constant 0.00999999977 : f32
    %27 = vector.broadcast %cst_19 : f32 to vector<128x128xf32>
    %28 = arith.mulf %27, %26 : vector<128x128xf32>
    %29 = arith.maximumf %26, %28 : vector<128x128xf32>
    %c5_20 = arith.constant 5 : index
    %c0_21 = arith.constant 0 : index
    %c0_22 = arith.constant 0 : index
    %30 = vector.load %arg7[%c5_20, %c0_21, %c0_22] : memref<6x16x128xbf16, #tpu.memory_space<vmem>>, vector<1x16x128xbf16>
    %31 = vector.shape_cast %30 : vector<1x16x128xbf16> to vector<16x128xbf16>
    %32 = arith.truncf %29 : vector<128x128xf32> to vector<128x128xbf16>
    %cst_23 = arith.constant dense<0.000000e+00> : vector<16x128xf32>
    %33 = tpu.matmul %31, %32, %cst_23 {dimension_numbers = #tpu.dot_dimension_numbers<[1], [0], [0], [1], [0, 0, 1, 1], [], []>} : vector<16x128xbf16>, vector<128x128xbf16>, vector<16x128xf32> -> vector<16x128xf32>
    %c5_24 = arith.constant 5 : index
    %c0_25 = arith.constant 0 : index
    %c0_26 = arith.constant 0 : index
    %34 = vector.load %arg8[%c5_24, %c0_25, %c0_26] : memref<6x16x1xf32, #tpu.memory_space<vmem>>, vector<1x16x1xf32>
    %35 = vector.shape_cast %34 : vector<1x16x1xf32> to vector<16x1xf32>
    %36 = vector.broadcast %35 : vector<16x1xf32> to vector<16x128xf32>
    %37 = arith.addf %33, %36 : vector<16x128xf32>
    %38 = vector.extract_strided_slice %37 {offsets = [0, 0], sizes = [8, 128], strides = [1, 1]} : vector<16x128xf32> to vector<8x128xf32>
    %39 = vector.extract_strided_slice %37 {offsets = [8, 0], sizes = [8, 128], strides = [1, 1]} : vector<16x128xf32> to vector<8x128xf32>
    %40 = math.tanh %39 : vector<8x128xf32>
    %41 = arith.subf %0, %40 : vector<8x128xf32>
    %42 = vector.broadcast %5 : vector<8x1xf32> to vector<8x128xf32>
    %43 = arith.mulf %42, %41 : vector<8x128xf32>
    %cst_27 = arith.constant 0.000000e+00 : f32
    %44 = vector.broadcast %cst_27 : f32 to vector<8x128xf32>
    %45 = arith.subf %44, %38 : vector<8x128xf32>
    %46 = math.exp %45 : vector<8x128xf32>
    %47 = arith.mulf %43, %46 : vector<8x128xf32>
    %cst_28 = arith.constant 9.99999993E-9 : f32
    %48 = vector.broadcast %cst_28 : f32 to vector<8x128xf32>
    %49 = arith.addf %48, %47 : vector<8x128xf32>
    %50 = arith.addf %49, %7 : vector<8x128xf32>
    %51 = arith.addf %1, %38 : vector<8x128xf32>
    %c4 = arith.constant 4 : index
    %c0_29 = arith.constant 0 : index
    %c0_30 = arith.constant 0 : index
    %52 = vector.load %arg2[%c4, %c0_29, %c0_30] : memref<6x8x1xf32, #tpu.memory_space<vmem>>, vector<1x8x1xf32>
    %53 = vector.shape_cast %52 : vector<1x8x1xf32> to vector<8x1xf32>
    %cst_31 = arith.constant 1.000000e+00 : f32
    %54 = vector.broadcast %cst_31 : f32 to vector<8x1xf32>
    %55 = arith.subf %54, %53 : vector<8x1xf32>
    %56 = vector.broadcast %53 : vector<8x1xf32> to vector<8x128xf32>
    %57 = arith.mulf %56, %50 : vector<8x128xf32>
    %c4_32 = arith.constant 4 : index
    %c0_33 = arith.constant 0 : index
    %c0_34 = arith.constant 0 : index
    %58 = vector.load %arg3[%c4_32, %c0_33, %c0_34] : memref<6x128x8xbf16, #tpu.memory_space<vmem>>, vector<1x128x8xbf16>
    %59 = vector.shape_cast %58 : vector<1x128x8xbf16> to vector<128x8xbf16>
    %60 = arith.truncf %57 : vector<8x128xf32> to vector<8x128xbf16>
    %cst_35 = arith.constant dense<0.000000e+00> : vector<128x128xf32>
    %61 = tpu.matmul %59, %60, %cst_35 {dimension_numbers = #tpu.dot_dimension_numbers<[1], [0], [0], [1], [0, 0, 1, 1], [], []>} : vector<128x8xbf16>, vector<8x128xbf16>, vector<128x128xf32> -> vector<128x128xf32>
    %c4_36 = arith.constant 4 : index
    %c0_37 = arith.constant 0 : index
    %c0_38 = arith.constant 0 : index
    %62 = vector.load %arg4[%c4_36, %c0_37, %c0_38] : memref<6x128x1xf32, #tpu.memory_space<vmem>>, vector<1x128x1xf32>
    %63 = vector.shape_cast %62 : vector<1x128x1xf32> to vector<128x1xf32>
    %64 = vector.broadcast %63 : vector<128x1xf32> to vector<128x128xf32>
    %65 = arith.addf %61, %64 : vector<128x128xf32>
    %cst_39 = arith.constant 0.00999999977 : f32
    %66 = vector.broadcast %cst_39 : f32 to vector<128x128xf32>
    %67 = arith.mulf %66, %65 : vector<128x128xf32>
    %68 = arith.maximumf %65, %67 : vector<128x128xf32>
    %c4_40 = arith.constant 4 : index
    %c0_41 = arith.constant 0 : index
    %c0_42 = arith.constant 0 : index
    %69 = vector.load %arg5[%c4_40, %c0_41, %c0_42] : memref<6x128x128xbf16, #tpu.memory_space<vmem>>, vector<1x128x128xbf16>
    %70 = vector.shape_cast %69 : vector<1x128x128xbf16> to vector<128x128xbf16>
    %71 = arith.truncf %68 : vector<128x128xf32> to vector<128x128xbf16>
    %cst_43 = arith.constant dense<0.000000e+00> : vector<128x128xf32>
    %72 = tpu.matmul %70, %71, %cst_43 {dimension_numbers = #tpu.dot_dimension_numbers<[1], [0], [0], [1], [0, 0, 1, 1], [], []>} : vector<128x128xbf16>, vector<128x128xbf16>, vector<128x128xf32> -> vector<128x128xf32>
    %c4_44 = arith.constant 4 : index
    %c0_45 = arith.constant 0 : index
    %c0_46 = arith.constant 0 : index
    %73 = vector.load %arg6[%c4_44, %c0_45, %c0_46] : memref<6x128x1xf32, #tpu.memory_space<vmem>>, vector<1x128x1xf32>
    %74 = vector.shape_cast %73 : vector<1x128x1xf32> to vector<128x1xf32>
    %75 = vector.broadcast %74 : vector<128x1xf32> to vector<128x128xf32>
    %76 = arith.addf %72, %75 : vector<128x128xf32>
    %cst_47 = arith.constant 0.00999999977 : f32
    %77 = vector.broadcast %cst_47 : f32 to vector<128x128xf32>
    %78 = arith.mulf %77, %76 : vector<128x128xf32>
    %79 = arith.maximumf %76, %78 : vector<128x128xf32>
    %c4_48 = arith.constant 4 : index
    %c0_49 = arith.constant 0 : index
    %c0_50 = arith.constant 0 : index
    %80 = vector.load %arg7[%c4_48, %c0_49, %c0_50] : memref<6x16x128xbf16, #tpu.memory_space<vmem>>, vector<1x16x128xbf16>
    %81 = vector.shape_cast %80 : vector<1x16x128xbf16> to vector<16x128xbf16>
    %82 = arith.truncf %79 : vector<128x128xf32> to vector<128x128xbf16>
    %cst_51 = arith.constant dense<0.000000e+00> : vector<16x128xf32>
    %83 = tpu.matmul %81, %82, %cst_51 {dimension_numbers = #tpu.dot_dimension_numbers<[1], [0], [0], [1], [0, 0, 1, 1], [], []>} : vector<16x128xbf16>, vector<128x128xbf16>, vector<16x128xf32> -> vector<16x128xf32>
    %c4_52 = arith.constant 4 : index
    %c0_53 = arith.constant 0 : index
    %c0_54 = arith.constant 0 : index
    %84 = vector.load %arg8[%c4_52, %c0_53, %c0_54] : memref<6x16x1xf32, #tpu.memory_space<vmem>>, vector<1x16x1xf32>
    %85 = vector.shape_cast %84 : vector<1x16x1xf32> to vector<16x1xf32>
    %86 = vector.broadcast %85 : vector<16x1xf32> to vector<16x128xf32>
    %87 = arith.addf %83, %86 : vector<16x128xf32>
    %88 = vector.extract_strided_slice %87 {offsets = [0, 0], sizes = [8, 128], strides = [1, 1]} : vector<16x128xf32> to vector<8x128xf32>
    %89 = vector.extract_strided_slice %87 {offsets = [8, 0], sizes = [8, 128], strides = [1, 1]} : vector<16x128xf32> to vector<8x128xf32>
    %90 = math.tanh %89 : vector<8x128xf32>
    %91 = arith.subf %50, %90 : vector<8x128xf32>
    %92 = vector.broadcast %55 : vector<8x1xf32> to vector<8x128xf32>
    %93 = arith.mulf %92, %91 : vector<8x128xf32>
    %cst_55 = arith.constant 0.000000e+00 : f32
    %94 = vector.broadcast %cst_55 : f32 to vector<8x128xf32>
    %95 = arith.subf %94, %88 : vector<8x128xf32>
    %96 = math.exp %95 : vector<8x128xf32>
    %97 = arith.mulf %93, %96 : vector<8x128xf32>
    %cst_56 = arith.constant 9.99999993E-9 : f32
    %98 = vector.broadcast %cst_56 : f32 to vector<8x128xf32>
    %99 = arith.addf %98, %97 : vector<8x128xf32>
    %100 = arith.addf %99, %57 : vector<8x128xf32>
    %101 = arith.addf %51, %88 : vector<8x128xf32>
    %c3 = arith.constant 3 : index
    %c0_57 = arith.constant 0 : index
    %c0_58 = arith.constant 0 : index
    %102 = vector.load %arg2[%c3, %c0_57, %c0_58] : memref<6x8x1xf32, #tpu.memory_space<vmem>>, vector<1x8x1xf32>
    %103 = vector.shape_cast %102 : vector<1x8x1xf32> to vector<8x1xf32>
    %cst_59 = arith.constant 1.000000e+00 : f32
    %104 = vector.broadcast %cst_59 : f32 to vector<8x1xf32>
    %105 = arith.subf %104, %103 : vector<8x1xf32>
    %106 = vector.broadcast %103 : vector<8x1xf32> to vector<8x128xf32>
    %107 = arith.mulf %106, %100 : vector<8x128xf32>
    %c3_60 = arith.constant 3 : index
    %c0_61 = arith.constant 0 : index
    %c0_62 = arith.constant 0 : index
    %108 = vector.load %arg3[%c3_60, %c0_61, %c0_62] : memref<6x128x8xbf16, #tpu.memory_space<vmem>>, vector<1x128x8xbf16>
    %109 = vector.shape_cast %108 : vector<1x128x8xbf16> to vector<128x8xbf16>
    %110 = arith.truncf %107 : vector<8x128xf32> to vector<8x128xbf16>
    %cst_63 = arith.constant dense<0.000000e+00> : vector<128x128xf32>
    %111 = tpu.matmul %109, %110, %cst_63 {dimension_numbers = #tpu.dot_dimension_numbers<[1], [0], [0], [1], [0, 0, 1, 1], [], []>} : vector<128x8xbf16>, vector<8x128xbf16>, vector<128x128xf32> -> vector<128x128xf32>
    %c3_64 = arith.constant 3 : index
    %c0_65 = arith.constant 0 : index
    %c0_66 = arith.constant 0 : index
    %112 = vector.load %arg4[%c3_64, %c0_65, %c0_66] : memref<6x128x1xf32, #tpu.memory_space<vmem>>, vector<1x128x1xf32>
    %113 = vector.shape_cast %112 : vector<1x128x1xf32> to vector<128x1xf32>
    %114 = vector.broadcast %113 : vector<128x1xf32> to vector<128x128xf32>
    %115 = arith.addf %111, %114 : vector<128x128xf32>
    %cst_67 = arith.constant 0.00999999977 : f32
    %116 = vector.broadcast %cst_67 : f32 to vector<128x128xf32>
    %117 = arith.mulf %116, %115 : vector<128x128xf32>
    %118 = arith.maximumf %115, %117 : vector<128x128xf32>
    %c3_68 = arith.constant 3 : index
    %c0_69 = arith.constant 0 : index
    %c0_70 = arith.constant 0 : index
    %119 = vector.load %arg5[%c3_68, %c0_69, %c0_70] : memref<6x128x128xbf16, #tpu.memory_space<vmem>>, vector<1x128x128xbf16>
    %120 = vector.shape_cast %119 : vector<1x128x128xbf16> to vector<128x128xbf16>
    %121 = arith.truncf %118 : vector<128x128xf32> to vector<128x128xbf16>
    %cst_71 = arith.constant dense<0.000000e+00> : vector<128x128xf32>
    %122 = tpu.matmul %120, %121, %cst_71 {dimension_numbers = #tpu.dot_dimension_numbers<[1], [0], [0], [1], [0, 0, 1, 1], [], []>} : vector<128x128xbf16>, vector<128x128xbf16>, vector<128x128xf32> -> vector<128x128xf32>
    %c3_72 = arith.constant 3 : index
    %c0_73 = arith.constant 0 : index
    %c0_74 = arith.constant 0 : index
    %123 = vector.load %arg6[%c3_72, %c0_73, %c0_74] : memref<6x128x1xf32, #tpu.memory_space<vmem>>, vector<1x128x1xf32>
    %124 = vector.shape_cast %123 : vector<1x128x1xf32> to vector<128x1xf32>
    %125 = vector.broadcast %124 : vector<128x1xf32> to vector<128x128xf32>
    %126 = arith.addf %122, %125 : vector<128x128xf32>
    %cst_75 = arith.constant 0.00999999977 : f32
    %127 = vector.broadcast %cst_75 : f32 to vector<128x128xf32>
    %128 = arith.mulf %127, %126 : vector<128x128xf32>
    %129 = arith.maximumf %126, %128 : vector<128x128xf32>
    %c3_76 = arith.constant 3 : index
    %c0_77 = arith.constant 0 : index
    %c0_78 = arith.constant 0 : index
    %130 = vector.load %arg7[%c3_76, %c0_77, %c0_78] : memref<6x16x128xbf16, #tpu.memory_space<vmem>>, vector<1x16x128xbf16>
    %131 = vector.shape_cast %130 : vector<1x16x128xbf16> to vector<16x128xbf16>
    %132 = arith.truncf %129 : vector<128x128xf32> to vector<128x128xbf16>
    %cst_79 = arith.constant dense<0.000000e+00> : vector<16x128xf32>
    %133 = tpu.matmul %131, %132, %cst_79 {dimension_numbers = #tpu.dot_dimension_numbers<[1], [0], [0], [1], [0, 0, 1, 1], [], []>} : vector<16x128xbf16>, vector<128x128xbf16>, vector<16x128xf32> -> vector<16x128xf32>
    %c3_80 = arith.constant 3 : index
    %c0_81 = arith.constant 0 : index
    %c0_82 = arith.constant 0 : index
    %134 = vector.load %arg8[%c3_80, %c0_81, %c0_82] : memref<6x16x1xf32, #tpu.memory_space<vmem>>, vector<1x16x1xf32>
    %135 = vector.shape_cast %134 : vector<1x16x1xf32> to vector<16x1xf32>
    %136 = vector.broadcast %135 : vector<16x1xf32> to vector<16x128xf32>
    %137 = arith.addf %133, %136 : vector<16x128xf32>
    %138 = vector.extract_strided_slice %137 {offsets = [0, 0], sizes = [8, 128], strides = [1, 1]} : vector<16x128xf32> to vector<8x128xf32>
    %139 = vector.extract_strided_slice %137 {offsets = [8, 0], sizes = [8, 128], strides = [1, 1]} : vector<16x128xf32> to vector<8x128xf32>
    %140 = math.tanh %139 : vector<8x128xf32>
    %141 = arith.subf %100, %140 : vector<8x128xf32>
    %142 = vector.broadcast %105 : vector<8x1xf32> to vector<8x128xf32>
    %143 = arith.mulf %142, %141 : vector<8x128xf32>
    %cst_83 = arith.constant 0.000000e+00 : f32
    %144 = vector.broadcast %cst_83 : f32 to vector<8x128xf32>
    %145 = arith.subf %144, %138 : vector<8x128xf32>
    %146 = math.exp %145 : vector<8x128xf32>
    %147 = arith.mulf %143, %146 : vector<8x128xf32>
    %cst_84 = arith.constant 9.99999993E-9 : f32
    %148 = vector.broadcast %cst_84 : f32 to vector<8x128xf32>
    %149 = arith.addf %148, %147 : vector<8x128xf32>
    %150 = arith.addf %149, %107 : vector<8x128xf32>
    %151 = arith.addf %101, %138 : vector<8x128xf32>
    %c2 = arith.constant 2 : index
    %c0_85 = arith.constant 0 : index
    %c0_86 = arith.constant 0 : index
    %152 = vector.load %arg2[%c2, %c0_85, %c0_86] : memref<6x8x1xf32, #tpu.memory_space<vmem>>, vector<1x8x1xf32>
    %153 = vector.shape_cast %152 : vector<1x8x1xf32> to vector<8x1xf32>
    %cst_87 = arith.constant 1.000000e+00 : f32
    %154 = vector.broadcast %cst_87 : f32 to vector<8x1xf32>
    %155 = arith.subf %154, %153 : vector<8x1xf32>
    %156 = vector.broadcast %153 : vector<8x1xf32> to vector<8x128xf32>
    %157 = arith.mulf %156, %150 : vector<8x128xf32>
    %c2_88 = arith.constant 2 : index
    %c0_89 = arith.constant 0 : index
    %c0_90 = arith.constant 0 : index
    %158 = vector.load %arg3[%c2_88, %c0_89, %c0_90] : memref<6x128x8xbf16, #tpu.memory_space<vmem>>, vector<1x128x8xbf16>
    %159 = vector.shape_cast %158 : vector<1x128x8xbf16> to vector<128x8xbf16>
    %160 = arith.truncf %157 : vector<8x128xf32> to vector<8x128xbf16>
    %cst_91 = arith.constant dense<0.000000e+00> : vector<128x128xf32>
    %161 = tpu.matmul %159, %160, %cst_91 {dimension_numbers = #tpu.dot_dimension_numbers<[1], [0], [0], [1], [0, 0, 1, 1], [], []>} : vector<128x8xbf16>, vector<8x128xbf16>, vector<128x128xf32> -> vector<128x128xf32>
    %c2_92 = arith.constant 2 : index
    %c0_93 = arith.constant 0 : index
    %c0_94 = arith.constant 0 : index
    %162 = vector.load %arg4[%c2_92, %c0_93, %c0_94] : memref<6x128x1xf32, #tpu.memory_space<vmem>>, vector<1x128x1xf32>
    %163 = vector.shape_cast %162 : vector<1x128x1xf32> to vector<128x1xf32>
    %164 = vector.broadcast %163 : vector<128x1xf32> to vector<128x128xf32>
    %165 = arith.addf %161, %164 : vector<128x128xf32>
    %cst_95 = arith.constant 0.00999999977 : f32
    %166 = vector.broadcast %cst_95 : f32 to vector<128x128xf32>
    %167 = arith.mulf %166, %165 : vector<128x128xf32>
    %168 = arith.maximumf %165, %167 : vector<128x128xf32>
    %c2_96 = arith.constant 2 : index
    %c0_97 = arith.constant 0 : index
    %c0_98 = arith.constant 0 : index
    %169 = vector.load %arg5[%c2_96, %c0_97, %c0_98] : memref<6x128x128xbf16, #tpu.memory_space<vmem>>, vector<1x128x128xbf16>
    %170 = vector.shape_cast %169 : vector<1x128x128xbf16> to vector<128x128xbf16>
    %171 = arith.truncf %168 : vector<128x128xf32> to vector<128x128xbf16>
    %cst_99 = arith.constant dense<0.000000e+00> : vector<128x128xf32>
    %172 = tpu.matmul %170, %171, %cst_99 {dimension_numbers = #tpu.dot_dimension_numbers<[1], [0], [0], [1], [0, 0, 1, 1], [], []>} : vector<128x128xbf16>, vector<128x128xbf16>, vector<128x128xf32> -> vector<128x128xf32>
    %c2_100 = arith.constant 2 : index
    %c0_101 = arith.constant 0 : index
    %c0_102 = arith.constant 0 : index
    %173 = vector.load %arg6[%c2_100, %c0_101, %c0_102] : memref<6x128x1xf32, #tpu.memory_space<vmem>>, vector<1x128x1xf32>
    %174 = vector.shape_cast %173 : vector<1x128x1xf32> to vector<128x1xf32>
    %175 = vector.broadcast %174 : vector<128x1xf32> to vector<128x128xf32>
    %176 = arith.addf %172, %175 : vector<128x128xf32>
    %cst_103 = arith.constant 0.00999999977 : f32
    %177 = vector.broadcast %cst_103 : f32 to vector<128x128xf32>
    %178 = arith.mulf %177, %176 : vector<128x128xf32>
    %179 = arith.maximumf %176, %178 : vector<128x128xf32>
    %c2_104 = arith.constant 2 : index
    %c0_105 = arith.constant 0 : index
    %c0_106 = arith.constant 0 : index
    %180 = vector.load %arg7[%c2_104, %c0_105, %c0_106] : memref<6x16x128xbf16, #tpu.memory_space<vmem>>, vector<1x16x128xbf16>
    %181 = vector.shape_cast %180 : vector<1x16x128xbf16> to vector<16x128xbf16>
    %182 = arith.truncf %179 : vector<128x128xf32> to vector<128x128xbf16>
    %cst_107 = arith.constant dense<0.000000e+00> : vector<16x128xf32>
    %183 = tpu.matmul %181, %182, %cst_107 {dimension_numbers = #tpu.dot_dimension_numbers<[1], [0], [0], [1], [0, 0, 1, 1], [], []>} : vector<16x128xbf16>, vector<128x128xbf16>, vector<16x128xf32> -> vector<16x128xf32>
    %c2_108 = arith.constant 2 : index
    %c0_109 = arith.constant 0 : index
    %c0_110 = arith.constant 0 : index
    %184 = vector.load %arg8[%c2_108, %c0_109, %c0_110] : memref<6x16x1xf32, #tpu.memory_space<vmem>>, vector<1x16x1xf32>
    %185 = vector.shape_cast %184 : vector<1x16x1xf32> to vector<16x1xf32>
    %186 = vector.broadcast %185 : vector<16x1xf32> to vector<16x128xf32>
    %187 = arith.addf %183, %186 : vector<16x128xf32>
    %188 = vector.extract_strided_slice %187 {offsets = [0, 0], sizes = [8, 128], strides = [1, 1]} : vector<16x128xf32> to vector<8x128xf32>
    %189 = vector.extract_strided_slice %187 {offsets = [8, 0], sizes = [8, 128], strides = [1, 1]} : vector<16x128xf32> to vector<8x128xf32>
    %190 = math.tanh %189 : vector<8x128xf32>
    %191 = arith.subf %150, %190 : vector<8x128xf32>
    %192 = vector.broadcast %155 : vector<8x1xf32> to vector<8x128xf32>
    %193 = arith.mulf %192, %191 : vector<8x128xf32>
    %cst_111 = arith.constant 0.000000e+00 : f32
    %194 = vector.broadcast %cst_111 : f32 to vector<8x128xf32>
    %195 = arith.subf %194, %188 : vector<8x128xf32>
    %196 = math.exp %195 : vector<8x128xf32>
    %197 = arith.mulf %193, %196 : vector<8x128xf32>
    %cst_112 = arith.constant 9.99999993E-9 : f32
    %198 = vector.broadcast %cst_112 : f32 to vector<8x128xf32>
    %199 = arith.addf %198, %197 : vector<8x128xf32>
    %200 = arith.addf %199, %157 : vector<8x128xf32>
    %201 = arith.addf %151, %188 : vector<8x128xf32>
    %c1 = arith.constant 1 : index
    %c0_113 = arith.constant 0 : index
    %c0_114 = arith.constant 0 : index
    %202 = vector.load %arg2[%c1, %c0_113, %c0_114] : memref<6x8x1xf32, #tpu.memory_space<vmem>>, vector<1x8x1xf32>
    %203 = vector.shape_cast %202 : vector<1x8x1xf32> to vector<8x1xf32>
    %cst_115 = arith.constant 1.000000e+00 : f32
    %204 = vector.broadcast %cst_115 : f32 to vector<8x1xf32>
    %205 = arith.subf %204, %203 : vector<8x1xf32>
    %206 = vector.broadcast %203 : vector<8x1xf32> to vector<8x128xf32>
    %207 = arith.mulf %206, %200 : vector<8x128xf32>
    %c1_116 = arith.constant 1 : index
    %c0_117 = arith.constant 0 : index
    %c0_118 = arith.constant 0 : index
    %208 = vector.load %arg3[%c1_116, %c0_117, %c0_118] : memref<6x128x8xbf16, #tpu.memory_space<vmem>>, vector<1x128x8xbf16>
    %209 = vector.shape_cast %208 : vector<1x128x8xbf16> to vector<128x8xbf16>
    %210 = arith.truncf %207 : vector<8x128xf32> to vector<8x128xbf16>
    %cst_119 = arith.constant dense<0.000000e+00> : vector<128x128xf32>
    %211 = tpu.matmul %209, %210, %cst_119 {dimension_numbers = #tpu.dot_dimension_numbers<[1], [0], [0], [1], [0, 0, 1, 1], [], []>} : vector<128x8xbf16>, vector<8x128xbf16>, vector<128x128xf32> -> vector<128x128xf32>
    %c1_120 = arith.constant 1 : index
    %c0_121 = arith.constant 0 : index
    %c0_122 = arith.constant 0 : index
    %212 = vector.load %arg4[%c1_120, %c0_121, %c0_122] : memref<6x128x1xf32, #tpu.memory_space<vmem>>, vector<1x128x1xf32>
    %213 = vector.shape_cast %212 : vector<1x128x1xf32> to vector<128x1xf32>
    %214 = vector.broadcast %213 : vector<128x1xf32> to vector<128x128xf32>
    %215 = arith.addf %211, %214 : vector<128x128xf32>
    %cst_123 = arith.constant 0.00999999977 : f32
    %216 = vector.broadcast %cst_123 : f32 to vector<128x128xf32>
    %217 = arith.mulf %216, %215 : vector<128x128xf32>
    %218 = arith.maximumf %215, %217 : vector<128x128xf32>
    %c1_124 = arith.constant 1 : index
    %c0_125 = arith.constant 0 : index
    %c0_126 = arith.constant 0 : index
    %219 = vector.load %arg5[%c1_124, %c0_125, %c0_126] : memref<6x128x128xbf16, #tpu.memory_space<vmem>>, vector<1x128x128xbf16>
    %220 = vector.shape_cast %219 : vector<1x128x128xbf16> to vector<128x128xbf16>
    %221 = arith.truncf %218 : vector<128x128xf32> to vector<128x128xbf16>
    %cst_127 = arith.constant dense<0.000000e+00> : vector<128x128xf32>
    %222 = tpu.matmul %220, %221, %cst_127 {dimension_numbers = #tpu.dot_dimension_numbers<[1], [0], [0], [1], [0, 0, 1, 1], [], []>} : vector<128x128xbf16>, vector<128x128xbf16>, vector<128x128xf32> -> vector<128x128xf32>
    %c1_128 = arith.constant 1 : index
    %c0_129 = arith.constant 0 : index
    %c0_130 = arith.constant 0 : index
    %223 = vector.load %arg6[%c1_128, %c0_129, %c0_130] : memref<6x128x1xf32, #tpu.memory_space<vmem>>, vector<1x128x1xf32>
    %224 = vector.shape_cast %223 : vector<1x128x1xf32> to vector<128x1xf32>
    %225 = vector.broadcast %224 : vector<128x1xf32> to vector<128x128xf32>
    %226 = arith.addf %222, %225 : vector<128x128xf32>
    %cst_131 = arith.constant 0.00999999977 : f32
    %227 = vector.broadcast %cst_131 : f32 to vector<128x128xf32>
    %228 = arith.mulf %227, %226 : vector<128x128xf32>
    %229 = arith.maximumf %226, %228 : vector<128x128xf32>
    %c1_132 = arith.constant 1 : index
    %c0_133 = arith.constant 0 : index
    %c0_134 = arith.constant 0 : index
    %230 = vector.load %arg7[%c1_132, %c0_133, %c0_134] : memref<6x16x128xbf16, #tpu.memory_space<vmem>>, vector<1x16x128xbf16>
    %231 = vector.shape_cast %230 : vector<1x16x128xbf16> to vector<16x128xbf16>
    %232 = arith.truncf %229 : vector<128x128xf32> to vector<128x128xbf16>
    %cst_135 = arith.constant dense<0.000000e+00> : vector<16x128xf32>
    %233 = tpu.matmul %231, %232, %cst_135 {dimension_numbers = #tpu.dot_dimension_numbers<[1], [0], [0], [1], [0, 0, 1, 1], [], []>} : vector<16x128xbf16>, vector<128x128xbf16>, vector<16x128xf32> -> vector<16x128xf32>
    %c1_136 = arith.constant 1 : index
    %c0_137 = arith.constant 0 : index
    %c0_138 = arith.constant 0 : index
    %234 = vector.load %arg8[%c1_136, %c0_137, %c0_138] : memref<6x16x1xf32, #tpu.memory_space<vmem>>, vector<1x16x1xf32>
    %235 = vector.shape_cast %234 : vector<1x16x1xf32> to vector<16x1xf32>
    %236 = vector.broadcast %235 : vector<16x1xf32> to vector<16x128xf32>
    %237 = arith.addf %233, %236 : vector<16x128xf32>
    %238 = vector.extract_strided_slice %237 {offsets = [0, 0], sizes = [8, 128], strides = [1, 1]} : vector<16x128xf32> to vector<8x128xf32>
    %239 = vector.extract_strided_slice %237 {offsets = [8, 0], sizes = [8, 128], strides = [1, 1]} : vector<16x128xf32> to vector<8x128xf32>
    %240 = math.tanh %239 : vector<8x128xf32>
    %241 = arith.subf %200, %240 : vector<8x128xf32>
    %242 = vector.broadcast %205 : vector<8x1xf32> to vector<8x128xf32>
    %243 = arith.mulf %242, %241 : vector<8x128xf32>
    %cst_139 = arith.constant 0.000000e+00 : f32
    %244 = vector.broadcast %cst_139 : f32 to vector<8x128xf32>
    %245 = arith.subf %244, %238 : vector<8x128xf32>
    %246 = math.exp %245 : vector<8x128xf32>
    %247 = arith.mulf %243, %246 : vector<8x128xf32>
    %cst_140 = arith.constant 9.99999993E-9 : f32
    %248 = vector.broadcast %cst_140 : f32 to vector<8x128xf32>
    %249 = arith.addf %248, %247 : vector<8x128xf32>
    %250 = arith.addf %249, %207 : vector<8x128xf32>
    %251 = arith.addf %201, %238 : vector<8x128xf32>
    %c0_141 = arith.constant 0 : index
    %c0_142 = arith.constant 0 : index
    %c0_143 = arith.constant 0 : index
    %252 = vector.load %arg2[%c0_141, %c0_142, %c0_143] : memref<6x8x1xf32, #tpu.memory_space<vmem>>, vector<1x8x1xf32>
    %253 = vector.shape_cast %252 : vector<1x8x1xf32> to vector<8x1xf32>
    %cst_144 = arith.constant 1.000000e+00 : f32
    %254 = vector.broadcast %cst_144 : f32 to vector<8x1xf32>
    %255 = arith.subf %254, %253 : vector<8x1xf32>
    %256 = vector.broadcast %253 : vector<8x1xf32> to vector<8x128xf32>
    %257 = arith.mulf %256, %250 : vector<8x128xf32>
    %c0_145 = arith.constant 0 : index
    %c0_146 = arith.constant 0 : index
    %c0_147 = arith.constant 0 : index
    %258 = vector.load %arg3[%c0_145, %c0_146, %c0_147] : memref<6x128x8xbf16, #tpu.memory_space<vmem>>, vector<1x128x8xbf16>
    %259 = vector.shape_cast %258 : vector<1x128x8xbf16> to vector<128x8xbf16>
    %260 = arith.truncf %257 : vector<8x128xf32> to vector<8x128xbf16>
    %cst_148 = arith.constant dense<0.000000e+00> : vector<128x128xf32>
    %261 = tpu.matmul %259, %260, %cst_148 {dimension_numbers = #tpu.dot_dimension_numbers<[1], [0], [0], [1], [0, 0, 1, 1], [], []>} : vector<128x8xbf16>, vector<8x128xbf16>, vector<128x128xf32> -> vector<128x128xf32>
    %c0_149 = arith.constant 0 : index
    %c0_150 = arith.constant 0 : index
    %c0_151 = arith.constant 0 : index
    %262 = vector.load %arg4[%c0_149, %c0_150, %c0_151] : memref<6x128x1xf32, #tpu.memory_space<vmem>>, vector<1x128x1xf32>
    %263 = vector.shape_cast %262 : vector<1x128x1xf32> to vector<128x1xf32>
    %264 = vector.broadcast %263 : vector<128x1xf32> to vector<128x128xf32>
    %265 = arith.addf %261, %264 : vector<128x128xf32>
    %cst_152 = arith.constant 0.00999999977 : f32
    %266 = vector.broadcast %cst_152 : f32 to vector<128x128xf32>
    %267 = arith.mulf %266, %265 : vector<128x128xf32>
    %268 = arith.maximumf %265, %267 : vector<128x128xf32>
    %c0_153 = arith.constant 0 : index
    %c0_154 = arith.constant 0 : index
    %c0_155 = arith.constant 0 : index
    %269 = vector.load %arg5[%c0_153, %c0_154, %c0_155] : memref<6x128x128xbf16, #tpu.memory_space<vmem>>, vector<1x128x128xbf16>
    %270 = vector.shape_cast %269 : vector<1x128x128xbf16> to vector<128x128xbf16>
    %271 = arith.truncf %268 : vector<128x128xf32> to vector<128x128xbf16>
    %cst_156 = arith.constant dense<0.000000e+00> : vector<128x128xf32>
    %272 = tpu.matmul %270, %271, %cst_156 {dimension_numbers = #tpu.dot_dimension_numbers<[1], [0], [0], [1], [0, 0, 1, 1], [], []>} : vector<128x128xbf16>, vector<128x128xbf16>, vector<128x128xf32> -> vector<128x128xf32>
    %c0_157 = arith.constant 0 : index
    %c0_158 = arith.constant 0 : index
    %c0_159 = arith.constant 0 : index
    %273 = vector.load %arg6[%c0_157, %c0_158, %c0_159] : memref<6x128x1xf32, #tpu.memory_space<vmem>>, vector<1x128x1xf32>
    %274 = vector.shape_cast %273 : vector<1x128x1xf32> to vector<128x1xf32>
    %275 = vector.broadcast %274 : vector<128x1xf32> to vector<128x128xf32>
    %276 = arith.addf %272, %275 : vector<128x128xf32>
    %cst_160 = arith.constant 0.00999999977 : f32
    %277 = vector.broadcast %cst_160 : f32 to vector<128x128xf32>
    %278 = arith.mulf %277, %276 : vector<128x128xf32>
    %279 = arith.maximumf %276, %278 : vector<128x128xf32>
    %c0_161 = arith.constant 0 : index
    %c0_162 = arith.constant 0 : index
    %c0_163 = arith.constant 0 : index
    %280 = vector.load %arg7[%c0_161, %c0_162, %c0_163] : memref<6x16x128xbf16, #tpu.memory_space<vmem>>, vector<1x16x128xbf16>
    %281 = vector.shape_cast %280 : vector<1x16x128xbf16> to vector<16x128xbf16>
    %282 = arith.truncf %279 : vector<128x128xf32> to vector<128x128xbf16>
    %cst_164 = arith.constant dense<0.000000e+00> : vector<16x128xf32>
    %283 = tpu.matmul %281, %282, %cst_164 {dimension_numbers = #tpu.dot_dimension_numbers<[1], [0], [0], [1], [0, 0, 1, 1], [], []>} : vector<16x128xbf16>, vector<128x128xbf16>, vector<16x128xf32> -> vector<16x128xf32>
    %c0_165 = arith.constant 0 : index
    %c0_166 = arith.constant 0 : index
    %c0_167 = arith.constant 0 : index
    %284 = vector.load %arg8[%c0_165, %c0_166, %c0_167] : memref<6x16x1xf32, #tpu.memory_space<vmem>>, vector<1x16x1xf32>
    %285 = vector.shape_cast %284 : vector<1x16x1xf32> to vector<16x1xf32>
    %286 = vector.broadcast %285 : vector<16x1xf32> to vector<16x128xf32>
    %287 = arith.addf %283, %286 : vector<16x128xf32>
    %288 = vector.extract_strided_slice %287 {offsets = [0, 0], sizes = [8, 128], strides = [1, 1]} : vector<16x128xf32> to vector<8x128xf32>
    %289 = vector.extract_strided_slice %287 {offsets = [8, 0], sizes = [8, 128], strides = [1, 1]} : vector<16x128xf32> to vector<8x128xf32>
    %290 = math.tanh %289 : vector<8x128xf32>
    %291 = arith.subf %250, %290 : vector<8x128xf32>
    %292 = vector.broadcast %255 : vector<8x1xf32> to vector<8x128xf32>
    %293 = arith.mulf %292, %291 : vector<8x128xf32>
    %cst_168 = arith.constant 0.000000e+00 : f32
    %294 = vector.broadcast %cst_168 : f32 to vector<8x128xf32>
    %295 = arith.subf %294, %288 : vector<8x128xf32>
    %296 = math.exp %295 : vector<8x128xf32>
    %297 = arith.mulf %293, %296 : vector<8x128xf32>
    %cst_169 = arith.constant 9.99999993E-9 : f32
    %298 = vector.broadcast %cst_169 : f32 to vector<8x128xf32>
    %299 = arith.addf %298, %297 : vector<8x128xf32>
    %300 = arith.addf %299, %257 : vector<8x128xf32>
    %301 = arith.addf %251, %288 : vector<8x128xf32>
    %cst_170 = arith.constant dense<0.000000e+00> : vector<128xf32>
    %302 = vector.multi_reduction <add>, %301, %cst_170 [0] : vector<8x128xf32> to vector<128xf32>
    %303 = vector.shape_cast %302 : vector<128xf32> to vector<1x128xf32>
    %cst_171 = arith.constant 0.000000e+00 : f32
    %304 = vector.broadcast %cst_171 : f32 to vector<1x128xf32>
    %305 = arith.subf %304, %303 : vector<1x128xf32>
    %306 = arith.cmpf one, %300, %300 : vector<8x128xf32>
    %cst_172 = arith.constant 0.000000e+00 : f32
    %307 = vector.broadcast %cst_172 : f32 to vector<8x128xf32>
    %308 = arith.select %306, %307, %300 : vector<8x128xi1>, vector<8x128xf32>
    %cst_173 = arith.constant 0x7F800000 : f32
    %309 = vector.broadcast %cst_173 : f32 to vector<8x128xf32>
    %310 = arith.cmpf oeq, %308, %309 : vector<8x128xf32>
    %cst_174 = arith.constant 3.40282347E+38 : f32
    %311 = vector.broadcast %cst_174 : f32 to vector<8x128xf32>
    %312 = arith.select %310, %311, %308 : vector<8x128xi1>, vector<8x128xf32>
    %cst_175 = arith.constant 0xFF800000 : f32
    %313 = vector.broadcast %cst_175 : f32 to vector<8x128xf32>
    %314 = arith.cmpf oeq, %312, %313 : vector<8x128xf32>
    %cst_176 = arith.constant -3.40282347E+38 : f32
    %315 = vector.broadcast %cst_176 : f32 to vector<8x128xf32>
    %316 = arith.select %314, %315, %312 : vector<8x128xi1>, vector<8x128xf32>
    %317 = arith.mulf %316, %316 : vector<8x128xf32>
    %cst_177 = arith.constant dense<0.000000e+00> : vector<128xf32>
    %318 = vector.multi_reduction <add>, %317, %cst_177 [0] : vector<8x128xf32> to vector<128xf32>
    %319 = vector.shape_cast %318 : vector<128xf32> to vector<1x128xf32>
    %cst_178 = arith.constant -5.000000e-01 : f32
    %320 = vector.broadcast %cst_178 : f32 to vector<1x128xf32>
    %321 = arith.mulf %320, %319 : vector<1x128xf32>
    %cst_179 = arith.constant 7.35150814 : f32
    %322 = vector.broadcast %cst_179 : f32 to vector<1x128xf32>
    %323 = arith.subf %321, %322 : vector<1x128xf32>
    %324 = arith.addf %323, %305 : vector<1x128xf32>
    %325 = arith.cmpf one, %324, %324 : vector<1x128xf32>
    %cst_180 = arith.constant 0.000000e+00 : f32
    %326 = vector.broadcast %cst_180 : f32 to vector<1x128xf32>
    %327 = arith.select %325, %326, %324 : vector<1x128xi1>, vector<1x128xf32>
    %cst_181 = arith.constant 0x7F800000 : f32
    %328 = vector.broadcast %cst_181 : f32 to vector<1x128xf32>
    %329 = arith.cmpf oeq, %327, %328 : vector<1x128xf32>
    %cst_182 = arith.constant 3.40282347E+38 : f32
    %330 = vector.broadcast %cst_182 : f32 to vector<1x128xf32>
    %331 = arith.select %329, %330, %327 : vector<1x128xi1>, vector<1x128xf32>
    %cst_183 = arith.constant 0xFF800000 : f32
    %332 = vector.broadcast %cst_183 : f32 to vector<1x128xf32>
    %333 = arith.cmpf oeq, %331, %332 : vector<1x128xf32>
    %cst_184 = arith.constant -3.40282347E+38 : f32
    %334 = vector.broadcast %cst_184 : f32 to vector<1x128xf32>
    %335 = arith.select %333, %334, %331 : vector<1x128xi1>, vector<1x128xf32>
    %c0_185 = arith.constant 0 : index
    %c0_186 = arith.constant 0 : index
    %336 = vector.load %arg9[%c0_185, %c0_186] : memref<1x128xf32, #tpu.memory_space<vmem>>, vector<1x128xf32>
    tpu.vector_store %arg9[%c0_185, %c0_186], %335 {strides = array<i32>} : memref<1x128xf32, #tpu.memory_space<vmem>>, vector<1x128xf32>,
    return
  }
  func.func @transform_0(%arg0: i32) -> (i32, i32) {
    %c0_i32 = arith.constant 0 : i32
    %c0_i32_0 = arith.constant 0 : i32
    return %c0_i32, %arg0 : i32, i32
  }
  func.func @transform_1(%arg0: i32) -> (i32, i32, i32) {
    %c0_i32 = arith.constant 0 : i32
    %c0_i32_0 = arith.constant 0 : i32
    %c0_i32_1 = arith.constant 0 : i32
    %c0_i32_2 = arith.constant 0 : i32
    return %c0_i32, %c0_i32_0, %c0_i32_1 : i32, i32, i32
  }
  func.func @transform_2(%arg0: i32) -> (i32, i32, i32) {
    %c0_i32 = arith.constant 0 : i32
    %c0_i32_0 = arith.constant 0 : i32
    %c0_i32_1 = arith.constant 0 : i32
    %c0_i32_2 = arith.constant 0 : i32
    return %c0_i32, %c0_i32_0, %c0_i32_1 : i32, i32, i32
  }
  func.func @transform_3(%arg0: i32) -> (i32, i32, i32) {
    %c0_i32 = arith.constant 0 : i32
    %c0_i32_0 = arith.constant 0 : i32
    %c0_i32_1 = arith.constant 0 : i32
    %c0_i32_2 = arith.constant 0 : i32
    return %c0_i32, %c0_i32_0, %c0_i32_1 : i32, i32, i32
  }
  func.func @transform_4(%arg0: i32) -> (i32, i32, i32) {
    %c0_i32 = arith.constant 0 : i32
    %c0_i32_0 = arith.constant 0 : i32
    %c0_i32_1 = arith.constant 0 : i32
    %c0_i32_2 = arith.constant 0 : i32
    return %c0_i32, %c0_i32_0, %c0_i32_1 : i32, i32, i32
  }
  func.func @transform_5(%arg0: i32) -> (i32, i32, i32) {
    %c0_i32 = arith.constant 0 : i32
    %c0_i32_0 = arith.constant 0 : i32
    %c0_i32_1 = arith.constant 0 : i32
    %c0_i32_2 = arith.constant 0 : i32
    return %c0_i32, %c0_i32_0, %c0_i32_1 : i32, i32, i32
  }
  func.func @transform_6(%arg0: i32) -> (i32, i32, i32) {
    %c0_i32 = arith.constant 0 : i32
    %c0_i32_0 = arith.constant 0 : i32
    %c0_i32_1 = arith.constant 0 : i32
    %c0_i32_2 = arith.constant 0 : i32
    return %c0_i32, %c0_i32_0, %c0_i32_1 : i32, i32, i32
  }
  func.func @transform_7(%arg0: i32) -> (i32, i32, i32) {
    %c0_i32 = arith.constant 0 : i32
    %c0_i32_0 = arith.constant 0 : i32
    %c0_i32_1 = arith.constant 0 : i32
    %c0_i32_2 = arith.constant 0 : i32
    return %c0_i32, %c0_i32_0, %c0_i32_1 : i32, i32, i32
  }
  func.func @transform_8(%arg0: i32) -> (i32, i32) {
    %c0_i32 = arith.constant 0 : i32
    %c0_i32_0 = arith.constant 0 : i32
    return %c0_i32, %arg0 : i32, i32
  }
}

</mosaic_0001>

<llo_original>
// kernel: tpu_custom_call.1
$region0: #{tpu_custom_call.1}
  #allocation0 [shape = 'u32[]', space=smem, size = 0x4, offset = 0x4, fixed_abs, tag = 'smem constant byte address 0x4 - core index']
  #allocation1 [shape = 'u32[72,128]{1,0:T(1,128)}', space=vmem, size = 0x9000, scoped, tag = 'internal scratch']
  %s0 = inlined_call_operand.vmem [shape: f32[8,384], index: 0, kind: input, shape index: {}]
  %s1 = inlined_call_operand.vmem [shape: f32[6,8,1], index: 1, kind: input, shape index: {}]
  %s2 = inlined_call_operand.vmem [shape: bf16[6,128,8], index: 2, kind: input, shape index: {}]
  %s3 = inlined_call_operand.vmem [shape: f32[6,128,1], index: 3, kind: input, shape index: {}]
  %s4 = inlined_call_operand.vmem [shape: bf16[6,128,128], index: 4, kind: input, shape index: {}]
  %s5 = inlined_call_operand.vmem [shape: f32[6,128,1], index: 5, kind: input, shape index: {}]
  %s6 = inlined_call_operand.vmem [shape: bf16[6,16,128], index: 6, kind: input, shape index: {}]
  %s7 = inlined_call_operand.vmem [shape: f32[6,16,1], index: 7, kind: input, shape index: {}]
  %s8 = inlined_call_operand.hbm [shape: f32[1,384], index: 8, kind: output, shape index: {}]
  %s9 = sld [smem:[#allocation0]]
  $region65: #{tpu_custom_call.1} parent=0
    _
  %s11 = ssub.s32 1, %s9
  %s12 = scalar_select 0, %s11, %s9
  $region1: #{tpu_custom_call.1} parent=0
    #allocation2 [shape = 'u8[1024]{0}', space=vmem, size = 0x400, scoped, tag = 'output window, operand 0']
    #allocation3 [shape = 's32[2]{0}', space=sflag, size = 0x8, scoped, tag = 'scoped memory for tpu_custom_call.1']
    %13 = vsyncpa [#allocation3], 0
    %s14 = scalar_lea.sflag [#allocation3], 1
    %15 = vsyncpa %s14, 0
    loop: start=0, step=1, limit=5
    $region2: #{tpu_custom_call.1} parent=1 // loop_pre_header
      _
    $region3: #{tpu_custom_call.1} parent=1 // loop_header
      %s17 = sphi 0, %s21
      %p18 = scmp.ge.s32.totalorder %s17, 5
      %s27 = sphi 0, %s29
      %s30 = sphi 0, %s27
      %s31 = sphi 0, %s30
      %s47 = sphi 0, %s31
      %s51 = sphi 0, %s51
      %s53 = sphi 0, %s51
      %s54 = sphi 0, %s53
      %s68 = sphi 0, %s54
      %s72 = sphi 0, %s72
      %s74 = sphi 0, %s72
      %s75 = sphi 0, %s74
      %s89 = sphi 0, %s75
      %s93 = sphi 0, %s93
      %s95 = sphi 0, %s93
      %s96 = sphi 0, %s95
      %s110 = sphi 0, %s96
      %s114 = sphi 0, %s114
      %s116 = sphi 0, %s114
      %s117 = sphi 0, %s116
      %s131 = sphi 0, %s117
      %s135 = sphi 0, %s135
      %s137 = sphi 0, %s135
      %s138 = sphi 0, %s137
      %s152 = sphi 0, %s138
      %s156 = sphi 0, %s156
      %s158 = sphi 0, %s156
      %s159 = sphi 0, %s158
      %s173 = sphi 0, %s159
      %s177 = sphi 0, %s177
      %s179 = sphi 0, %s177
      %s180 = sphi 0, %s179
      %s194 = sphi 0, %s180
      %s200 = sphi 0, %s202
      %s203 = sphi 0, %s200
      %s204 = sphi 0, %s203
      %s220 = sphi 0, %s204
    $region4: #{tpu_custom_call.1} parent=1 // loop_header_branch
      %20 = sbr.rel (%p18) target = $region8
    $region5: #{tpu_custom_call.1} parent=1 // loop_body
      %s22 = ssub.s32 %s17, 1
      %s23 = ssub.s32 %s17, 2
      %s24 = sadd.s32 %s17, 1
      %s25 = ssub.s32 %s17, %s24
      %p26 = scmp.eq.s32.totalorder %s25, 0
      %s28 = sadd.s32 %s27, 1
      %s29 = scalar_select %p26, %s27, %s28
      %p32 = pneg %p26
      %p33 = scmp.eq.s32.totalorder %s17, 2
      %p34 = por %p32, %p33
      %p35 = scmp.ne.s32.totalorder %s27, %s30
      %p36 = scmp.eq.s32.totalorder %s17, 0
      %p37 = por %p35, %p36
      %p38 = scmp.ne.s32.totalorder %s27, %s30
      %p39 = scmp.eq.s32.totalorder %s22, 2
      %p40 = por %p38, %p39
      %p41 = scmp.ne.s32.totalorder %s30, %s31
      %p42 = scmp.eq.s32.totalorder %s22, 0
      %p43 = por %p41, %p42
      %p44 = scmp.ne.s32.totalorder %s30, %s31
      %p45 = scmp.eq.s32.totalorder %s23, 2
      %p46 = por %p44, %p45
      %p48 = scmp.ne.s32.totalorder %s31, %s47
      %p49 = scmp.eq.s32.totalorder %s23, 0
      %p50 = por %p48, %p49
      %s52 = sadd.s32 %s51, 1
      %p55 = scmp.eq.s32.totalorder %s17, 2
      %p56 = scmp.ne.s32.totalorder %s51, %s53
      %p57 = scmp.eq.s32.totalorder %s17, 0
      %p58 = por %p56, %p57
      %p59 = scmp.ne.s32.totalorder %s51, %s53
      %p60 = scmp.eq.s32.totalorder %s22, 2
      %p61 = por %p59, %p60
      %p62 = scmp.ne.s32.totalorder %s53, %s54
      %p63 = scmp.eq.s32.totalorder %s22, 0
      %p64 = por %p62, %p63
      %p65 = scmp.ne.s32.totalorder %s53, %s54
      %p66 = scmp.eq.s32.totalorder %s23, 2
      %p67 = por %p65, %p66
      %p69 = scmp.ne.s32.totalorder %s54, %s68
      %p70 = scmp.eq.s32.totalorder %s23, 0
      %p71 = por %p69, %p70
      %s73 = sadd.s32 %s72, 1
      %p76 = scmp.eq.s32.totalorder %s17, 2
      %p77 = scmp.ne.s32.totalorder %s72, %s74
      %p78 = scmp.eq.s32.totalorder %s17, 0
      %p79 = por %p77, %p78
      %p80 = scmp.ne.s32.totalorder %s72, %s74
      %p81 = scmp.eq.s32.totalorder %s22, 2
      %p82 = por %p80, %p81
      %p83 = scmp.ne.s32.totalorder %s74, %s75
      %p84 = scmp.eq.s32.totalorder %s22, 0
      %p85 = por %p83, %p84
      %p86 = scmp.ne.s32.totalorder %s74, %s75
      %p87 = scmp.eq.s32.totalorder %s23, 2
      %p88 = por %p86, %p87
      %p90 = scmp.ne.s32.totalorder %s75, %s89
      %p91 = scmp.eq.s32.totalorder %s23, 0
      %p92 = por %p90, %p91
      %s94 = sadd.s32 %s93, 1
      %p97 = scmp.eq.s32.totalorder %s17, 2
      %p98 = scmp.ne.s32.totalorder %s93, %s95
      %p99 = scmp.eq.s32.totalorder %s17, 0
      %p100 = por %p98, %p99
      %p101 = scmp.ne.s32.totalorder %s93, %s95
      %p102 = scmp.eq.s32.totalorder %s22, 2
      %p103 = por %p101, %p102
      %p104 = scmp.ne.s32.totalorder %s95, %s96
      %p105 = scmp.eq.s32.totalorder %s22, 0
      %p106 = por %p104, %p105
      %p107 = scmp.ne.s32.totalorder %s95, %s96
      %p108 = scmp.eq.s32.totalorder %s23, 2
      %p109 = por %p107, %p108
      %p111 = scmp.ne.s32.totalorder %s96, %s110
      %p112 = scmp.eq.s32.totalorder %s23, 0
      %p113 = por %p111, %p112
      %s115 = sadd.s32 %s114, 1
      %p118 = scmp.eq.s32.totalorder %s17, 2
      %p119 = scmp.ne.s32.totalorder %s114, %s116
      %p120 = scmp.eq.s32.totalorder %s17, 0
      %p121 = por %p119, %p120
      %p122 = scmp.ne.s32.totalorder %s114, %s116
      %p123 = scmp.eq.s32.totalorder %s22, 2
      %p124 = por %p122, %p123
      %p125 = scmp.ne.s32.totalorder %s116, %s117
      %p126 = scmp.eq.s32.totalorder %s22, 0
      %p127 = por %p125, %p126
      %p128 = scmp.ne.s32.totalorder %s116, %s117
      %p129 = scmp.eq.s32.totalorder %s23, 2
      %p130 = por %p128, %p129
      %p132 = scmp.ne.s32.totalorder %s117, %s131
      %p133 = scmp.eq.s32.totalorder %s23, 0
      %p134 = por %p132, %p133
      %s136 = sadd.s32 %s135, 1
      %p139 = scmp.eq.s32.totalorder %s17, 2
      %p140 = scmp.ne.s32.totalorder %s135, %s137
      %p141 = scmp.eq.s32.totalorder %s17, 0
      %p142 = por %p140, %p141
      %p143 = scmp.ne.s32.totalorder %s135, %s137
      %p144 = scmp.eq.s32.totalorder %s22, 2
      %p145 = por %p143, %p144
      %p146 = scmp.ne.s32.totalorder %s137, %s138
      %p147 = scmp.eq.s32.totalorder %s22, 0
      %p148 = por %p146, %p147
      %p149 = scmp.ne.s32.totalorder %s137, %s138
      %p150 = scmp.eq.s32.totalorder %s23, 2
      %p151 = por %p149, %p150
      %p153 = scmp.ne.s32.totalorder %s138, %s152
      %p154 = scmp.eq.s32.totalorder %s23, 0
      %p155 = por %p153, %p154
      %s157 = sadd.s32 %s156, 1
      %p160 = scmp.eq.s32.totalorder %s17, 2
      %p161 = scmp.ne.s32.totalorder %s156, %s158
      %p162 = scmp.eq.s32.totalorder %s17, 0
      %p163 = por %p161, %p162
      %p164 = scmp.ne.s32.totalorder %s156, %s158
      %p165 = scmp.eq.s32.totalorder %s22, 2
      %p166 = por %p164, %p165
      %p167 = scmp.ne.s32.totalorder %s158, %s159
      %p168 = scmp.eq.s32.totalorder %s22, 0
      %p169 = por %p167, %p168
      %p170 = scmp.ne.s32.totalorder %s158, %s159
      %p171 = scmp.eq.s32.totalorder %s23, 2
      %p172 = por %p170, %p171
      %p174 = scmp.ne.s32.totalorder %s159, %s173
      %p175 = scmp.eq.s32.totalorder %s23, 0
      %p176 = por %p174, %p175
      %s178 = sadd.s32 %s177, 1
      %p181 = scmp.eq.s32.totalorder %s17, 2
      %p182 = scmp.ne.s32.totalorder %s177, %s179
      %p183 = scmp.eq.s32.totalorder %s17, 0
      %p184 = por %p182, %p183
      %p185 = scmp.ne.s32.totalorder %s177, %s179
      %p186 = scmp.eq.s32.totalorder %s22, 2
      %p187 = por %p185, %p186
      %p188 = scmp.ne.s32.totalorder %s179, %s180
      %p189 = scmp.eq.s32.totalorder %s22, 0
      %p190 = por %p188, %p189
      %p191 = scmp.ne.s32.totalorder %s179, %s180
      %p192 = scmp.eq.s32.totalorder %s23, 2
      %p193 = por %p191, %p192
      %p195 = scmp.ne.s32.totalorder %s180, %s194
      %p196 = scmp.eq.s32.totalorder %s23, 0
      %p197 = por %p195, %p196
      %s198 = ssub.s32 %s17, %s24
      %p199 = scmp.eq.s32.totalorder %s198, 0
      %s201 = sadd.s32 %s200, 1
      %s202 = scalar_select %p199, %s200, %s201
      %p205 = pneg %p199
      %p206 = scmp.eq.s32.totalorder %s17, 2
      %p207 = por %p205, %p206
      %p208 = scmp.ne.s32.totalorder %s200, %s203
      %p209 = scmp.eq.s32.totalorder %s17, 0
      %p210 = por %p208, %p209
      %p211 = scmp.ne.s32.totalorder %s200, %s203
      %p212 = scmp.eq.s32.totalorder %s22, 2
      %p213 = por %p211, %p212
      %p214 = scmp.ne.s32.totalorder %s203, %s204
      %p215 = scmp.eq.s32.totalorder %s22, 0
      %p216 = por %p214, %p215
      %p217 = scmp.ne.s32.totalorder %s203, %s204
      %p218 = scmp.eq.s32.totalorder %s23, 2
      %p219 = por %p217, %p218
      %p221 = scmp.ne.s32.totalorder %s204, %s220
      %p222 = scmp.eq.s32.totalorder %s23, 0
      %p223 = por %p221, %p222
      %p224 = scmp.le.s32.totalorder 1, %s17
      %p225 = scmp.lt.s32.totalorder %s17, 4
      %p226 = pnand %p224, %p225
      %p227 = pneg %p226
      // Predicated region
      $region9: #{tpu_custom_call.1} parent=5 // pred_check
        _
      $region10: #{tpu_custom_call.1} parent=5 // pred_check_branch
        %229 = sbr.rel (%p226) target = $region12
      $region11: #{tpu_custom_call.1} parent=5 // pred_region
        %s230 = ssub.s32 %s17, 1
        // Predicated region
        $region13: #{tpu_custom_call.1} parent=11 // pred_check
          %p231 = pneg %p64
        $region14: #{tpu_custom_call.1} parent=11 // pred_check_branch
          %233 = sbr.rel (%p231) target = $region16
        $region15: #{tpu_custom_call.1} parent=11 // pred_region
          _
        $region16: #{tpu_custom_call.1} parent=11 // pred_fallthru
          _
        // Predicated region
        $region17: #{tpu_custom_call.1} parent=11 // pred_check
          %p234 = pneg %p85
        $region18: #{tpu_custom_call.1} parent=11 // pred_check_branch
          %236 = sbr.rel (%p234) target = $region20
        $region19: #{tpu_custom_call.1} parent=11 // pred_region
          _
        $region20: #{tpu_custom_call.1} parent=11 // pred_fallthru
          _
        // Predicated region
        $region21: #{tpu_custom_call.1} parent=11 // pred_check
          %p237 = pneg %p106
        $region22: #{tpu_custom_call.1} parent=11 // pred_check_branch
          %239 = sbr.rel (%p237) target = $region24
        $region23: #{tpu_custom_call.1} parent=11 // pred_region
          _
        $region24: #{tpu_custom_call.1} parent=11 // pred_fallthru
          _
        // Predicated region
        $region25: #{tpu_custom_call.1} parent=11 // pred_check
          %p240 = pneg %p127
        $region26: #{tpu_custom_call.1} parent=11 // pred_check_branch
          %242 = sbr.rel (%p240) target = $region28
        $region27: #{tpu_custom_call.1} parent=11 // pred_region
          _
        $region28: #{tpu_custom_call.1} parent=11 // pred_fallthru
          _
        // Predicated region
        $region29: #{tpu_custom_call.1} parent=11 // pred_check
          %p243 = pneg %p148
        $region30: #{tpu_custom_call.1} parent=11 // pred_check_branch
          %245 = sbr.rel (%p243) target = $region32
        $region31: #{tpu_custom_call.1} parent=11 // pred_region
          _
        $region32: #{tpu_custom_call.1} parent=11 // pred_fallthru
          _
        // Predicated region
        $region33: #{tpu_custom_call.1} parent=11 // pred_check
          %p246 = pneg %p169
        $region34: #{tpu_custom_call.1} parent=11 // pred_check_branch
          %248 = sbr.rel (%p246) target = $region36
        $region35: #{tpu_custom_call.1} parent=11 // pred_region
          _
        $region36: #{tpu_custom_call.1} parent=11 // pred_fallthru
          _
        // Predicated region
        $region37: #{tpu_custom_call.1} parent=11 // pred_check
          %p249 = pneg %p190
        $region38: #{tpu_custom_call.1} parent=11 // pred_check_branch
          %251 = sbr.rel (%p249) target = $region40
        $region39: #{tpu_custom_call.1} parent=11 // pred_region
          _
        $region40: #{tpu_custom_call.1} parent=11 // pred_fallthru
          _
      $region12: #{tpu_custom_call.1} parent=5 // pred_fallthru
        _
      %p252 = scmp.lt.s32.totalorder %s17, 3
      // Predicated region
      $region41: #{tpu_custom_call.1} parent=5 // pred_check
        %p253 = pneg %p252
      $region42: #{tpu_custom_call.1} parent=5 // pred_check_branch
        %255 = sbr.rel (%p253) target = $region44
      $region43: #{tpu_custom_call.1} parent=5 // pred_region
        // Predicated region
        $region45: #{tpu_custom_call.1} parent=43 // pred_check
          %p256 = pneg %p37
        $region46: #{tpu_custom_call.1} parent=43 // pred_check_branch
          %258 = sbr.rel (%p256) target = $region48
        $region47: #{tpu_custom_call.1} parent=43 // pred_region
          %p259 = scmp.lt.s32.totalorder %s17, 2
          %s260 = scalar_select %p259, %s17, 2
          %s261 = smul.addr %s260, 8
          %s262 = scalar_lea.vmem %s0, %s261
        $region48: #{tpu_custom_call.1} parent=43 // pred_fallthru
          _
      $region44: #{tpu_custom_call.1} parent=5 // pred_fallthru
        _
      %p263 = scmp.le.s32.totalorder 1, %s17
      %p264 = scmp.lt.s32.totalorder %s17, 4
      %p265 = pnand %p263, %p264
      %p266 = pneg %p265
      // Predicated region
      $region49: #{tpu_custom_call.1} parent=5 // pred_check
        _
      $region50: #{tpu_custom_call.1} parent=5 // pred_check_branch
        %268 = sbr.rel (%p265) target = $region52
      $region51: #{tpu_custom_call.1} parent=5 // pred_region
        %s269 = ssub.s32 %s17, 1
        %p270 = scmp.lt.s32.totalorder %s22, 2
        %s271 = scalar_select %p270, %s22, 2
        %s272 = smul.addr %s271, 8
        %s273 = scalar_lea.vmem %s0, %s272
        %p274 = pneg %p43
        %p275 = pneg %p40
        %p276 = pneg %p64
        %p277 = pneg %p61
        %p278 = pneg %p85
        %p279 = pneg %p82
        %p280 = pneg %p106
        %p281 = pneg %p103
        %p282 = pneg %p127
        %p283 = pneg %p124
        %p284 = pneg %p148
        %p285 = pneg %p145
        %p286 = pneg %p169
        %p287 = pneg %p166
        %p288 = pneg %p190
        %p289 = pneg %p187
        %p290 = pneg %p216
        %p291 = pneg %p213
        %s292 = sand.u32 %s203, 1
        %s293 = scalar_lea.sflag [#allocation3], %s292
        %s294 = sand.u32 %s203, 1
        %s295 = scalar_lea.vmem [#allocation2], %s294
        %p296 = scmp.lt.s32.totalorder %s22, 2
        %s297 = scalar_select %p296, %s22, 2
        %s298 = smul.addr %s297, 8
        %s299 = scalar_lea.vmem %s0, %s298
        %v301 = vld [vmem:[%s299] sm:$0xff]
        %s302 = scalar_lea.vmem %s1, 40
        %v303 = vld [vmem:[%s302] sm:$0xff]
        %v304 = vsub.f32 1.0, %v303
        %306 = vset.pattern.permute.xlu0 0
        %307 = vperm.xlu0 %306, %v303
        %v308 = vpop.permute.xlu0 %307
        %v310 = vmul.f32 %v308, %v301
        %s311 = scalar_lea.vmem %s2, 320
        %v312 = vld [vmem:[%s311] sm:$0xf]
        %v313 = vld [vmem:[%s311 + $0x4] sm:$0xf]
        %v314 = vld [vmem:[%s311 + $0x8] sm:$0xf]
        %v315 = vld [vmem:[%s311 + $0xc] sm:$0xf]
        %v316 = vld [vmem:[%s311 + $0x10] sm:$0xf]
        %v317 = vld [vmem:[%s311 + $0x14] sm:$0xf]
        %v318 = vld [vmem:[%s311 + $0x18] sm:$0xf]
        %v319 = vld [vmem:[%s311 + $0x1c] sm:$0xf]
        %v320 = vld [vmem:[%s311 + $0x20] sm:$0xf]
        %v321 = vld [vmem:[%s311 + $0x24] sm:$0xf]
        %v322 = vld [vmem:[%s311 + $0x28] sm:$0xf]
        %v323 = vld [vmem:[%s311 + $0x2c] sm:$0xf]
        %v324 = vld [vmem:[%s311 + $0x30] sm:$0xf]
        %v325 = vld [vmem:[%s311 + $0x34] sm:$0xf]
        %v326 = vld [vmem:[%s311 + $0x38] sm:$0xf]
        %v327 = vld [vmem:[%s311 + $0x3c] sm:$0xf]
        %v328 = vpack.c.bf16 %v310, %v310
        %s329 = scalar_lea.vmem %s3, 640
        %v330 = vld [vmem:[%s329] sm:$0xff]
        %v331 = vld [vmem:[%s329 + $0x8] sm:$0xff]
        %v332 = vld [vmem:[%s329 + $0x10] sm:$0xff]
        %v333 = vld [vmem:[%s329 + $0x18] sm:$0xff]
        %v334 = vld [vmem:[%s329 + $0x20] sm:$0xff]
        %v335 = vld [vmem:[%s329 + $0x28] sm:$0xff]
        %v336 = vld [vmem:[%s329 + $0x30] sm:$0xff]
        %v337 = vld [vmem:[%s329 + $0x38] sm:$0xff]
        %v338 = vld [vmem:[%s329 + $0x40] sm:$0xff]
        %v339 = vld [vmem:[%s329 + $0x48] sm:$0xff]
        %v340 = vld [vmem:[%s329 + $0x50] sm:$0xff]
        %v341 = vld [vmem:[%s329 + $0x58] sm:$0xff]
        %v342 = vld [vmem:[%s329 + $0x60] sm:$0xff]
        %v343 = vld [vmem:[%s329 + $0x68] sm:$0xff]
        %v344 = vld [vmem:[%s329 + $0x70] sm:$0xff]
        %v345 = vld [vmem:[%s329 + $0x78] sm:$0xff]
        %347 = vset.pattern.permute.xlu0 0
        %348 = vperm.xlu0 %347, %v330
        %v349 = vpop.permute.xlu0 %348
        %352 = vset.pattern.permute.xlu0 0
        %353 = vperm.xlu0 %352, %v331
        %v354 = vpop.permute.xlu0 %353
        %357 = vset.pattern.permute.xlu0 0
        %358 = vperm.xlu0 %357, %v332
        %v359 = vpop.permute.xlu0 %358
        %362 = vset.pattern.permute.xlu0 0
        %363 = vperm.xlu0 %362, %v333
        %v364 = vpop.permute.xlu0 %363
        %367 = vset.pattern.permute.xlu0 0
        %368 = vperm.xlu0 %367, %v334
        %v369 = vpop.permute.xlu0 %368
        %372 = vset.pattern.permute.xlu0 0
        %373 = vperm.xlu0 %372, %v335
        %v374 = vpop.permute.xlu0 %373
        %377 = vset.pattern.permute.xlu0 0
        %378 = vperm.xlu0 %377, %v336
        %v379 = vpop.permute.xlu0 %378
        %382 = vset.pattern.permute.xlu0 0
        %383 = vperm.xlu0 %382, %v337
        %v384 = vpop.permute.xlu0 %383
        %387 = vset.pattern.permute.xlu0 0
        %388 = vperm.xlu0 %387, %v338
        %v389 = vpop.permute.xlu0 %388
        %392 = vset.pattern.permute.xlu0 0
        %393 = vperm.xlu0 %392, %v339
        %v394 = vpop.permute.xlu0 %393
        %397 = vset.pattern.permute.xlu0 0
        %398 = vperm.xlu0 %397, %v340
        %v399 = vpop.permute.xlu0 %398
        %402 = vset.pattern.permute.xlu0 0
        %403 = vperm.xlu0 %402, %v341
        %v404 = vpop.permute.xlu0 %403
        %407 = vset.pattern.permute.xlu0 0
        %408 = vperm.xlu0 %407, %v342
        %v409 = vpop.permute.xlu0 %408
        %412 = vset.pattern.permute.xlu0 0
        %413 = vperm.xlu0 %412, %v343
        %v414 = vpop.permute.xlu0 %413
        %417 = vset.pattern.permute.xlu0 0
        %418 = vperm.xlu0 %417, %v344
        %v419 = vpop.permute.xlu0 %418
        %422 = vset.pattern.permute.xlu0 0
        %423 = vperm.xlu0 %422, %v345
        %v424 = vpop.permute.xlu0 %423
        %v442 = vunpack.c.l.b16 %v312
        %v443 = vunpack.c.l.b16 %v313
        %v444 = vunpack.c.l.b16 %v314
        %v445 = vunpack.c.l.b16 %v315
        %v446 = vunpack.c.l.b16 %v316
        %v447 = vunpack.c.l.b16 %v317
        %v448 = vunpack.c.l.b16 %v318
        %v449 = vunpack.c.l.b16 %v319
        %v450 = vunpack.c.l.b16 %v320
        %v451 = vunpack.c.l.b16 %v321
        %v452 = vunpack.c.l.b16 %v322
        %v453 = vunpack.c.l.b16 %v323
        %v454 = vunpack.c.l.b16 %v324
        %v455 = vunpack.c.l.b16 %v325
        %v456 = vunpack.c.l.b16 %v326
        %v457 = vunpack.c.l.b16 %v327
        %v458 = vpack.c.b16 %v443, %v442
        %v459 = vpack.c.b16 %v445, %v444
        %v460 = vpack.c.b16 %v447, %v446
        %v461 = vpack.c.b16 %v449, %v448
        %v462 = vpack.c.b16 %v451, %v450
        %v463 = vpack.c.b16 %v453, %v452
        %v464 = vpack.c.b16 %v455, %v454
        %v465 = vpack.c.b16 %v457, %v456
        %vm466 = vcmask 64512
        %v468 = vsel %vm466, %v458, 0
        %v471 = vsel %vm466, %v459, 0
        %v474 = vsel %vm466, %v460, 0
        %v477 = vsel %vm466, %v461, 0
        %v480 = vsel %vm466, %v462, 0
        %v483 = vsel %vm466, %v463, 0
        %v486 = vsel %vm466, %v464, 0
        %v489 = vsel %vm466, %v465, 0
        %vm491 = vcmask 1043456
        %v493 = vsel %vm491, %v328, 0
        %495 = vmatpush.bf16.msra.mxu0 0
        %496 = vmatpush.bf16.msra.mxu0 0
        %497 = vmatpush.bf16.msra.mxu0 0
        %498 = vmatpush.bf16.msra.mxu0 0
        %499 = vmatpush.bf16.msra.mxu0 0
        %500 = vmatpush.bf16.msra.mxu0 0
        %501 = vmatpush.bf16.msra.mxu0 0
        %502 = vmatpush.bf16.msra.mxu0 %v493
        %503 = vmatmul.bf16.gmra.mxu0 %v468
        %v504 = vpop.f32.mrf.mxu0
        %v505 = vadd.f32 %v349, %v504
        %v506 = vpop.f32.mrf.mxu0
        %v507 = vadd.f32 %v354, %v506
        %508 = vmatmul.bf16.gmra.mxu0 %v471
        %v509 = vpop.f32.mrf.mxu0
        %v510 = vadd.f32 %v359, %v509
        %v511 = vpop.f32.mrf.mxu0
        %v512 = vadd.f32 %v364, %v511
        %513 = vmatmul.bf16.gmra.mxu0 %v474
        %v514 = vpop.f32.mrf.mxu0
        %v515 = vadd.f32 %v369, %v514
        %v516 = vpop.f32.mrf.mxu0
        %v517 = vadd.f32 %v374, %v516
        %518 = vmatmul.bf16.gmra.mxu0 %v477
        %v519 = vpop.f32.mrf.mxu0
        %v520 = vadd.f32 %v379, %v519
        %v521 = vpop.f32.mrf.mxu0
        %v522 = vadd.f32 %v384, %v521
        %523 = vmatmul.bf16.gmra.mxu0 %v480
        %v524 = vpop.f32.mrf.mxu0
        %v525 = vadd.f32 %v389, %v524
        %v526 = vpop.f32.mrf.mxu0
        %v527 = vadd.f32 %v394, %v526
        %528 = vmatmul.bf16.gmra.mxu0 %v483
        %v529 = vpop.f32.mrf.mxu0
        %v530 = vadd.f32 %v399, %v529
        %v531 = vpop.f32.mrf.mxu0
        %v532 = vadd.f32 %v404, %v531
        %533 = vmatmul.bf16.gmra.mxu0 %v486
        %v534 = vpop.f32.mrf.mxu0
        %v535 = vadd.f32 %v409, %v534
        %v536 = vpop.f32.mrf.mxu0
        %v537 = vadd.f32 %v414, %v536
        %538 = vmatmul.bf16.gmra.mxu0 %v489
        %v539 = vpop.f32.mrf.mxu0
        %v540 = vadd.f32 %v419, %v539
        %v541 = vpop.f32.mrf.mxu0
        %v542 = vadd.f32 %v424, %v541
        %543 = vdwg.mxu0
        %v544 = vmul.f32 %v505, 0.01
        %v545 = vmul.f32 %v507, 0.01
        %v546 = vmul.f32 %v510, 0.01
        %v547 = vmul.f32 %v512, 0.01
        %v548 = vmul.f32 %v515, 0.01
        %v549 = vmul.f32 %v517, 0.01
        %v550 = vmul.f32 %v520, 0.01
        %v551 = vmul.f32 %v522, 0.01
        %v552 = vmul.f32 %v525, 0.01
        %v553 = vmul.f32 %v527, 0.01
        %v554 = vmul.f32 %v530, 0.01
        %v555 = vmul.f32 %v532, 0.01
        %v556 = vmul.f32 %v535, 0.01
        %v557 = vmul.f32 %v537, 0.01
        %v558 = vmul.f32 %v540, 0.01
        %v559 = vmul.f32 %v542, 0.01
        %v560 = vmax.f32 %v505, %v544
        %v561 = vmax.f32 %v507, %v545
        %v562 = vmax.f32 %v510, %v546
        %v563 = vmax.f32 %v512, %v547
        %v564 = vmax.f32 %v515, %v548
        %v565 = vmax.f32 %v517, %v549
        %v566 = vmax.f32 %v520, %v550
        %v567 = vmax.f32 %v522, %v551
        %v568 = vmax.f32 %v525, %v552
        %v569 = vmax.f32 %v527, %v553
        %v570 = vmax.f32 %v530, %v554
        %v571 = vmax.f32 %v532, %v555
        %v572 = vmax.f32 %v535, %v556
        %v573 = vmax.f32 %v537, %v557
        %v574 = vmax.f32 %v540, %v558
        %v575 = vmax.f32 %v542, %v559
        %s576 = scalar_lea.vmem %s4, 320
        %v577 = vld [vmem:[%s576] sm:$0xf]
        %v578 = vld [vmem:[%s576 + $0x4] sm:$0xf]
        %v579 = vld [vmem:[%s576 + $0x8] sm:$0xf]
        %v580 = vld [vmem:[%s576 + $0xc] sm:$0xf]
        %v581 = vld [vmem:[%s576 + $0x10] sm:$0xf]
        %v582 = vld [vmem:[%s576 + $0x14] sm:$0xf]
        %v583 = vld [vmem:[%s576 + $0x18] sm:$0xf]
        %v584 = vld [vmem:[%s576 + $0x1c] sm:$0xf]
        %v585 = vld [vmem:[%s576 + $0x20] sm:$0xf]
        %v586 = vld [vmem:[%s576 + $0x24] sm:$0xf]
        %v587 = vld [vmem:[%s576 + $0x28] sm:$0xf]
        %v588 = vld [vmem:[%s576 + $0x2c] sm:$0xf]
        %v589 = vld [vmem:[%s576 + $0x30] sm:$0xf]
        %v590 = vld [vmem:[%s576 + $0x34] sm:$0xf]
        %v591 = vld [vmem:[%s576 + $0x38] sm:$0xf]
        %v592 = vld [vmem:[%s576 + $0x3c] sm:$0xf]
        %v593 = vpack.c.bf16 %v561, %v560
        %v594 = vpack.c.bf16 %v563, %v562
        %v595 = vpack.c.bf16 %v565, %v564
        %v596 = vpack.c.bf16 %v567, %v566
        %v597 = vpack.c.bf16 %v569, %v568
        %v598 = vpack.c.bf16 %v571, %v570
        %v599 = vpack.c.bf16 %v573, %v572
        %v600 = vpack.c.bf16 %v575, %v574
        %s601 = scalar_lea.vmem %s5, 640
        %v602 = vld [vmem:[%s601] sm:$0xff]
        %v603 = vld [vmem:[%s601 + $0x8] sm:$0xff]
        %v604 = vld [vmem:[%s601 + $0x10] sm:$0xff]
        %v605 = vld [vmem:[%s601 + $0x18] sm:$0xff]
        %v606 = vld [vmem:[%s601 + $0x20] sm:$0xff]
        %v607 = vld [vmem:[%s601 + $0x28] sm:$0xff]
        %v608 = vld [vmem:[%s601 + $0x30] sm:$0xff]
        %v609 = vld [vmem:[%s601 + $0x38] sm:$0xff]
        %v610 = vld [vmem:[%s601 + $0x40] sm:$0xff]
        %v611 = vld [vmem:[%s601 + $0x48] sm:$0xff]
        %v612 = vld [vmem:[%s601 + $0x50] sm:$0xff]
        %v613 = vld [vmem:[%s601 + $0x58] sm:$0xff]
        %v614 = vld [vmem:[%s601 + $0x60] sm:$0xff]
        %v615 = vld [vmem:[%s601 + $0x68] sm:$0xff]
        %v616 = vld [vmem:[%s601 + $0x70] sm:$0xff]
        %v617 = vld [vmem:[%s601 + $0x78] sm:$0xff]
        %619 = vset.pattern.permute.xlu0 0
        %620 = vperm.xlu0 %619, %v602
        %v621 = vpop.permute.xlu0 %620
        %624 = vset.pattern.permute.xlu0 0
        %625 = vperm.xlu0 %624, %v603
        %v626 = vpop.permute.xlu0 %625
        %629 = vset.pattern.permute.xlu0 0
        %630 = vperm.xlu0 %629, %v604
        %v631 = vpop.permute.xlu0 %630
        %634 = vset.pattern.permute.xlu0 0
        %635 = vperm.xlu0 %634, %v605
        %v636 = vpop.permute.xlu0 %635
        %639 = vset.pattern.permute.xlu0 0
        %640 = vperm.xlu0 %639, %v606
        %v641 = vpop.permute.xlu0 %640
        %644 = vset.pattern.permute.xlu0 0
        %645 = vperm.xlu0 %644, %v607
        %v646 = vpop.permute.xlu0 %645
        %649 = vset.pattern.permute.xlu0 0
        %650 = vperm.xlu0 %649, %v608
        %v651 = vpop.permute.xlu0 %650
        %654 = vset.pattern.permute.xlu0 0
        %655 = vperm.xlu0 %654, %v609
        %v656 = vpop.permute.xlu0 %655
        %659 = vset.pattern.permute.xlu0 0
        %660 = vperm.xlu0 %659, %v610
        %v661 = vpop.permute.xlu0 %660
        %664 = vset.pattern.permute.xlu0 0
        %665 = vperm.xlu0 %664, %v611
        %v666 = vpop.permute.xlu0 %665
        %669 = vset.pattern.permute.xlu0 0
        %670 = vperm.xlu0 %669, %v612
        %v671 = vpop.permute.xlu0 %670
        %674 = vset.pattern.permute.xlu0 0
        %675 = vperm.xlu0 %674, %v613
        %v676 = vpop.permute.xlu0 %675
        %679 = vset.pattern.permute.xlu0 0
        %680 = vperm.xlu0 %679, %v614
        %v681 = vpop.permute.xlu0 %680
        %684 = vset.pattern.permute.xlu0 0
        %685 = vperm.xlu0 %684, %v615
        %v686 = vpop.permute.xlu0 %685
        %689 = vset.pattern.permute.xlu0 0
        %690 = vperm.xlu0 %689, %v616
        %v691 = vpop.permute.xlu0 %690
        %694 = vset.pattern.permute.xlu0 0
        %695 = vperm.xlu0 %694, %v617
        %v696 = vpop.permute.xlu0 %695
        %v714 = vunpack.c.l.b16 %v577
        %v715 = vunpack.c.l.b16 %v578
        %v716 = vunpack.c.l.b16 %v579
        %v717 = vunpack.c.l.b16 %v580
        %v718 = vunpack.c.l.b16 %v581
        %v719 = vunpack.c.l.b16 %v582
        %v720 = vunpack.c.l.b16 %v583
        %v721 = vunpack.c.l.b16 %v584
        %v722 = vunpack.c.l.b16 %v585
        %v723 = vunpack.c.l.b16 %v586
        %v724 = vunpack.c.l.b16 %v587
        %v725 = vunpack.c.l.b16 %v588
        %v726 = vunpack.c.l.b16 %v589
        %v727 = vunpack.c.l.b16 %v590
        %v728 = vunpack.c.l.b16 %v591
        %v729 = vunpack.c.l.b16 %v592
        %v730 = vpack.c.b16 %v715, %v714
        %v731 = vpack.c.b16 %v717, %v716
        %v732 = vpack.c.b16 %v719, %v718
        %v733 = vpack.c.b16 %v721, %v720
        %v734 = vpack.c.b16 %v723, %v722
        %v735 = vpack.c.b16 %v725, %v724
        %v736 = vpack.c.b16 %v727, %v726
        %v737 = vpack.c.b16 %v729, %v728
        %746 = vmatpush.bf16.msra.mxu0 %v600
        %747 = vmatpush.bf16.msra.mxu0 %v599
        %748 = vmatpush.bf16.msra.mxu0 %v598
        %749 = vmatpush.bf16.msra.mxu0 %v597
        %750 = vmatpush.bf16.msra.mxu0 %v596
        %751 = vmatpush.bf16.msra.mxu0 %v595
        %752 = vmatpush.bf16.msra.mxu0 %v594
        %753 = vmatpush.bf16.msra.mxu0 %v593
        %754 = vmatmul.bf16.gmra.mxu0 %v730
        %v755 = vpop.f32.mrf.mxu0
        %v756 = vadd.f32 %v621, %v755
        %v757 = vpop.f32.mrf.mxu0
        %v758 = vadd.f32 %v626, %v757
        %759 = vmatmul.bf16.gmra.mxu0 %v731
        %v760 = vpop.f32.mrf.mxu0
        %v761 = vadd.f32 %v631, %v760
        %v762 = vpop.f32.mrf.mxu0
        %v763 = vadd.f32 %v636, %v762
        %764 = vmatmul.bf16.gmra.mxu0 %v732
        %v765 = vpop.f32.mrf.mxu0
        %v766 = vadd.f32 %v641, %v765
        %v767 = vpop.f32.mrf.mxu0
        %v768 = vadd.f32 %v646, %v767
        %769 = vmatmul.bf16.gmra.mxu0 %v733
        %v770 = vpop.f32.mrf.mxu0
        %v771 = vadd.f32 %v651, %v770
        %v772 = vpop.f32.mrf.mxu0
        %v773 = vadd.f32 %v656, %v772
        %774 = vmatmul.bf16.gmra.mxu0 %v734
        %v775 = vpop.f32.mrf.mxu0
        %v776 = vadd.f32 %v661, %v775
        %v777 = vpop.f32.mrf.mxu0
        %v778 = vadd.f32 %v666, %v777
        %779 = vmatmul.bf16.gmra.mxu0 %v735
        %v780 = vpop.f32.mrf.mxu0
        %v781 = vadd.f32 %v671, %v780
        %v782 = vpop.f32.mrf.mxu0
        %v783 = vadd.f32 %v676, %v782
        %784 = vmatmul.bf16.gmra.mxu0 %v736
        %v785 = vpop.f32.mrf.mxu0
        %v786 = vadd.f32 %v681, %v785
        %v787 = vpop.f32.mrf.mxu0
        %v788 = vadd.f32 %v686, %v787
        %789 = vmatmul.bf16.gmra.mxu0 %v737
        %v790 = vpop.f32.mrf.mxu0
        %v791 = vadd.f32 %v691, %v790
        %v792 = vpop.f32.mrf.mxu0
        %v793 = vadd.f32 %v696, %v792
        %794 = vdwg.mxu0
        %v795 = vmul.f32 %v756, 0.01
        %v796 = vmul.f32 %v758, 0.01
        %v797 = vmul.f32 %v761, 0.01
        %v798 = vmul.f32 %v763, 0.01
        %v799 = vmul.f32 %v766, 0.01
        %v800 = vmul.f32 %v768, 0.01
        %v801 = vmul.f32 %v771, 0.01
        %v802 = vmul.f32 %v773, 0.01
        %v803 = vmul.f32 %v776, 0.01
        %v804 = vmul.f32 %v778, 0.01
        %v805 = vmul.f32 %v781, 0.01
        %v806 = vmul.f32 %v783, 0.01
        %v807 = vmul.f32 %v786, 0.01
        %v808 = vmul.f32 %v788, 0.01
        %v809 = vmul.f32 %v791, 0.01
        %v810 = vmul.f32 %v793, 0.01
        %v811 = vmax.f32 %v756, %v795
        %v812 = vmax.f32 %v758, %v796
        %v813 = vmax.f32 %v761, %v797
        %v814 = vmax.f32 %v763, %v798
        %v815 = vmax.f32 %v766, %v799
        %v816 = vmax.f32 %v768, %v800
        %v817 = vmax.f32 %v771, %v801
        %v818 = vmax.f32 %v773, %v802
        %v819 = vmax.f32 %v776, %v803
        %v820 = vmax.f32 %v778, %v804
        %v821 = vmax.f32 %v781, %v805
        %v822 = vmax.f32 %v783, %v806
        %v823 = vmax.f32 %v786, %v807
        %v824 = vmax.f32 %v788, %v808
        %v825 = vmax.f32 %v791, %v809
        %v826 = vmax.f32 %v793, %v810
        %s827 = scalar_lea.vmem %s6, 40
        %v828 = vld [vmem:[%s827] sm:$0xf]
        %v829 = vld [vmem:[%s827 + $0x4] sm:$0xf]
        %v830 = vpack.c.bf16 %v812, %v811
        %v831 = vpack.c.bf16 %v814, %v813
        %v832 = vpack.c.bf16 %v816, %v815
        %v833 = vpack.c.bf16 %v818, %v817
        %v834 = vpack.c.bf16 %v820, %v819
        %v835 = vpack.c.bf16 %v822, %v821
        %v836 = vpack.c.bf16 %v824, %v823
        %v837 = vpack.c.bf16 %v826, %v825
        %s838 = scalar_lea.vmem %s7, 80
        %v839 = vld [vmem:[%s838] sm:$0xff]
        %v840 = vld [vmem:[%s838 + $0x8] sm:$0xff]
        %842 = vset.pattern.permute.xlu0 0
        %843 = vperm.xlu0 %842, %v839
        %v844 = vpop.permute.xlu0 %843
        %847 = vset.pattern.permute.xlu0 0
        %848 = vperm.xlu0 %847, %v840
        %v849 = vpop.permute.xlu0 %848
        %v853 = vunpack.c.l.b16 %v828
        %v854 = vunpack.c.l.b16 %v829
        %v855 = vpack.c.b16 %v854, %v853
        %857 = vmatpush.bf16.msra.mxu0 %v837
        %858 = vmatpush.bf16.msra.mxu0 %v836
        %859 = vmatpush.bf16.msra.mxu0 %v835
        %860 = vmatpush.bf16.msra.mxu0 %v834
        %861 = vmatpush.bf16.msra.mxu0 %v833
        %862 = vmatpush.bf16.msra.mxu0 %v832
        %863 = vmatpush.bf16.msra.mxu0 %v831
        %864 = vmatpush.bf16.msra.mxu0 %v830
        %865 = vmatmul.bf16.gmra.mxu0 %v855
        %v866 = vpop.f32.mrf.mxu0
        %v867 = vadd.f32 %v844, %v866
        %v868 = vpop.f32.mrf.mxu0
        %v869 = vadd.f32 %v849, %v868
        %870 = vdwg.mxu0
        %v871 = vtanh.pop %v869
        %v872 = vsub.f32 %v301, %v871
        %874 = vset.pattern.permute.xlu0 0
        %875 = vperm.xlu0 %874, %v304
        %v876 = vpop.permute.xlu0 %875
        %v878 = vmul.f32 %v876, %v872
        %v879 = vsub.f32 0.0, %v867
        %v880 = vmul.f32 %v879, 1.442695
        %v881 = vpow.pop %v880
        %v882 = vmul.f32 %v878, %v881
        %v883 = vadd.f32 %v882, 1e-08
        %v884 = vadd.f32 %v883, %v310
        %v885 = vadd.f32 %v867, 0.0
        %s886 = scalar_lea.vmem %s1, 32
        %v887 = vld [vmem:[%s886] sm:$0xff]
        %v888 = vsub.f32 1.0, %v887
        %890 = vset.pattern.permute.xlu0 0
        %891 = vperm.xlu0 %890, %v887
        %v892 = vpop.permute.xlu0 %891
        %v894 = vmul.f32 %v892, %v884
        %s895 = scalar_lea.vmem %s2, 256
        %v896 = vld [vmem:[%s895] sm:$0xf]
        %v897 = vld [vmem:[%s895 + $0x4] sm:$0xf]
        %v898 = vld [vmem:[%s895 + $0x8] sm:$0xf]
        %v899 = vld [vmem:[%s895 + $0xc] sm:$0xf]
        %v900 = vld [vmem:[%s895 + $0x10] sm:$0xf]
        %v901 = vld [vmem:[%s895 + $0x14] sm:$0xf]
        %v902 = vld [vmem:[%s895 + $0x18] sm:$0xf]
        %v903 = vld [vmem:[%s895 + $0x1c] sm:$0xf]
        %v904 = vld [vmem:[%s895 + $0x20] sm:$0xf]
        %v905 = vld [vmem:[%s895 + $0x24] sm:$0xf]
        %v906 = vld [vmem:[%s895 + $0x28] sm:$0xf]
        %v907 = vld [vmem:[%s895 + $0x2c] sm:$0xf]
        %v908 = vld [vmem:[%s895 + $0x30] sm:$0xf]
        %v909 = vld [vmem:[%s895 + $0x34] sm:$0xf]
        %v910 = vld [vmem:[%s895 + $0x38] sm:$0xf]
        %v911 = vld [vmem:[%s895 + $0x3c] sm:$0xf]
        %v912 = vpack.c.bf16 %v894, %v894
        %s913 = scalar_lea.vmem %s3, 512
        %v914 = vld [vmem:[%s913] sm:$0xff]
        %v915 = vld [vmem:[%s913 + $0x8] sm:$0xff]
        %v916 = vld [vmem:[%s913 + $0x10] sm:$0xff]
        %v917 = vld [vmem:[%s913 + $0x18] sm:$0xff]
        %v918 = vld [vmem:[%s913 + $0x20] sm:$0xff]
        %v919 = vld [vmem:[%s913 + $0x28] sm:$0xff]
        %v920 = vld [vmem:[%s913 + $0x30] sm:$0xff]
        %v921 = vld [vmem:[%s913 + $0x38] sm:$0xff]
        %v922 = vld [vmem:[%s913 + $0x40] sm:$0xff]
        %v923 = vld [vmem:[%s913 + $0x48] sm:$0xff]
        %v924 = vld [vmem:[%s913 + $0x50] sm:$0xff]
        %v925 = vld [vmem:[%s913 + $0x58] sm:$0xff]
        %v926 = vld [vmem:[%s913 + $0x60] sm:$0xff]
        %v927 = vld [vmem:[%s913 + $0x68] sm:$0xff]
        %v928 = vld [vmem:[%s913 + $0x70] sm:$0xff]
        %v929 = vld [vmem:[%s913 + $0x78] sm:$0xff]
        %931 = vset.pattern.permute.xlu0 0
        %932 = vperm.xlu0 %931, %v914
        %v933 = vpop.permute.xlu0 %932
        %936 = vset.pattern.permute.xlu0 0
        %937 = vperm.xlu0 %936, %v915
        %v938 = vpop.permute.xlu0 %937
        %941 = vset.pattern.permute.xlu0 0
        %942 = vperm.xlu0 %941, %v916
        %v943 = vpop.permute.xlu0 %942
        %946 = vset.pattern.permute.xlu0 0
        %947 = vperm.xlu0 %946, %v917
        %v948 = vpop.permute.xlu0 %947
        %951 = vset.pattern.permute.xlu0 0
        %952 = vperm.xlu0 %951, %v918
        %v953 = vpop.permute.xlu0 %952
        %956 = vset.pattern.permute.xlu0 0
        %957 = vperm.xlu0 %956, %v919
        %v958 = vpop.permute.xlu0 %957
        %961 = vset.pattern.permute.xlu0 0
        %962 = vperm.xlu0 %961, %v920
        %v963 = vpop.permute.xlu0 %962
        %966 = vset.pattern.permute.xlu0 0
        %967 = vperm.xlu0 %966, %v921
        %v968 = vpop.permute.xlu0 %967
        %971 = vset.pattern.permute.xlu0 0
        %972 = vperm.xlu0 %971, %v922
        %v973 = vpop.permute.xlu0 %972
        %976 = vset.pattern.permute.xlu0 0
        %977 = vperm.xlu0 %976, %v923
        %v978 = vpop.permute.xlu0 %977
        %981 = vset.pattern.permute.xlu0 0
        %982 = vperm.xlu0 %981, %v924
        %v983 = vpop.permute.xlu0 %982
        %986 = vset.pattern.permute.xlu0 0
        %987 = vperm.xlu0 %986, %v925
        %v988 = vpop.permute.xlu0 %987
        %991 = vset.pattern.permute.xlu0 0
        %992 = vperm.xlu0 %991, %v926
        %v993 = vpop.permute.xlu0 %992
        %996 = vset.pattern.permute.xlu0 0
        %997 = vperm.xlu0 %996, %v927
        %v998 = vpop.permute.xlu0 %997
        %1001 = vset.pattern.permute.xlu0 0
        %1002 = vperm.xlu0 %1001, %v928
        %v1003 = vpop.permute.xlu0 %1002
        %1006 = vset.pattern.permute.xlu0 0
        %1007 = vperm.xlu0 %1006, %v929
        %v1008 = vpop.permute.xlu0 %1007
        %v1026 = vunpack.c.l.b16 %v896
        %v1027 = vunpack.c.l.b16 %v897
        %v1028 = vunpack.c.l.b16 %v898
        %v1029 = vunpack.c.l.b16 %v899
        %v1030 = vunpack.c.l.b16 %v900
        %v1031 = vunpack.c.l.b16 %v901
        %v1032 = vunpack.c.l.b16 %v902
        %v1033 = vunpack.c.l.b16 %v903
        %v1034 = vunpack.c.l.b16 %v904
        %v1035 = vunpack.c.l.b16 %v905
        %v1036 = vunpack.c.l.b16 %v906
        %v1037 = vunpack.c.l.b16 %v907
        %v1038 = vunpack.c.l.b16 %v908
        %v1039 = vunpack.c.l.b16 %v909
        %v1040 = vunpack.c.l.b16 %v910
        %v1041 = vunpack.c.l.b16 %v911
        %v1042 = vpack.c.b16 %v1027, %v1026
        %v1043 = vpack.c.b16 %v1029, %v1028
        %v1044 = vpack.c.b16 %v1031, %v1030
        %v1045 = vpack.c.b16 %v1033, %v1032
        %v1046 = vpack.c.b16 %v1035, %v1034
        %v1047 = vpack.c.b16 %v1037, %v1036
        %v1048 = vpack.c.b16 %v1039, %v1038
        %v1049 = vpack.c.b16 %v1041, %v1040
        %v1051 = vsel %vm466, %v1042, 0
        %v1054 = vsel %vm466, %v1043, 0
        %v1057 = vsel %vm466, %v1044, 0
        %v1060 = vsel %vm466, %v1045, 0
        %v1063 = vsel %vm466, %v1046, 0
        %v1066 = vsel %vm466, %v1047, 0
        %v1069 = vsel %vm466, %v1048, 0
        %v1072 = vsel %vm466, %v1049, 0
        %v1075 = vsel %vm491, %v912, 0
        %1077 = vmatpush.bf16.msra.mxu0 0
        %1078 = vmatpush.bf16.msra.mxu0 0
        %1079 = vmatpush.bf16.msra.mxu0 0
        %1080 = vmatpush.bf16.msra.mxu0 0
        %1081 = vmatpush.bf16.msra.mxu0 0
        %1082 = vmatpush.bf16.msra.mxu0 0
        %1083 = vmatpush.bf16.msra.mxu0 0
        %1084 = vmatpush.bf16.msra.mxu0 %v1075
        %1085 = vmatmul.bf16.gmra.mxu0 %v1051
        %v1086 = vpop.f32.mrf.mxu0
        %v1087 = vadd.f32 %v933, %v1086
        %v1088 = vpop.f32.mrf.mxu0
        %v1089 = vadd.f32 %v938, %v1088
        %1090 = vmatmul.bf16.gmra.mxu0 %v1054
        %v1091 = vpop.f32.mrf.mxu0
        %v1092 = vadd.f32 %v943, %v1091
        %v1093 = vpop.f32.mrf.mxu0
        %v1094 = vadd.f32 %v948, %v1093
        %1095 = vmatmul.bf16.gmra.mxu0 %v1057
        %v1096 = vpop.f32.mrf.mxu0
        %v1097 = vadd.f32 %v953, %v1096
        %v1098 = vpop.f32.mrf.mxu0
        %v1099 = vadd.f32 %v958, %v1098
        %1100 = vmatmul.bf16.gmra.mxu0 %v1060
        %v1101 = vpop.f32.mrf.mxu0
        %v1102 = vadd.f32 %v963, %v1101
        %v1103 = vpop.f32.mrf.mxu0
        %v1104 = vadd.f32 %v968, %v1103
        %1105 = vmatmul.bf16.gmra.mxu0 %v1063
        %v1106 = vpop.f32.mrf.mxu0
        %v1107 = vadd.f32 %v973, %v1106
        %v1108 = vpop.f32.mrf.mxu0
        %v1109 = vadd.f32 %v978, %v1108
        %1110 = vmatmul.bf16.gmra.mxu0 %v1066
        %v1111 = vpop.f32.mrf.mxu0
        %v1112 = vadd.f32 %v983, %v1111
        %v1113 = vpop.f32.mrf.mxu0
        %v1114 = vadd.f32 %v988, %v1113
        %1115 = vmatmul.bf16.gmra.mxu0 %v1069
        %v1116 = vpop.f32.mrf.mxu0
        %v1117 = vadd.f32 %v993, %v1116
        %v1118 = vpop.f32.mrf.mxu0
        %v1119 = vadd.f32 %v998, %v1118
        %1120 = vmatmul.bf16.gmra.mxu0 %v1072
        %v1121 = vpop.f32.mrf.mxu0
        %v1122 = vadd.f32 %v1003, %v1121
        %v1123 = vpop.f32.mrf.mxu0
        %v1124 = vadd.f32 %v1008, %v1123
        %1125 = vdwg.mxu0
        %v1126 = vmul.f32 %v1087, 0.01
        %v1127 = vmul.f32 %v1089, 0.01
        %v1128 = vmul.f32 %v1092, 0.01
        %v1129 = vmul.f32 %v1094, 0.01
        %v1130 = vmul.f32 %v1097, 0.01
        %v1131 = vmul.f32 %v1099, 0.01
        %v1132 = vmul.f32 %v1102, 0.01
        %v1133 = vmul.f32 %v1104, 0.01
        %v1134 = vmul.f32 %v1107, 0.01
        %v1135 = vmul.f32 %v1109, 0.01
        %v1136 = vmul.f32 %v1112, 0.01
        %v1137 = vmul.f32 %v1114, 0.01
        %v1138 = vmul.f32 %v1117, 0.01
        %v1139 = vmul.f32 %v1119, 0.01
        %v1140 = vmul.f32 %v1122, 0.01
        %v1141 = vmul.f32 %v1124, 0.01
        %v1142 = vmax.f32 %v1087, %v1126
        %v1143 = vmax.f32 %v1089, %v1127
        %v1144 = vmax.f32 %v1092, %v1128
        %v1145 = vmax.f32 %v1094, %v1129
        %v1146 = vmax.f32 %v1097, %v1130
        %v1147 = vmax.f32 %v1099, %v1131
        %v1148 = vmax.f32 %v1102, %v1132
        %v1149 = vmax.f32 %v1104, %v1133
        %v1150 = vmax.f32 %v1107, %v1134
        %v1151 = vmax.f32 %v1109, %v1135
        %v1152 = vmax.f32 %v1112, %v1136
        %v1153 = vmax.f32 %v1114, %v1137
        %v1154 = vmax.f32 %v1117, %v1138
        %v1155 = vmax.f32 %v1119, %v1139
        %v1156 = vmax.f32 %v1122, %v1140
        %v1157 = vmax.f32 %v1124, %v1141
        %s1158 = scalar_lea.vmem %s4, 256
        %v1159 = vld [vmem:[%s1158] sm:$0xf]
        %v1160 = vld [vmem:[%s1158 + $0x4] sm:$0xf]
        %v1161 = vld [vmem:[%s1158 + $0x8] sm:$0xf]
        %v1162 = vld [vmem:[%s1158 + $0xc] sm:$0xf]
        %v1163 = vld [vmem:[%s1158 + $0x10] sm:$0xf]
        %v1164 = vld [vmem:[%s1158 + $0x14] sm:$0xf]
        %v1165 = vld [vmem:[%s1158 + $0x18] sm:$0xf]
        %v1166 = vld [vmem:[%s1158 + $0x1c] sm:$0xf]
        %v1167 = vld [vmem:[%s1158 + $0x20] sm:$0xf]
        %v1168 = vld [vmem:[%s1158 + $0x24] sm:$0xf]
        %v1169 = vld [vmem:[%s1158 + $0x28] sm:$0xf]
        %v1170 = vld [vmem:[%s1158 + $0x2c] sm:$0xf]
        %v1171 = vld [vmem:[%s1158 + $0x30] sm:$0xf]
        %v1172 = vld [vmem:[%s1158 + $0x34] sm:$0xf]
        %v1173 = vld [vmem:[%s1158 + $0x38] sm:$0xf]
        %v1174 = vld [vmem:[%s1158 + $0x3c] sm:$0xf]
        %v1175 = vpack.c.bf16 %v1143, %v1142
        %v1176 = vpack.c.bf16 %v1145, %v1144
        %v1177 = vpack.c.bf16 %v1147, %v1146
        %v1178 = vpack.c.bf16 %v1149, %v1148
        %v1179 = vpack.c.bf16 %v1151, %v1150
        %v1180 = vpack.c.bf16 %v1153, %v1152
        %v1181 = vpack.c.bf16 %v1155, %v1154
        %v1182 = vpack.c.bf16 %v1157, %v1156
        %s1183 = scalar_lea.vmem %s5, 512
        %v1184 = vld [vmem:[%s1183] sm:$0xff]
        %v1185 = vld [vmem:[%s1183 + $0x8] sm:$0xff]
        %v1186 = vld [vmem:[%s1183 + $0x10] sm:$0xff]
        %v1187 = vld [vmem:[%s1183 + $0x18] sm:$0xff]
        %v1188 = vld [vmem:[%s1183 + $0x20] sm:$0xff]
        %v1189 = vld [vmem:[%s1183 + $0x28] sm:$0xff]
        %v1190 = vld [vmem:[%s1183 + $0x30] sm:$0xff]
        %v1191 = vld [vmem:[%s1183 + $0x38] sm:$0xff]
        %v1192 = vld [vmem:[%s1183 + $0x40] sm:$0xff]
        %v1193 = vld [vmem:[%s1183 + $0x48] sm:$0xff]
        %v1194 = vld [vmem:[%s1183 + $0x50] sm:$0xff]
        %v1195 = vld [vmem:[%s1183 + $0x58] sm:$0xff]
        %v1196 = vld [vmem:[%s1183 + $0x60] sm:$0xff]
        %v1197 = vld [vmem:[%s1183 + $0x68] sm:$0xff]
        %v1198 = vld [vmem:[%s1183 + $0x70] sm:$0xff]
        %v1199 = vld [vmem:[%s1183 + $0x78] sm:$0xff]
        %1201 = vset.pattern.permute.xlu0 0
        %1202 = vperm.xlu0 %1201, %v1184
        %v1203 = vpop.permute.xlu0 %1202
        %1206 = vset.pattern.permute.xlu0 0
        %1207 = vperm.xlu0 %1206, %v1185
        %v1208 = vpop.permute.xlu0 %1207
        %1211 = vset.pattern.permute.xlu0 0
        %1212 = vperm.xlu0 %1211, %v1186
        %v1213 = vpop.permute.xlu0 %1212
        %1216 = vset.pattern.permute.xlu0 0
        %1217 = vperm.xlu0 %1216, %v1187
        %v1218 = vpop.permute.xlu0 %1217
        %1221 = vset.pattern.permute.xlu0 0
        %1222 = vperm.xlu0 %1221, %v1188
        %v1223 = vpop.permute.xlu0 %1222
        %1226 = vset.pattern.permute.xlu0 0
        %1227 = vperm.xlu0 %1226, %v1189
        %v1228 = vpop.permute.xlu0 %1227
        %1231 = vset.pattern.permute.xlu0 0
        %1232 = vperm.xlu0 %1231, %v1190
        %v1233 = vpop.permute.xlu0 %1232
        %1236 = vset.pattern.permute.xlu0 0
        %1237 = vperm.xlu0 %1236, %v1191
        %v1238 = vpop.permute.xlu0 %1237
        %1241 = vset.pattern.permute.xlu0 0
        %1242 = vperm.xlu0 %1241, %v1192
        %v1243 = vpop.permute.xlu0 %1242
        %1246 = vset.pattern.permute.xlu0 0
        %1247 = vperm.xlu0 %1246, %v1193
        %v1248 = vpop.permute.xlu0 %1247
        %1251 = vset.pattern.permute.xlu0 0
        %1252 = vperm.xlu0 %1251, %v1194
        %v1253 = vpop.permute.xlu0 %1252
        %1256 = vset.pattern.permute.xlu0 0
        %1257 = vperm.xlu0 %1256, %v1195
        %v1258 = vpop.permute.xlu0 %1257
        %1261 = vset.pattern.permute.xlu0 0
        %1262 = vperm.xlu0 %1261, %v1196
        %v1263 = vpop.permute.xlu0 %1262
        %1266 = vset.pattern.permute.xlu0 0
        %1267 = vperm.xlu0 %1266, %v1197
        %v1268 = vpop.permute.xlu0 %1267
        %1271 = vset.pattern.permute.xlu0 0
        %1272 = vperm.xlu0 %1271, %v1198
        %v1273 = vpop.permute.xlu0 %1272
        %1276 = vset.pattern.permute.xlu0 0
        %1277 = vperm.xlu0 %1276, %v1199
        %v1278 = vpop.permute.xlu0 %1277
        %v1296 = vunpack.c.l.b16 %v1159
        %v1297 = vunpack.c.l.b16 %v1160
        %v1298 = vunpack.c.l.b16 %v1161
        %v1299 = vunpack.c.l.b16 %v1162
        %v1300 = vunpack.c.l.b16 %v1163
        %v1301 = vunpack.c.l.b16 %v1164
        %v1302 = vunpack.c.l.b16 %v1165
        %v1303 = vunpack.c.l.b16 %v1166
        %v1304 = vunpack.c.l.b16 %v1167
        %v1305 = vunpack.c.l.b16 %v1168
        %v1306 = vunpack.c.l.b16 %v1169
        %v1307 = vunpack.c.l.b16 %v1170
        %v1308 = vunpack.c.l.b16 %v1171
        %v1309 = vunpack.c.l.b16 %v1172
        %v1310 = vunpack.c.l.b16 %v1173
        %v1311 = vunpack.c.l.b16 %v1174
        %v1312 = vpack.c.b16 %v1297, %v1296
        %v1313 = vpack.c.b16 %v1299, %v1298
        %v1314 = vpack.c.b16 %v1301, %v1300
        %v1315 = vpack.c.b16 %v1303, %v1302
        %v1316 = vpack.c.b16 %v1305, %v1304
        %v1317 = vpack.c.b16 %v1307, %v1306
        %v1318 = vpack.c.b16 %v1309, %v1308
        %v1319 = vpack.c.b16 %v1311, %v1310
        %1328 = vmatpush.bf16.msra.mxu0 %v1182
        %1329 = vmatpush.bf16.msra.mxu0 %v1181
        %1330 = vmatpush.bf16.msra.mxu0 %v1180
        %1331 = vmatpush.bf16.msra.mxu0 %v1179
        %1332 = vmatpush.bf16.msra.mxu0 %v1178
        %1333 = vmatpush.bf16.msra.mxu0 %v1177
        %1334 = vmatpush.bf16.msra.mxu0 %v1176
        %1335 = vmatpush.bf16.msra.mxu0 %v1175
        %1336 = vmatmul.bf16.gmra.mxu0 %v1312
        %v1337 = vpop.f32.mrf.mxu0
        %v1338 = vadd.f32 %v1203, %v1337
        %v1339 = vpop.f32.mrf.mxu0
        %v1340 = vadd.f32 %v1208, %v1339
        %1341 = vmatmul.bf16.gmra.mxu0 %v1313
        %v1342 = vpop.f32.mrf.mxu0
        %v1343 = vadd.f32 %v1213, %v1342
        %v1344 = vpop.f32.mrf.mxu0
        %v1345 = vadd.f32 %v1218, %v1344
        %1346 = vmatmul.bf16.gmra.mxu0 %v1314
        %v1347 = vpop.f32.mrf.mxu0
        %v1348 = vadd.f32 %v1223, %v1347
        %v1349 = vpop.f32.mrf.mxu0
        %v1350 = vadd.f32 %v1228, %v1349
        %1351 = vmatmul.bf16.gmra.mxu0 %v1315
        %v1352 = vpop.f32.mrf.mxu0
        %v1353 = vadd.f32 %v1233, %v1352
        %v1354 = vpop.f32.mrf.mxu0
        %v1355 = vadd.f32 %v1238, %v1354
        %1356 = vmatmul.bf16.gmra.mxu0 %v1316
        %v1357 = vpop.f32.mrf.mxu0
        %v1358 = vadd.f32 %v1243, %v1357
        %v1359 = vpop.f32.mrf.mxu0
        %v1360 = vadd.f32 %v1248, %v1359
        %1361 = vmatmul.bf16.gmra.mxu0 %v1317
        %v1362 = vpop.f32.mrf.mxu0
        %v1363 = vadd.f32 %v1253, %v1362
        %v1364 = vpop.f32.mrf.mxu0
        %v1365 = vadd.f32 %v1258, %v1364
        %1366 = vmatmul.bf16.gmra.mxu0 %v1318
        %v1367 = vpop.f32.mrf.mxu0
        %v1368 = vadd.f32 %v1263, %v1367
        %v1369 = vpop.f32.mrf.mxu0
        %v1370 = vadd.f32 %v1268, %v1369
        %1371 = vmatmul.bf16.gmra.mxu0 %v1319
        %v1372 = vpop.f32.mrf.mxu0
        %v1373 = vadd.f32 %v1273, %v1372
        %v1374 = vpop.f32.mrf.mxu0
        %v1375 = vadd.f32 %v1278, %v1374
        %1376 = vdwg.mxu0
        %v1377 = vmul.f32 %v1338, 0.01
        %v1378 = vmul.f32 %v1340, 0.01
        %v1379 = vmul.f32 %v1343, 0.01
        %v1380 = vmul.f32 %v1345, 0.01
        %v1381 = vmul.f32 %v1348, 0.01
        %v1382 = vmul.f32 %v1350, 0.01
        %v1383 = vmul.f32 %v1353, 0.01
        %v1384 = vmul.f32 %v1355, 0.01
        %v1385 = vmul.f32 %v1358, 0.01
        %v1386 = vmul.f32 %v1360, 0.01
        %v1387 = vmul.f32 %v1363, 0.01
        %v1388 = vmul.f32 %v1365, 0.01
        %v1389 = vmul.f32 %v1368, 0.01
        %v1390 = vmul.f32 %v1370, 0.01
        %v1391 = vmul.f32 %v1373, 0.01
        %v1392 = vmul.f32 %v1375, 0.01
        %v1393 = vmax.f32 %v1338, %v1377
        %v1394 = vmax.f32 %v1340, %v1378
        %v1395 = vmax.f32 %v1343, %v1379
        %v1396 = vmax.f32 %v1345, %v1380
        %v1397 = vmax.f32 %v1348, %v1381
        %v1398 = vmax.f32 %v1350, %v1382
        %v1399 = vmax.f32 %v1353, %v1383
        %v1400 = vmax.f32 %v1355, %v1384
        %v1401 = vmax.f32 %v1358, %v1385
        %v1402 = vmax.f32 %v1360, %v1386
        %v1403 = vmax.f32 %v1363, %v1387
        %v1404 = vmax.f32 %v1365, %v1388
        %v1405 = vmax.f32 %v1368, %v1389
        %v1406 = vmax.f32 %v1370, %v1390
        %v1407 = vmax.f32 %v1373, %v1391
        %v1408 = vmax.f32 %v1375, %v1392
        %s1409 = scalar_lea.vmem %s6, 32
        %v1410 = vld [vmem:[%s1409] sm:$0xf]
        %v1411 = vld [vmem:[%s1409 + $0x4] sm:$0xf]
        %v1412 = vpack.c.bf16 %v1394, %v1393
        %v1413 = vpack.c.bf16 %v1396, %v1395
        %v1414 = vpack.c.bf16 %v1398, %v1397
        %v1415 = vpack.c.bf16 %v1400, %v1399
        %v1416 = vpack.c.bf16 %v1402, %v1401
        %v1417 = vpack.c.bf16 %v1404, %v1403
        %v1418 = vpack.c.bf16 %v1406, %v1405
        %v1419 = vpack.c.bf16 %v1408, %v1407
        %s1420 = scalar_lea.vmem %s7, 64
        %v1421 = vld [vmem:[%s1420] sm:$0xff]
        %v1422 = vld [vmem:[%s1420 + $0x8] sm:$0xff]
        %1424 = vset.pattern.permute.xlu0 0
        %1425 = vperm.xlu0 %1424, %v1421
        %v1426 = vpop.permute.xlu0 %1425
        %1429 = vset.pattern.permute.xlu0 0
        %1430 = vperm.xlu0 %1429, %v1422
        %v1431 = vpop.permute.xlu0 %1430
        %v1435 = vunpack.c.l.b16 %v1410
        %v1436 = vunpack.c.l.b16 %v1411
        %v1437 = vpack.c.b16 %v1436, %v1435
        %1439 = vmatpush.bf16.msra.mxu0 %v1419
        %1440 = vmatpush.bf16.msra.mxu0 %v1418
        %1441 = vmatpush.bf16.msra.mxu0 %v1417
        %1442 = vmatpush.bf16.msra.mxu0 %v1416
        %1443 = vmatpush.bf16.msra.mxu0 %v1415
        %1444 = vmatpush.bf16.msra.mxu0 %v1414
        %1445 = vmatpush.bf16.msra.mxu0 %v1413
        %1446 = vmatpush.bf16.msra.mxu0 %v1412
        %1447 = vmatmul.bf16.gmra.mxu0 %v1437
        %v1448 = vpop.f32.mrf.mxu0
        %v1449 = vadd.f32 %v1426, %v1448
        %v1450 = vpop.f32.mrf.mxu0
        %v1451 = vadd.f32 %v1431, %v1450
        %1452 = vdwg.mxu0
        %v1453 = vtanh.pop %v1451
        %v1454 = vsub.f32 %v884, %v1453
        %1456 = vset.pattern.permute.xlu0 0
        %1457 = vperm.xlu0 %1456, %v888
        %v1458 = vpop.permute.xlu0 %1457
        %v1460 = vmul.f32 %v1458, %v1454
        %v1461 = vsub.f32 0.0, %v1449
        %v1462 = vmul.f32 %v1461, 1.442695
        %v1463 = vpow.pop %v1462
        %v1464 = vmul.f32 %v1460, %v1463
        %v1465 = vadd.f32 %v1464, 1e-08
        %v1466 = vadd.f32 %v1465, %v894
        %v1467 = vadd.f32 %v885, %v1449
        %s1468 = scalar_lea.vmem %s1, 24
        %v1469 = vld [vmem:[%s1468] sm:$0xff]
        %v1470 = vsub.f32 1.0, %v1469
        %1472 = vset.pattern.permute.xlu0 0
        %1473 = vperm.xlu0 %1472, %v1469
        %v1474 = vpop.permute.xlu0 %1473
        %v1476 = vmul.f32 %v1474, %v1466
        %s1477 = scalar_lea.vmem %s2, 192
        %v1478 = vld [vmem:[%s1477] sm:$0xf]
        %v1479 = vld [vmem:[%s1477 + $0x4] sm:$0xf]
        %v1480 = vld [vmem:[%s1477 + $0x8] sm:$0xf]
        %v1481 = vld [vmem:[%s1477 + $0xc] sm:$0xf]
        %v1482 = vld [vmem:[%s1477 + $0x10] sm:$0xf]
        %v1483 = vld [vmem:[%s1477 + $0x14] sm:$0xf]
        %v1484 = vld [vmem:[%s1477 + $0x18] sm:$0xf]
        %v1485 = vld [vmem:[%s1477 + $0x1c] sm:$0xf]
        %v1486 = vld [vmem:[%s1477 + $0x20] sm:$0xf]
        %v1487 = vld [vmem:[%s1477 + $0x24] sm:$0xf]
        %v1488 = vld [vmem:[%s1477 + $0x28] sm:$0xf]
        %v1489 = vld [vmem:[%s1477 + $0x2c] sm:$0xf]
        %v1490 = vld [vmem:[%s1477 + $0x30] sm:$0xf]
        %v1491 = vld [vmem:[%s1477 + $0x34] sm:$0xf]
        %v1492 = vld [vmem:[%s1477 + $0x38] sm:$0xf]
        %v1493 = vld [vmem:[%s1477 + $0x3c] sm:$0xf]
        %v1494 = vpack.c.bf16 %v1476, %v1476
        %s1495 = scalar_lea.vmem %s3, 384
        %v1496 = vld [vmem:[%s1495] sm:$0xff]
        %v1497 = vld [vmem:[%s1495 + $0x8] sm:$0xff]
        %v1498 = vld [vmem:[%s1495 + $0x10] sm:$0xff]
        %v1499 = vld [vmem:[%s1495 + $0x18] sm:$0xff]
        %v1500 = vld [vmem:[%s1495 + $0x20] sm:$0xff]
        %v1501 = vld [vmem:[%s1495 + $0x28] sm:$0xff]
        %v1502 = vld [vmem:[%s1495 + $0x30] sm:$0xff]
        %v1503 = vld [vmem:[%s1495 + $0x38] sm:$0xff]
        %v1504 = vld [vmem:[%s1495 + $0x40] sm:$0xff]
        %v1505 = vld [vmem:[%s1495 + $0x48] sm:$0xff]
        %v1506 = vld [vmem:[%s1495 + $0x50] sm:$0xff]
        %v1507 = vld [vmem:[%s1495 + $0x58] sm:$0xff]
        %v1508 = vld [vmem:[%s1495 + $0x60] sm:$0xff]
        %v1509 = vld [vmem:[%s1495 + $0x68] sm:$0xff]
        %v1510 = vld [vmem:[%s1495 + $0x70] sm:$0xff]
        %v1511 = vld [vmem:[%s1495 + $0x78] sm:$0xff]
        %1513 = vset.pattern.permute.xlu0 0
        %1514 = vperm.xlu0 %1513, %v1496
        %v1515 = vpop.permute.xlu0 %1514
        %1518 = vset.pattern.permute.xlu0 0
        %1519 = vperm.xlu0 %1518, %v1497
        %v1520 = vpop.permute.xlu0 %1519
        %1523 = vset.pattern.permute.xlu0 0
        %1524 = vperm.xlu0 %1523, %v1498
        %v1525 = vpop.permute.xlu0 %1524
        %1528 = vset.pattern.permute.xlu0 0
        %1529 = vperm.xlu0 %1528, %v1499
        %v1530 = vpop.permute.xlu0 %1529
        %1533 = vset.pattern.permute.xlu0 0
        %1534 = vperm.xlu0 %1533, %v1500
        %v1535 = vpop.permute.xlu0 %1534
        %1538 = vset.pattern.permute.xlu0 0
        %1539 = vperm.xlu0 %1538, %v1501
        %v1540 = vpop.permute.xlu0 %1539
        %1543 = vset.pattern.permute.xlu0 0
        %1544 = vperm.xlu0 %1543, %v1502
        %v1545 = vpop.permute.xlu0 %1544
        %1548 = vset.pattern.permute.xlu0 0
        %1549 = vperm.xlu0 %1548, %v1503
        %v1550 = vpop.permute.xlu0 %1549
        %1553 = vset.pattern.permute.xlu0 0
        %1554 = vperm.xlu0 %1553, %v1504
        %v1555 = vpop.permute.xlu0 %1554
        %1558 = vset.pattern.permute.xlu0 0
        %1559 = vperm.xlu0 %1558, %v1505
        %v1560 = vpop.permute.xlu0 %1559
        %1563 = vset.pattern.permute.xlu0 0
        %1564 = vperm.xlu0 %1563, %v1506
        %v1565 = vpop.permute.xlu0 %1564
        %1568 = vset.pattern.permute.xlu0 0
        %1569 = vperm.xlu0 %1568, %v1507
        %v1570 = vpop.permute.xlu0 %1569
        %1573 = vset.pattern.permute.xlu0 0
        %1574 = vperm.xlu0 %1573, %v1508
        %v1575 = vpop.permute.xlu0 %1574
        %1578 = vset.pattern.permute.xlu0 0
        %1579 = vperm.xlu0 %1578, %v1509
        %v1580 = vpop.permute.xlu0 %1579
        %1583 = vset.pattern.permute.xlu0 0
        %1584 = vperm.xlu0 %1583, %v1510
        %v1585 = vpop.permute.xlu0 %1584
        %1588 = vset.pattern.permute.xlu0 0
        %1589 = vperm.xlu0 %1588, %v1511
        %v1590 = vpop.permute.xlu0 %1589
        %v1608 = vunpack.c.l.b16 %v1478
        %v1609 = vunpack.c.l.b16 %v1479
        %v1610 = vunpack.c.l.b16 %v1480
        %v1611 = vunpack.c.l.b16 %v1481
        %v1612 = vunpack.c.l.b16 %v1482
        %v1613 = vunpack.c.l.b16 %v1483
        %v1614 = vunpack.c.l.b16 %v1484
        %v1615 = vunpack.c.l.b16 %v1485
        %v1616 = vunpack.c.l.b16 %v1486
        %v1617 = vunpack.c.l.b16 %v1487
        %v1618 = vunpack.c.l.b16 %v1488
        %v1619 = vunpack.c.l.b16 %v1489
        %v1620 = vunpack.c.l.b16 %v1490
        %v1621 = vunpack.c.l.b16 %v1491
        %v1622 = vunpack.c.l.b16 %v1492
        %v1623 = vunpack.c.l.b16 %v1493
        %v1624 = vpack.c.b16 %v1609, %v1608
        %v1625 = vpack.c.b16 %v1611, %v1610
        %v1626 = vpack.c.b16 %v1613, %v1612
        %v1627 = vpack.c.b16 %v1615, %v1614
        %v1628 = vpack.c.b16 %v1617, %v1616
        %v1629 = vpack.c.b16 %v1619, %v1618
        %v1630 = vpack.c.b16 %v1621, %v1620
        %v1631 = vpack.c.b16 %v1623, %v1622
        %v1633 = vsel %vm466, %v1624, 0
        %v1636 = vsel %vm466, %v1625, 0
        %v1639 = vsel %vm466, %v1626, 0
        %v1642 = vsel %vm466, %v1627, 0
        %v1645 = vsel %vm466, %v1628, 0
        %v1648 = vsel %vm466, %v1629, 0
        %v1651 = vsel %vm466, %v1630, 0
        %v1654 = vsel %vm466, %v1631, 0
        %v1657 = vsel %vm491, %v1494, 0
        %1659 = vmatpush.bf16.msra.mxu0 0
        %1660 = vmatpush.bf16.msra.mxu0 0
        %1661 = vmatpush.bf16.msra.mxu0 0
        %1662 = vmatpush.bf16.msra.mxu0 0
        %1663 = vmatpush.bf16.msra.mxu0 0
        %1664 = vmatpush.bf16.msra.mxu0 0
        %1665 = vmatpush.bf16.msra.mxu0 0
        %1666 = vmatpush.bf16.msra.mxu0 %v1657
        %1667 = vmatmul.bf16.gmra.mxu0 %v1633
        %v1668 = vpop.f32.mrf.mxu0
        %v1669 = vadd.f32 %v1515, %v1668
        %v1670 = vpop.f32.mrf.mxu0
        %v1671 = vadd.f32 %v1520, %v1670
        %1672 = vmatmul.bf16.gmra.mxu0 %v1636
        %v1673 = vpop.f32.mrf.mxu0
        %v1674 = vadd.f32 %v1525, %v1673
        %v1675 = vpop.f32.mrf.mxu0
        %v1676 = vadd.f32 %v1530, %v1675
        %1677 = vmatmul.bf16.gmra.mxu0 %v1639
        %v1678 = vpop.f32.mrf.mxu0
        %v1679 = vadd.f32 %v1535, %v1678
        %v1680 = vpop.f32.mrf.mxu0
        %v1681 = vadd.f32 %v1540, %v1680
        %1682 = vmatmul.bf16.gmra.mxu0 %v1642
        %v1683 = vpop.f32.mrf.mxu0
        %v1684 = vadd.f32 %v1545, %v1683
        %v1685 = vpop.f32.mrf.mxu0
        %v1686 = vadd.f32 %v1550, %v1685
        %1687 = vmatmul.bf16.gmra.mxu0 %v1645
        %v1688 = vpop.f32.mrf.mxu0
        %v1689 = vadd.f32 %v1555, %v1688
        %v1690 = vpop.f32.mrf.mxu0
        %v1691 = vadd.f32 %v1560, %v1690
        %1692 = vmatmul.bf16.gmra.mxu0 %v1648
        %v1693 = vpop.f32.mrf.mxu0
        %v1694 = vadd.f32 %v1565, %v1693
        %v1695 = vpop.f32.mrf.mxu0
        %v1696 = vadd.f32 %v1570, %v1695
        %1697 = vmatmul.bf16.gmra.mxu0 %v1651
        %v1698 = vpop.f32.mrf.mxu0
        %v1699 = vadd.f32 %v1575, %v1698
        %v1700 = vpop.f32.mrf.mxu0
        %v1701 = vadd.f32 %v1580, %v1700
        %1702 = vmatmul.bf16.gmra.mxu0 %v1654
        %v1703 = vpop.f32.mrf.mxu0
        %v1704 = vadd.f32 %v1585, %v1703
        %v1705 = vpop.f32.mrf.mxu0
        %v1706 = vadd.f32 %v1590, %v1705
        %1707 = vdwg.mxu0
        %v1708 = vmul.f32 %v1669, 0.01
        %v1709 = vmul.f32 %v1671, 0.01
        %v1710 = vmul.f32 %v1674, 0.01
        %v1711 = vmul.f32 %v1676, 0.01
        %v1712 = vmul.f32 %v1679, 0.01
        %v1713 = vmul.f32 %v1681, 0.01
        %v1714 = vmul.f32 %v1684, 0.01
        %v1715 = vmul.f32 %v1686, 0.01
        %v1716 = vmul.f32 %v1689, 0.01
        %v1717 = vmul.f32 %v1691, 0.01
        %v1718 = vmul.f32 %v1694, 0.01
        %v1719 = vmul.f32 %v1696, 0.01
        %v1720 = vmul.f32 %v1699, 0.01
        %v1721 = vmul.f32 %v1701, 0.01
        %v1722 = vmul.f32 %v1704, 0.01
        %v1723 = vmul.f32 %v1706, 0.01
        %v1724 = vmax.f32 %v1669, %v1708
        %v1725 = vmax.f32 %v1671, %v1709
        %v1726 = vmax.f32 %v1674, %v1710
        %v1727 = vmax.f32 %v1676, %v1711
        %v1728 = vmax.f32 %v1679, %v1712
        %v1729 = vmax.f32 %v1681, %v1713
        %v1730 = vmax.f32 %v1684, %v1714
        %v1731 = vmax.f32 %v1686, %v1715
        %v1732 = vmax.f32 %v1689, %v1716
        %v1733 = vmax.f32 %v1691, %v1717
        %v1734 = vmax.f32 %v1694, %v1718
        %v1735 = vmax.f32 %v1696, %v1719
        %v1736 = vmax.f32 %v1699, %v1720
        %v1737 = vmax.f32 %v1701, %v1721
        %v1738 = vmax.f32 %v1704, %v1722
        %v1739 = vmax.f32 %v1706, %v1723
        %s1740 = scalar_lea.vmem %s4, 192
        %v1741 = vld [vmem:[%s1740] sm:$0xf]
        %v1742 = vld [vmem:[%s1740 + $0x4] sm:$0xf]
        %v1743 = vld [vmem:[%s1740 + $0x8] sm:$0xf]
        %v1744 = vld [vmem:[%s1740 + $0xc] sm:$0xf]
        %v1745 = vld [vmem:[%s1740 + $0x10] sm:$0xf]
        %v1746 = vld [vmem:[%s1740 + $0x14] sm:$0xf]
        %v1747 = vld [vmem:[%s1740 + $0x18] sm:$0xf]
        %v1748 = vld [vmem:[%s1740 + $0x1c] sm:$0xf]
        %v1749 = vld [vmem:[%s1740 + $0x20] sm:$0xf]
        %v1750 = vld [vmem:[%s1740 + $0x24] sm:$0xf]
        %v1751 = vld [vmem:[%s1740 + $0x28] sm:$0xf]
        %v1752 = vld [vmem:[%s1740 + $0x2c] sm:$0xf]
        %v1753 = vld [vmem:[%s1740 + $0x30] sm:$0xf]
        %v1754 = vld [vmem:[%s1740 + $0x34] sm:$0xf]
        %v1755 = vld [vmem:[%s1740 + $0x38] sm:$0xf]
        %v1756 = vld [vmem:[%s1740 + $0x3c] sm:$0xf]
        %v1757 = vpack.c.bf16 %v1725, %v1724
        %v1758 = vpack.c.bf16 %v1727, %v1726
        %v1759 = vpack.c.bf16 %v1729, %v1728
        %v1760 = vpack.c.bf16 %v1731, %v1730
        %v1761 = vpack.c.bf16 %v1733, %v1732
        %v1762 = vpack.c.bf16 %v1735, %v1734
        %v1763 = vpack.c.bf16 %v1737, %v1736
        %v1764 = vpack.c.bf16 %v1739, %v1738
        %s1765 = scalar_lea.vmem %s5, 384
        %v1766 = vld [vmem:[%s1765] sm:$0xff]
        %v1767 = vld [vmem:[%s1765 + $0x8] sm:$0xff]
        %v1768 = vld [vmem:[%s1765 + $0x10] sm:$0xff]
        %v1769 = vld [vmem:[%s1765 + $0x18] sm:$0xff]
        %v1770 = vld [vmem:[%s1765 + $0x20] sm:$0xff]
        %v1771 = vld [vmem:[%s1765 + $0x28] sm:$0xff]
        %v1772 = vld [vmem:[%s1765 + $0x30] sm:$0xff]
        %v1773 = vld [vmem:[%s1765 + $0x38] sm:$0xff]
        %v1774 = vld [vmem:[%s1765 + $0x40] sm:$0xff]
        %v1775 = vld [vmem:[%s1765 + $0x48] sm:$0xff]
        %v1776 = vld [vmem:[%s1765 + $0x50] sm:$0xff]
        %v1777 = vld [vmem:[%s1765 + $0x58] sm:$0xff]
        %v1778 = vld [vmem:[%s1765 + $0x60] sm:$0xff]
        %v1779 = vld [vmem:[%s1765 + $0x68] sm:$0xff]
        %v1780 = vld [vmem:[%s1765 + $0x70] sm:$0xff]
        %v1781 = vld [vmem:[%s1765 + $0x78] sm:$0xff]
        %1783 = vset.pattern.permute.xlu0 0
        %1784 = vperm.xlu0 %1783, %v1766
        %v1785 = vpop.permute.xlu0 %1784
        %1788 = vset.pattern.permute.xlu0 0
        %1789 = vperm.xlu0 %1788, %v1767
        %v1790 = vpop.permute.xlu0 %1789
        %1793 = vset.pattern.permute.xlu0 0
        %1794 = vperm.xlu0 %1793, %v1768
        %v1795 = vpop.permute.xlu0 %1794
        %1798 = vset.pattern.permute.xlu0 0
        %1799 = vperm.xlu0 %1798, %v1769
        %v1800 = vpop.permute.xlu0 %1799
        %1803 = vset.pattern.permute.xlu0 0
        %1804 = vperm.xlu0 %1803, %v1770
        %v1805 = vpop.permute.xlu0 %1804
        %1808 = vset.pattern.permute.xlu0 0
        %1809 = vperm.xlu0 %1808, %v1771
        %v1810 = vpop.permute.xlu0 %1809
        %1813 = vset.pattern.permute.xlu0 0
        %1814 = vperm.xlu0 %1813, %v1772
        %v1815 = vpop.permute.xlu0 %1814
        %1818 = vset.pattern.permute.xlu0 0
        %1819 = vperm.xlu0 %1818, %v1773
        %v1820 = vpop.permute.xlu0 %1819
        %1823 = vset.pattern.permute.xlu0 0
        %1824 = vperm.xlu0 %1823, %v1774
        %v1825 = vpop.permute.xlu0 %1824
        %1828 = vset.pattern.permute.xlu0 0
        %1829 = vperm.xlu0 %1828, %v1775
        %v1830 = vpop.permute.xlu0 %1829
        %1833 = vset.pattern.permute.xlu0 0
        %1834 = vperm.xlu0 %1833, %v1776
        %v1835 = vpop.permute.xlu0 %1834
        %1838 = vset.pattern.permute.xlu0 0
        %1839 = vperm.xlu0 %1838, %v1777
        %v1840 = vpop.permute.xlu0 %1839
        %1843 = vset.pattern.permute.xlu0 0
        %1844 = vperm.xlu0 %1843, %v1778
        %v1845 = vpop.permute.xlu0 %1844
        %1848 = vset.pattern.permute.xlu0 0
        %1849 = vperm.xlu0 %1848, %v1779
        %v1850 = vpop.permute.xlu0 %1849
        %1853 = vset.pattern.permute.xlu0 0
        %1854 = vperm.xlu0 %1853, %v1780
        %v1855 = vpop.permute.xlu0 %1854
        %1858 = vset.pattern.permute.xlu0 0
        %1859 = vperm.xlu0 %1858, %v1781
        %v1860 = vpop.permute.xlu0 %1859
        %v1878 = vunpack.c.l.b16 %v1741
        %v1879 = vunpack.c.l.b16 %v1742
        %v1880 = vunpack.c.l.b16 %v1743
        %v1881 = vunpack.c.l.b16 %v1744
        %v1882 = vunpack.c.l.b16 %v1745
        %v1883 = vunpack.c.l.b16 %v1746
        %v1884 = vunpack.c.l.b16 %v1747
        %v1885 = vunpack.c.l.b16 %v1748
        %v1886 = vunpack.c.l.b16 %v1749
        %v1887 = vunpack.c.l.b16 %v1750
        %v1888 = vunpack.c.l.b16 %v1751
        %v1889 = vunpack.c.l.b16 %v1752
        %v1890 = vunpack.c.l.b16 %v1753
        %v1891 = vunpack.c.l.b16 %v1754
        %v1892 = vunpack.c.l.b16 %v1755
        %v1893 = vunpack.c.l.b16 %v1756
        %v1894 = vpack.c.b16 %v1879, %v1878
        %v1895 = vpack.c.b16 %v1881, %v1880
        %v1896 = vpack.c.b16 %v1883, %v1882
        %v1897 = vpack.c.b16 %v1885, %v1884
        %v1898 = vpack.c.b16 %v1887, %v1886
        %v1899 = vpack.c.b16 %v1889, %v1888
        %v1900 = vpack.c.b16 %v1891, %v1890
        %v1901 = vpack.c.b16 %v1893, %v1892
        %1910 = vmatpush.bf16.msra.mxu0 %v1764
        %1911 = vmatpush.bf16.msra.mxu0 %v1763
        %1912 = vmatpush.bf16.msra.mxu0 %v1762
        %1913 = vmatpush.bf16.msra.mxu0 %v1761
        %1914 = vmatpush.bf16.msra.mxu0 %v1760
        %1915 = vmatpush.bf16.msra.mxu0 %v1759
        %1916 = vmatpush.bf16.msra.mxu0 %v1758
        %1917 = vmatpush.bf16.msra.mxu0 %v1757
        %1918 = vmatmul.bf16.gmra.mxu0 %v1894
        %v1919 = vpop.f32.mrf.mxu0
        %v1920 = vadd.f32 %v1785, %v1919
        %v1921 = vpop.f32.mrf.mxu0
        %v1922 = vadd.f32 %v1790, %v1921
        %1923 = vmatmul.bf16.gmra.mxu0 %v1895
        %v1924 = vpop.f32.mrf.mxu0
        %v1925 = vadd.f32 %v1795, %v1924
        %v1926 = vpop.f32.mrf.mxu0
        %v1927 = vadd.f32 %v1800, %v1926
        %1928 = vmatmul.bf16.gmra.mxu0 %v1896
        %v1929 = vpop.f32.mrf.mxu0
        %v1930 = vadd.f32 %v1805, %v1929
        %v1931 = vpop.f32.mrf.mxu0
        %v1932 = vadd.f32 %v1810, %v1931
        %1933 = vmatmul.bf16.gmra.mxu0 %v1897
        %v1934 = vpop.f32.mrf.mxu0
        %v1935 = vadd.f32 %v1815, %v1934
        %v1936 = vpop.f32.mrf.mxu0
        %v1937 = vadd.f32 %v1820, %v1936
        %1938 = vmatmul.bf16.gmra.mxu0 %v1898
        %v1939 = vpop.f32.mrf.mxu0
        %v1940 = vadd.f32 %v1825, %v1939
        %v1941 = vpop.f32.mrf.mxu0
        %v1942 = vadd.f32 %v1830, %v1941
        %1943 = vmatmul.bf16.gmra.mxu0 %v1899
        %v1944 = vpop.f32.mrf.mxu0
        %v1945 = vadd.f32 %v1835, %v1944
        %v1946 = vpop.f32.mrf.mxu0
        %v1947 = vadd.f32 %v1840, %v1946
        %1948 = vmatmul.bf16.gmra.mxu0 %v1900
        %v1949 = vpop.f32.mrf.mxu0
        %v1950 = vadd.f32 %v1845, %v1949
        %v1951 = vpop.f32.mrf.mxu0
        %v1952 = vadd.f32 %v1850, %v1951
        %1953 = vmatmul.bf16.gmra.mxu0 %v1901
        %v1954 = vpop.f32.mrf.mxu0
        %v1955 = vadd.f32 %v1855, %v1954
        %v1956 = vpop.f32.mrf.mxu0
        %v1957 = vadd.f32 %v1860, %v1956
        %1958 = vdwg.mxu0
        %v1959 = vmul.f32 %v1920, 0.01
        %v1960 = vmul.f32 %v1922, 0.01
        %v1961 = vmul.f32 %v1925, 0.01
        %v1962 = vmul.f32 %v1927, 0.01
        %v1963 = vmul.f32 %v1930, 0.01
        %v1964 = vmul.f32 %v1932, 0.01
        %v1965 = vmul.f32 %v1935, 0.01
        %v1966 = vmul.f32 %v1937, 0.01
        %v1967 = vmul.f32 %v1940, 0.01
        %v1968 = vmul.f32 %v1942, 0.01
        %v1969 = vmul.f32 %v1945, 0.01
        %v1970 = vmul.f32 %v1947, 0.01
        %v1971 = vmul.f32 %v1950, 0.01
        %v1972 = vmul.f32 %v1952, 0.01
        %v1973 = vmul.f32 %v1955, 0.01
        %v1974 = vmul.f32 %v1957, 0.01
        %v1975 = vmax.f32 %v1920, %v1959
        %v1976 = vmax.f32 %v1922, %v1960
        %v1977 = vmax.f32 %v1925, %v1961
        %v1978 = vmax.f32 %v1927, %v1962
        %v1979 = vmax.f32 %v1930, %v1963
        %v1980 = vmax.f32 %v1932, %v1964
        %v1981 = vmax.f32 %v1935, %v1965
        %v1982 = vmax.f32 %v1937, %v1966
        %v1983 = vmax.f32 %v1940, %v1967
        %v1984 = vmax.f32 %v1942, %v1968
        %v1985 = vmax.f32 %v1945, %v1969
        %v1986 = vmax.f32 %v1947, %v1970
        %v1987 = vmax.f32 %v1950, %v1971
        %v1988 = vmax.f32 %v1952, %v1972
        %v1989 = vmax.f32 %v1955, %v1973
        %v1990 = vmax.f32 %v1957, %v1974
        %s1991 = scalar_lea.vmem %s6, 24
        %v1992 = vld [vmem:[%s1991] sm:$0xf]
        %v1993 = vld [vmem:[%s1991 + $0x4] sm:$0xf]
        %v1994 = vpack.c.bf16 %v1976, %v1975
        %v1995 = vpack.c.bf16 %v1978, %v1977
        %v1996 = vpack.c.bf16 %v1980, %v1979
        %v1997 = vpack.c.bf16 %v1982, %v1981
        %v1998 = vpack.c.bf16 %v1984, %v1983
        %v1999 = vpack.c.bf16 %v1986, %v1985
        %v2000 = vpack.c.bf16 %v1988, %v1987
        %v2001 = vpack.c.bf16 %v1990, %v1989
        %s2002 = scalar_lea.vmem %s7, 48
        %v2003 = vld [vmem:[%s2002] sm:$0xff]
        %v2004 = vld [vmem:[%s2002 + $0x8] sm:$0xff]
        %2006 = vset.pattern.permute.xlu0 0
        %2007 = vperm.xlu0 %2006, %v2003
        %v2008 = vpop.permute.xlu0 %2007
        %2011 = vset.pattern.permute.xlu0 0
        %2012 = vperm.xlu0 %2011, %v2004
        %v2013 = vpop.permute.xlu0 %2012
        %v2017 = vunpack.c.l.b16 %v1992
        %v2018 = vunpack.c.l.b16 %v1993
        %v2019 = vpack.c.b16 %v2018, %v2017
        %2021 = vmatpush.bf16.msra.mxu0 %v2001
        %2022 = vmatpush.bf16.msra.mxu0 %v2000
        %2023 = vmatpush.bf16.msra.mxu0 %v1999
        %2024 = vmatpush.bf16.msra.mxu0 %v1998
        %2025 = vmatpush.bf16.msra.mxu0 %v1997
        %2026 = vmatpush.bf16.msra.mxu0 %v1996
        %2027 = vmatpush.bf16.msra.mxu0 %v1995
        %2028 = vmatpush.bf16.msra.mxu0 %v1994
        %2029 = vmatmul.bf16.gmra.mxu0 %v2019
        %v2030 = vpop.f32.mrf.mxu0
        %v2031 = vadd.f32 %v2008, %v2030
        %v2032 = vpop.f32.mrf.mxu0
        %v2033 = vadd.f32 %v2013, %v2032
        %2034 = vdwg.mxu0
        %v2035 = vtanh.pop %v2033
        %v2036 = vsub.f32 %v1466, %v2035
        %2038 = vset.pattern.permute.xlu0 0
        %2039 = vperm.xlu0 %2038, %v1470
        %v2040 = vpop.permute.xlu0 %2039
        %v2042 = vmul.f32 %v2040, %v2036
        %v2043 = vsub.f32 0.0, %v2031
        %v2044 = vmul.f32 %v2043, 1.442695
        %v2045 = vpow.pop %v2044
        %v2046 = vmul.f32 %v2042, %v2045
        %v2047 = vadd.f32 %v2046, 1e-08
        %v2048 = vadd.f32 %v2047, %v1476
        %v2049 = vadd.f32 %v1467, %v2031
        %s2050 = scalar_lea.vmem %s1, 16
        %v2051 = vld [vmem:[%s2050] sm:$0xff]
        %v2052 = vsub.f32 1.0, %v2051
        %2054 = vset.pattern.permute.xlu0 0
        %2055 = vperm.xlu0 %2054, %v2051
        %v2056 = vpop.permute.xlu0 %2055
        %v2058 = vmul.f32 %v2056, %v2048
        %s2059 = scalar_lea.vmem %s2, 128
        %v2060 = vld [vmem:[%s2059] sm:$0xf]
        %v2061 = vld [vmem:[%s2059 + $0x4] sm:$0xf]
        %v2062 = vld [vmem:[%s2059 + $0x8] sm:$0xf]
        %v2063 = vld [vmem:[%s2059 + $0xc] sm:$0xf]
        %v2064 = vld [vmem:[%s2059 + $0x10] sm:$0xf]
        %v2065 = vld [vmem:[%s2059 + $0x14] sm:$0xf]
        %v2066 = vld [vmem:[%s2059 + $0x18] sm:$0xf]
        %v2067 = vld [vmem:[%s2059 + $0x1c] sm:$0xf]
        %v2068 = vld [vmem:[%s2059 + $0x20] sm:$0xf]
        %v2069 = vld [vmem:[%s2059 + $0x24] sm:$0xf]
        %v2070 = vld [vmem:[%s2059 + $0x28] sm:$0xf]
        %v2071 = vld [vmem:[%s2059 + $0x2c] sm:$0xf]
        %v2072 = vld [vmem:[%s2059 + $0x30] sm:$0xf]
        %v2073 = vld [vmem:[%s2059 + $0x34] sm:$0xf]
        %v2074 = vld [vmem:[%s2059 + $0x38] sm:$0xf]
        %v2075 = vld [vmem:[%s2059 + $0x3c] sm:$0xf]
        %v2076 = vpack.c.bf16 %v2058, %v2058
        %s2077 = scalar_lea.vmem %s3, 256
        %v2078 = vld [vmem:[%s2077] sm:$0xff]
        %v2079 = vld [vmem:[%s2077 + $0x8] sm:$0xff]
        %v2080 = vld [vmem:[%s2077 + $0x10] sm:$0xff]
        %v2081 = vld [vmem:[%s2077 + $0x18] sm:$0xff]
        %v2082 = vld [vmem:[%s2077 + $0x20] sm:$0xff]
        %v2083 = vld [vmem:[%s2077 + $0x28] sm:$0xff]
        %v2084 = vld [vmem:[%s2077 + $0x30] sm:$0xff]
        %v2085 = vld [vmem:[%s2077 + $0x38] sm:$0xff]
        %v2086 = vld [vmem:[%s2077 + $0x40] sm:$0xff]
        %v2087 = vld [vmem:[%s2077 + $0x48] sm:$0xff]
        %v2088 = vld [vmem:[%s2077 + $0x50] sm:$0xff]
        %v2089 = vld [vmem:[%s2077 + $0x58] sm:$0xff]
        %v2090 = vld [vmem:[%s2077 + $0x60] sm:$0xff]
        %v2091 = vld [vmem:[%s2077 + $0x68] sm:$0xff]
        %v2092 = vld [vmem:[%s2077 + $0x70] sm:$0xff]
        %v2093 = vld [vmem:[%s2077 + $0x78] sm:$0xff]
        %2095 = vset.pattern.permute.xlu0 0
        %2096 = vperm.xlu0 %2095, %v2078
        %v2097 = vpop.permute.xlu0 %2096
        %2100 = vset.pattern.permute.xlu0 0
        %2101 = vperm.xlu0 %2100, %v2079
        %v2102 = vpop.permute.xlu0 %2101
        %2105 = vset.pattern.permute.xlu0 0
        %2106 = vperm.xlu0 %2105, %v2080
        %v2107 = vpop.permute.xlu0 %2106
        %2110 = vset.pattern.permute.xlu0 0
        %2111 = vperm.xlu0 %2110, %v2081
        %v2112 = vpop.permute.xlu0 %2111
        %2115 = vset.pattern.permute.xlu0 0
        %2116 = vperm.xlu0 %2115, %v2082
        %v2117 = vpop.permute.xlu0 %2116
        %2120 = vset.pattern.permute.xlu0 0
        %2121 = vperm.xlu0 %2120, %v2083
        %v2122 = vpop.permute.xlu0 %2121
        %2125 = vset.pattern.permute.xlu0 0
        %2126 = vperm.xlu0 %2125, %v2084
        %v2127 = vpop.permute.xlu0 %2126
        %2130 = vset.pattern.permute.xlu0 0
        %2131 = vperm.xlu0 %2130, %v2085
        %v2132 = vpop.permute.xlu0 %2131
        %2135 = vset.pattern.permute.xlu0 0
        %2136 = vperm.xlu0 %2135, %v2086
        %v2137 = vpop.permute.xlu0 %2136
        %2140 = vset.pattern.permute.xlu0 0
        %2141 = vperm.xlu0 %2140, %v2087
        %v2142 = vpop.permute.xlu0 %2141
        %2145 = vset.pattern.permute.xlu0 0
        %2146 = vperm.xlu0 %2145, %v2088
        %v2147 = vpop.permute.xlu0 %2146
        %2150 = vset.pattern.permute.xlu0 0
        %2151 = vperm.xlu0 %2150, %v2089
        %v2152 = vpop.permute.xlu0 %2151
        %2155 = vset.pattern.permute.xlu0 0
        %2156 = vperm.xlu0 %2155, %v2090
        %v2157 = vpop.permute.xlu0 %2156
        %2160 = vset.pattern.permute.xlu0 0
        %2161 = vperm.xlu0 %2160, %v2091
        %v2162 = vpop.permute.xlu0 %2161
        %2165 = vset.pattern.permute.xlu0 0
        %2166 = vperm.xlu0 %2165, %v2092
        %v2167 = vpop.permute.xlu0 %2166
        %2170 = vset.pattern.permute.xlu0 0
        %2171 = vperm.xlu0 %2170, %v2093
        %v2172 = vpop.permute.xlu0 %2171
        %v2190 = vunpack.c.l.b16 %v2060
        %v2191 = vunpack.c.l.b16 %v2061
        %v2192 = vunpack.c.l.b16 %v2062
        %v2193 = vunpack.c.l.b16 %v2063
        %v2194 = vunpack.c.l.b16 %v2064
        %v2195 = vunpack.c.l.b16 %v2065
        %v2196 = vunpack.c.l.b16 %v2066
        %v2197 = vunpack.c.l.b16 %v2067
        %v2198 = vunpack.c.l.b16 %v2068
        %v2199 = vunpack.c.l.b16 %v2069
        %v2200 = vunpack.c.l.b16 %v2070
        %v2201 = vunpack.c.l.b16 %v2071
        %v2202 = vunpack.c.l.b16 %v2072
        %v2203 = vunpack.c.l.b16 %v2073
        %v2204 = vunpack.c.l.b16 %v2074
        %v2205 = vunpack.c.l.b16 %v2075
        %v2206 = vpack.c.b16 %v2191, %v2190
        %v2207 = vpack.c.b16 %v2193, %v2192
        %v2208 = vpack.c.b16 %v2195, %v2194
        %v2209 = vpack.c.b16 %v2197, %v2196
        %v2210 = vpack.c.b16 %v2199, %v2198
        %v2211 = vpack.c.b16 %v2201, %v2200
        %v2212 = vpack.c.b16 %v2203, %v2202
        %v2213 = vpack.c.b16 %v2205, %v2204
        %v2215 = vsel %vm466, %v2206, 0
        %v2218 = vsel %vm466, %v2207, 0
        %v2221 = vsel %vm466, %v2208, 0
        %v2224 = vsel %vm466, %v2209, 0
        %v2227 = vsel %vm466, %v2210, 0
        %v2230 = vsel %vm466, %v2211, 0
        %v2233 = vsel %vm466, %v2212, 0
        %v2236 = vsel %vm466, %v2213, 0
        %v2239 = vsel %vm491, %v2076, 0
        %2241 = vmatpush.bf16.msra.mxu0 0
        %2242 = vmatpush.bf16.msra.mxu0 0
        %2243 = vmatpush.bf16.msra.mxu0 0
        %2244 = vmatpush.bf16.msra.mxu0 0
        %2245 = vmatpush.bf16.msra.mxu0 0
        %2246 = vmatpush.bf16.msra.mxu0 0
        %2247 = vmatpush.bf16.msra.mxu0 0
        %2248 = vmatpush.bf16.msra.mxu0 %v2239
        %2249 = vmatmul.bf16.gmra.mxu0 %v2215
        %v2250 = vpop.f32.mrf.mxu0
        %v2251 = vadd.f32 %v2097, %v2250
        %v2252 = vpop.f32.mrf.mxu0
        %v2253 = vadd.f32 %v2102, %v2252
        %2254 = vmatmul.bf16.gmra.mxu0 %v2218
        %v2255 = vpop.f32.mrf.mxu0
        %v2256 = vadd.f32 %v2107, %v2255
        %v2257 = vpop.f32.mrf.mxu0
        %v2258 = vadd.f32 %v2112, %v2257
        %2259 = vmatmul.bf16.gmra.mxu0 %v2221
        %v2260 = vpop.f32.mrf.mxu0
        %v2261 = vadd.f32 %v2117, %v2260
        %v2262 = vpop.f32.mrf.mxu0
        %v2263 = vadd.f32 %v2122, %v2262
        %2264 = vmatmul.bf16.gmra.mxu0 %v2224
        %v2265 = vpop.f32.mrf.mxu0
        %v2266 = vadd.f32 %v2127, %v2265
        %v2267 = vpop.f32.mrf.mxu0
        %v2268 = vadd.f32 %v2132, %v2267
        %2269 = vmatmul.bf16.gmra.mxu0 %v2227
        %v2270 = vpop.f32.mrf.mxu0
        %v2271 = vadd.f32 %v2137, %v2270
        %v2272 = vpop.f32.mrf.mxu0
        %v2273 = vadd.f32 %v2142, %v2272
        %2274 = vmatmul.bf16.gmra.mxu0 %v2230
        %v2275 = vpop.f32.mrf.mxu0
        %v2276 = vadd.f32 %v2147, %v2275
        %v2277 = vpop.f32.mrf.mxu0
        %v2278 = vadd.f32 %v2152, %v2277
        %2279 = vmatmul.bf16.gmra.mxu0 %v2233
        %v2280 = vpop.f32.mrf.mxu0
        %v2281 = vadd.f32 %v2157, %v2280
        %v2282 = vpop.f32.mrf.mxu0
        %v2283 = vadd.f32 %v2162, %v2282
        %2284 = vmatmul.bf16.gmra.mxu0 %v2236
        %v2285 = vpop.f32.mrf.mxu0
        %v2286 = vadd.f32 %v2167, %v2285
        %v2287 = vpop.f32.mrf.mxu0
        %v2288 = vadd.f32 %v2172, %v2287
        %2289 = vdwg.mxu0
        %v2290 = vmul.f32 %v2251, 0.01
        %v2291 = vmul.f32 %v2253, 0.01
        %v2292 = vmul.f32 %v2256, 0.01
        %v2293 = vmul.f32 %v2258, 0.01
        %v2294 = vmul.f32 %v2261, 0.01
        %v2295 = vmul.f32 %v2263, 0.01
        %v2296 = vmul.f32 %v2266, 0.01
        %v2297 = vmul.f32 %v2268, 0.01
        %v2298 = vmul.f32 %v2271, 0.01
        %v2299 = vmul.f32 %v2273, 0.01
        %v2300 = vmul.f32 %v2276, 0.01
        %v2301 = vmul.f32 %v2278, 0.01
        %v2302 = vmul.f32 %v2281, 0.01
        %v2303 = vmul.f32 %v2283, 0.01
        %v2304 = vmul.f32 %v2286, 0.01
        %v2305 = vmul.f32 %v2288, 0.01
        %v2306 = vmax.f32 %v2251, %v2290
        %v2307 = vmax.f32 %v2253, %v2291
        %v2308 = vmax.f32 %v2256, %v2292
        %v2309 = vmax.f32 %v2258, %v2293
        %v2310 = vmax.f32 %v2261, %v2294
        %v2311 = vmax.f32 %v2263, %v2295
        %v2312 = vmax.f32 %v2266, %v2296
        %v2313 = vmax.f32 %v2268, %v2297
        %v2314 = vmax.f32 %v2271, %v2298
        %v2315 = vmax.f32 %v2273, %v2299
        %v2316 = vmax.f32 %v2276, %v2300
        %v2317 = vmax.f32 %v2278, %v2301
        %v2318 = vmax.f32 %v2281, %v2302
        %v2319 = vmax.f32 %v2283, %v2303
        %v2320 = vmax.f32 %v2286, %v2304
        %v2321 = vmax.f32 %v2288, %v2305
        %s2322 = scalar_lea.vmem %s4, 128
        %v2323 = vld [vmem:[%s2322] sm:$0xf]
        %v2324 = vld [vmem:[%s2322 + $0x4] sm:$0xf]
        %v2325 = vld [vmem:[%s2322 + $0x8] sm:$0xf]
        %v2326 = vld [vmem:[%s2322 + $0xc] sm:$0xf]
        %v2327 = vld [vmem:[%s2322 + $0x10] sm:$0xf]
        %v2328 = vld [vmem:[%s2322 + $0x14] sm:$0xf]
        %v2329 = vld [vmem:[%s2322 + $0x18] sm:$0xf]
        %v2330 = vld [vmem:[%s2322 + $0x1c] sm:$0xf]
        %v2331 = vld [vmem:[%s2322 + $0x20] sm:$0xf]
        %v2332 = vld [vmem:[%s2322 + $0x24] sm:$0xf]
        %v2333 = vld [vmem:[%s2322 + $0x28] sm:$0xf]
        %v2334 = vld [vmem:[%s2322 + $0x2c] sm:$0xf]
        %v2335 = vld [vmem:[%s2322 + $0x30] sm:$0xf]
        %v2336 = vld [vmem:[%s2322 + $0x34] sm:$0xf]
        %v2337 = vld [vmem:[%s2322 + $0x38] sm:$0xf]
        %v2338 = vld [vmem:[%s2322 + $0x3c] sm:$0xf]
        %v2339 = vpack.c.bf16 %v2307, %v2306
        %v2340 = vpack.c.bf16 %v2309, %v2308
        %v2341 = vpack.c.bf16 %v2311, %v2310
        %v2342 = vpack.c.bf16 %v2313, %v2312
        %v2343 = vpack.c.bf16 %v2315, %v2314
        %v2344 = vpack.c.bf16 %v2317, %v2316
        %v2345 = vpack.c.bf16 %v2319, %v2318
        %v2346 = vpack.c.bf16 %v2321, %v2320
        %s2347 = scalar_lea.vmem %s5, 256
        %v2348 = vld [vmem:[%s2347] sm:$0xff]
        %v2349 = vld [vmem:[%s2347 + $0x8] sm:$0xff]
        %v2350 = vld [vmem:[%s2347 + $0x10] sm:$0xff]
        %v2351 = vld [vmem:[%s2347 + $0x18] sm:$0xff]
        %v2352 = vld [vmem:[%s2347 + $0x20] sm:$0xff]
        %v2353 = vld [vmem:[%s2347 + $0x28] sm:$0xff]
        %v2354 = vld [vmem:[%s2347 + $0x30] sm:$0xff]
        %v2355 = vld [vmem:[%s2347 + $0x38] sm:$0xff]
        %v2356 = vld [vmem:[%s2347 + $0x40] sm:$0xff]
        %v2357 = vld [vmem:[%s2347 + $0x48] sm:$0xff]
        %v2358 = vld [vmem:[%s2347 + $0x50] sm:$0xff]
        %v2359 = vld [vmem:[%s2347 + $0x58] sm:$0xff]
        %v2360 = vld [vmem:[%s2347 + $0x60] sm:$0xff]
        %v2361 = vld [vmem:[%s2347 + $0x68] sm:$0xff]
        %v2362 = vld [vmem:[%s2347 + $0x70] sm:$0xff]
        %v2363 = vld [vmem:[%s2347 + $0x78] sm:$0xff]
        %2365 = vset.pattern.permute.xlu0 0
        %2366 = vperm.xlu0 %2365, %v2348
        %v2367 = vpop.permute.xlu0 %2366
        %2370 = vset.pattern.permute.xlu0 0
        %2371 = vperm.xlu0 %2370, %v2349
        %v2372 = vpop.permute.xlu0 %2371
        %2375 = vset.pattern.permute.xlu0 0
        %2376 = vperm.xlu0 %2375, %v2350
        %v2377 = vpop.permute.xlu0 %2376
        %2380 = vset.pattern.permute.xlu0 0
        %2381 = vperm.xlu0 %2380, %v2351
        %v2382 = vpop.permute.xlu0 %2381
        %2385 = vset.pattern.permute.xlu0 0
        %2386 = vperm.xlu0 %2385, %v2352
        %v2387 = vpop.permute.xlu0 %2386
        %2390 = vset.pattern.permute.xlu0 0
        %2391 = vperm.xlu0 %2390, %v2353
        %v2392 = vpop.permute.xlu0 %2391
        %2395 = vset.pattern.permute.xlu0 0
        %2396 = vperm.xlu0 %2395, %v2354
        %v2397 = vpop.permute.xlu0 %2396
        %2400 = vset.pattern.permute.xlu0 0
        %2401 = vperm.xlu0 %2400, %v2355
        %v2402 = vpop.permute.xlu0 %2401
        %2405 = vset.pattern.permute.xlu0 0
        %2406 = vperm.xlu0 %2405, %v2356
        %v2407 = vpop.permute.xlu0 %2406
        %2410 = vset.pattern.permute.xlu0 0
        %2411 = vperm.xlu0 %2410, %v2357
        %v2412 = vpop.permute.xlu0 %2411
        %2415 = vset.pattern.permute.xlu0 0
        %2416 = vperm.xlu0 %2415, %v2358
        %v2417 = vpop.permute.xlu0 %2416
        %2420 = vset.pattern.permute.xlu0 0
        %2421 = vperm.xlu0 %2420, %v2359
        %v2422 = vpop.permute.xlu0 %2421
        %2425 = vset.pattern.permute.xlu0 0
        %2426 = vperm.xlu0 %2425, %v2360
        %v2427 = vpop.permute.xlu0 %2426
        %2430 = vset.pattern.permute.xlu0 0
        %2431 = vperm.xlu0 %2430, %v2361
        %v2432 = vpop.permute.xlu0 %2431
        %2435 = vset.pattern.permute.xlu0 0
        %2436 = vperm.xlu0 %2435, %v2362
        %v2437 = vpop.permute.xlu0 %2436
        %2440 = vset.pattern.permute.xlu0 0
        %2441 = vperm.xlu0 %2440, %v2363
        %v2442 = vpop.permute.xlu0 %2441
        %v2460 = vunpack.c.l.b16 %v2323
        %v2461 = vunpack.c.l.b16 %v2324
        %v2462 = vunpack.c.l.b16 %v2325
        %v2463 = vunpack.c.l.b16 %v2326
        %v2464 = vunpack.c.l.b16 %v2327
        %v2465 = vunpack.c.l.b16 %v2328
        %v2466 = vunpack.c.l.b16 %v2329
        %v2467 = vunpack.c.l.b16 %v2330
        %v2468 = vunpack.c.l.b16 %v2331
        %v2469 = vunpack.c.l.b16 %v2332
        %v2470 = vunpack.c.l.b16 %v2333
        %v2471 = vunpack.c.l.b16 %v2334
        %v2472 = vunpack.c.l.b16 %v2335
        %v2473 = vunpack.c.l.b16 %v2336
        %v2474 = vunpack.c.l.b16 %v2337
        %v2475 = vunpack.c.l.b16 %v2338
        %v2476 = vpack.c.b16 %v2461, %v2460
        %v2477 = vpack.c.b16 %v2463, %v2462
        %v2478 = vpack.c.b16 %v2465, %v2464
        %v2479 = vpack.c.b16 %v2467, %v2466
        %v2480 = vpack.c.b16 %v2469, %v2468
        %v2481 = vpack.c.b16 %v2471, %v2470
        %v2482 = vpack.c.b16 %v2473, %v2472
        %v2483 = vpack.c.b16 %v2475, %v2474
        %2492 = vmatpush.bf16.msra.mxu0 %v2346
        %2493 = vmatpush.bf16.msra.mxu0 %v2345
        %2494 = vmatpush.bf16.msra.mxu0 %v2344
        %2495 = vmatpush.bf16.msra.mxu0 %v2343
        %2496 = vmatpush.bf16.msra.mxu0 %v2342
        %2497 = vmatpush.bf16.msra.mxu0 %v2341
        %2498 = vmatpush.bf16.msra.mxu0 %v2340
        %2499 = vmatpush.bf16.msra.mxu0 %v2339
        %2500 = vmatmul.bf16.gmra.mxu0 %v2476
        %v2501 = vpop.f32.mrf.mxu0
        %v2502 = vadd.f32 %v2367, %v2501
        %v2503 = vpop.f32.mrf.mxu0
        %v2504 = vadd.f32 %v2372, %v2503
        %2505 = vmatmul.bf16.gmra.mxu0 %v2477
        %v2506 = vpop.f32.mrf.mxu0
        %v2507 = vadd.f32 %v2377, %v2506
        %v2508 = vpop.f32.mrf.mxu0
        %v2509 = vadd.f32 %v2382, %v2508
        %2510 = vmatmul.bf16.gmra.mxu0 %v2478
        %v2511 = vpop.f32.mrf.mxu0
        %v2512 = vadd.f32 %v2387, %v2511
        %v2513 = vpop.f32.mrf.mxu0
        %v2514 = vadd.f32 %v2392, %v2513
        %2515 = vmatmul.bf16.gmra.mxu0 %v2479
        %v2516 = vpop.f32.mrf.mxu0
        %v2517 = vadd.f32 %v2397, %v2516
        %v2518 = vpop.f32.mrf.mxu0
        %v2519 = vadd.f32 %v2402, %v2518
        %2520 = vmatmul.bf16.gmra.mxu0 %v2480
        %v2521 = vpop.f32.mrf.mxu0
        %v2522 = vadd.f32 %v2407, %v2521
        %v2523 = vpop.f32.mrf.mxu0
        %v2524 = vadd.f32 %v2412, %v2523
        %2525 = vmatmul.bf16.gmra.mxu0 %v2481
        %v2526 = vpop.f32.mrf.mxu0
        %v2527 = vadd.f32 %v2417, %v2526
        %v2528 = vpop.f32.mrf.mxu0
        %v2529 = vadd.f32 %v2422, %v2528
        %2530 = vmatmul.bf16.gmra.mxu0 %v2482
        %v2531 = vpop.f32.mrf.mxu0
        %v2532 = vadd.f32 %v2427, %v2531
        %v2533 = vpop.f32.mrf.mxu0
        %v2534 = vadd.f32 %v2432, %v2533
        %2535 = vmatmul.bf16.gmra.mxu0 %v2483
        %v2536 = vpop.f32.mrf.mxu0
        %v2537 = vadd.f32 %v2437, %v2536
        %v2538 = vpop.f32.mrf.mxu0
        %v2539 = vadd.f32 %v2442, %v2538
        %2540 = vdwg.mxu0
        %v2541 = vmul.f32 %v2502, 0.01
        %v2542 = vmul.f32 %v2504, 0.01
        %v2543 = vmul.f32 %v2507, 0.01
        %v2544 = vmul.f32 %v2509, 0.01
        %v2545 = vmul.f32 %v2512, 0.01
        %v2546 = vmul.f32 %v2514, 0.01
        %v2547 = vmul.f32 %v2517, 0.01
        %v2548 = vmul.f32 %v2519, 0.01
        %v2549 = vmul.f32 %v2522, 0.01
        %v2550 = vmul.f32 %v2524, 0.01
        %v2551 = vmul.f32 %v2527, 0.01
        %v2552 = vmul.f32 %v2529, 0.01
        %v2553 = vmul.f32 %v2532, 0.01
        %v2554 = vmul.f32 %v2534, 0.01
        %v2555 = vmul.f32 %v2537, 0.01
        %v2556 = vmul.f32 %v2539, 0.01
        %v2557 = vmax.f32 %v2502, %v2541
        %v2558 = vmax.f32 %v2504, %v2542
        %v2559 = vmax.f32 %v2507, %v2543
        %v2560 = vmax.f32 %v2509, %v2544
        %v2561 = vmax.f32 %v2512, %v2545
        %v2562 = vmax.f32 %v2514, %v2546
        %v2563 = vmax.f32 %v2517, %v2547
        %v2564 = vmax.f32 %v2519, %v2548
        %v2565 = vmax.f32 %v2522, %v2549
        %v2566 = vmax.f32 %v2524, %v2550
        %v2567 = vmax.f32 %v2527, %v2551
        %v2568 = vmax.f32 %v2529, %v2552
        %v2569 = vmax.f32 %v2532, %v2553
        %v2570 = vmax.f32 %v2534, %v2554
        %v2571 = vmax.f32 %v2537, %v2555
        %v2572 = vmax.f32 %v2539, %v2556
        %s2573 = scalar_lea.vmem %s6, 16
        %v2574 = vld [vmem:[%s2573] sm:$0xf]
        %v2575 = vld [vmem:[%s2573 + $0x4] sm:$0xf]
        %v2576 = vpack.c.bf16 %v2558, %v2557
        %v2577 = vpack.c.bf16 %v2560, %v2559
        %v2578 = vpack.c.bf16 %v2562, %v2561
        %v2579 = vpack.c.bf16 %v2564, %v2563
        %v2580 = vpack.c.bf16 %v2566, %v2565
        %v2581 = vpack.c.bf16 %v2568, %v2567
        %v2582 = vpack.c.bf16 %v2570, %v2569
        %v2583 = vpack.c.bf16 %v2572, %v2571
        %s2584 = scalar_lea.vmem %s7, 32
        %v2585 = vld [vmem:[%s2584] sm:$0xff]
        %v2586 = vld [vmem:[%s2584 + $0x8] sm:$0xff]
        %2588 = vset.pattern.permute.xlu0 0
        %2589 = vperm.xlu0 %2588, %v2585
        %v2590 = vpop.permute.xlu0 %2589
        %2593 = vset.pattern.permute.xlu0 0
        %2594 = vperm.xlu0 %2593, %v2586
        %v2595 = vpop.permute.xlu0 %2594
        %v2599 = vunpack.c.l.b16 %v2574
        %v2600 = vunpack.c.l.b16 %v2575
        %v2601 = vpack.c.b16 %v2600, %v2599
        %2603 = vmatpush.bf16.msra.mxu0 %v2583
        %2604 = vmatpush.bf16.msra.mxu0 %v2582
        %2605 = vmatpush.bf16.msra.mxu0 %v2581
        %2606 = vmatpush.bf16.msra.mxu0 %v2580
        %2607 = vmatpush.bf16.msra.mxu0 %v2579
        %2608 = vmatpush.bf16.msra.mxu0 %v2578
        %2609 = vmatpush.bf16.msra.mxu0 %v2577
        %2610 = vmatpush.bf16.msra.mxu0 %v2576
        %2611 = vmatmul.bf16.gmra.mxu0 %v2601
        %v2612 = vpop.f32.mrf.mxu0
        %v2613 = vadd.f32 %v2590, %v2612
        %v2614 = vpop.f32.mrf.mxu0
        %v2615 = vadd.f32 %v2595, %v2614
        %2616 = vdwg.mxu0
        %v2617 = vtanh.pop %v2615
        %v2618 = vsub.f32 %v2048, %v2617
        %2620 = vset.pattern.permute.xlu0 0
        %2621 = vperm.xlu0 %2620, %v2052
        %v2622 = vpop.permute.xlu0 %2621
        %v2624 = vmul.f32 %v2622, %v2618
        %v2625 = vsub.f32 0.0, %v2613
        %v2626 = vmul.f32 %v2625, 1.442695
        %v2627 = vpow.pop %v2626
        %v2628 = vmul.f32 %v2624, %v2627
        %v2629 = vadd.f32 %v2628, 1e-08
        %v2630 = vadd.f32 %v2629, %v2058
        %v2631 = vadd.f32 %v2049, %v2613
        %s2632 = scalar_lea.vmem %s1, 8
        %v2633 = vld [vmem:[%s2632] sm:$0xff]
        %v2634 = vsub.f32 1.0, %v2633
        %2636 = vset.pattern.permute.xlu0 0
        %2637 = vperm.xlu0 %2636, %v2633
        %v2638 = vpop.permute.xlu0 %2637
        %v2640 = vmul.f32 %v2638, %v2630
        %s2641 = scalar_lea.vmem %s2, 64
        %v2642 = vld [vmem:[%s2641] sm:$0xf]
        %v2643 = vld [vmem:[%s2641 + $0x4] sm:$0xf]
        %v2644 = vld [vmem:[%s2641 + $0x8] sm:$0xf]
        %v2645 = vld [vmem:[%s2641 + $0xc] sm:$0xf]
        %v2646 = vld [vmem:[%s2641 + $0x10] sm:$0xf]
        %v2647 = vld [vmem:[%s2641 + $0x14] sm:$0xf]
        %v2648 = vld [vmem:[%s2641 + $0x18] sm:$0xf]
        %v2649 = vld [vmem:[%s2641 + $0x1c] sm:$0xf]
        %v2650 = vld [vmem:[%s2641 + $0x20] sm:$0xf]
        %v2651 = vld [vmem:[%s2641 + $0x24] sm:$0xf]
        %v2652 = vld [vmem:[%s2641 + $0x28] sm:$0xf]
        %v2653 = vld [vmem:[%s2641 + $0x2c] sm:$0xf]
        %v2654 = vld [vmem:[%s2641 + $0x30] sm:$0xf]
        %v2655 = vld [vmem:[%s2641 + $0x34] sm:$0xf]
        %v2656 = vld [vmem:[%s2641 + $0x38] sm:$0xf]
        %v2657 = vld [vmem:[%s2641 + $0x3c] sm:$0xf]
        %v2658 = vpack.c.bf16 %v2640, %v2640
        %s2659 = scalar_lea.vmem %s3, 128
        %v2660 = vld [vmem:[%s2659] sm:$0xff]
        %v2661 = vld [vmem:[%s2659 + $0x8] sm:$0xff]
        %v2662 = vld [vmem:[%s2659 + $0x10] sm:$0xff]
        %v2663 = vld [vmem:[%s2659 + $0x18] sm:$0xff]
        %v2664 = vld [vmem:[%s2659 + $0x20] sm:$0xff]
        %v2665 = vld [vmem:[%s2659 + $0x28] sm:$0xff]
        %v2666 = vld [vmem:[%s2659 + $0x30] sm:$0xff]
        %v2667 = vld [vmem:[%s2659 + $0x38] sm:$0xff]
        %v2668 = vld [vmem:[%s2659 + $0x40] sm:$0xff]
        %v2669 = vld [vmem:[%s2659 + $0x48] sm:$0xff]
        %v2670 = vld [vmem:[%s2659 + $0x50] sm:$0xff]
        %v2671 = vld [vmem:[%s2659 + $0x58] sm:$0xff]
        %v2672 = vld [vmem:[%s2659 + $0x60] sm:$0xff]
        %v2673 = vld [vmem:[%s2659 + $0x68] sm:$0xff]
        %v2674 = vld [vmem:[%s2659 + $0x70] sm:$0xff]
        %v2675 = vld [vmem:[%s2659 + $0x78] sm:$0xff]
        %2677 = vset.pattern.permute.xlu0 0
        %2678 = vperm.xlu0 %2677, %v2660
        %v2679 = vpop.permute.xlu0 %2678
        %2682 = vset.pattern.permute.xlu0 0
        %2683 = vperm.xlu0 %2682, %v2661
        %v2684 = vpop.permute.xlu0 %2683
        %2687 = vset.pattern.permute.xlu0 0
        %2688 = vperm.xlu0 %2687, %v2662
        %v2689 = vpop.permute.xlu0 %2688
        %2692 = vset.pattern.permute.xlu0 0
        %2693 = vperm.xlu0 %2692, %v2663
        %v2694 = vpop.permute.xlu0 %2693
        %2697 = vset.pattern.permute.xlu0 0
        %2698 = vperm.xlu0 %2697, %v2664
        %v2699 = vpop.permute.xlu0 %2698
        %2702 = vset.pattern.permute.xlu0 0
        %2703 = vperm.xlu0 %2702, %v2665
        %v2704 = vpop.permute.xlu0 %2703
        %2707 = vset.pattern.permute.xlu0 0
        %2708 = vperm.xlu0 %2707, %v2666
        %v2709 = vpop.permute.xlu0 %2708
        %2712 = vset.pattern.permute.xlu0 0
        %2713 = vperm.xlu0 %2712, %v2667
        %v2714 = vpop.permute.xlu0 %2713
        %2717 = vset.pattern.permute.xlu0 0
        %2718 = vperm.xlu0 %2717, %v2668
        %v2719 = vpop.permute.xlu0 %2718
        %2722 = vset.pattern.permute.xlu0 0
        %2723 = vperm.xlu0 %2722, %v2669
        %v2724 = vpop.permute.xlu0 %2723
        %2727 = vset.pattern.permute.xlu0 0
        %2728 = vperm.xlu0 %2727, %v2670
        %v2729 = vpop.permute.xlu0 %2728
        %2732 = vset.pattern.permute.xlu0 0
        %2733 = vperm.xlu0 %2732, %v2671
        %v2734 = vpop.permute.xlu0 %2733
        %2737 = vset.pattern.permute.xlu0 0
        %2738 = vperm.xlu0 %2737, %v2672
        %v2739 = vpop.permute.xlu0 %2738
        %2742 = vset.pattern.permute.xlu0 0
        %2743 = vperm.xlu0 %2742, %v2673
        %v2744 = vpop.permute.xlu0 %2743
        %2747 = vset.pattern.permute.xlu0 0
        %2748 = vperm.xlu0 %2747, %v2674
        %v2749 = vpop.permute.xlu0 %2748
        %2752 = vset.pattern.permute.xlu0 0
        %2753 = vperm.xlu0 %2752, %v2675
        %v2754 = vpop.permute.xlu0 %2753
        %v2772 = vunpack.c.l.b16 %v2642
        %v2773 = vunpack.c.l.b16 %v2643
        %v2774 = vunpack.c.l.b16 %v2644
        %v2775 = vunpack.c.l.b16 %v2645
        %v2776 = vunpack.c.l.b16 %v2646
        %v2777 = vunpack.c.l.b16 %v2647
        %v2778 = vunpack.c.l.b16 %v2648
        %v2779 = vunpack.c.l.b16 %v2649
        %v2780 = vunpack.c.l.b16 %v2650
        %v2781 = vunpack.c.l.b16 %v2651
        %v2782 = vunpack.c.l.b16 %v2652
        %v2783 = vunpack.c.l.b16 %v2653
        %v2784 = vunpack.c.l.b16 %v2654
        %v2785 = vunpack.c.l.b16 %v2655
        %v2786 = vunpack.c.l.b16 %v2656
        %v2787 = vunpack.c.l.b16 %v2657
        %v2788 = vpack.c.b16 %v2773, %v2772
        %v2789 = vpack.c.b16 %v2775, %v2774
        %v2790 = vpack.c.b16 %v2777, %v2776
        %v2791 = vpack.c.b16 %v2779, %v2778
        %v2792 = vpack.c.b16 %v2781, %v2780
        %v2793 = vpack.c.b16 %v2783, %v2782
        %v2794 = vpack.c.b16 %v2785, %v2784
        %v2795 = vpack.c.b16 %v2787, %v2786
        %v2797 = vsel %vm466, %v2788, 0
        %v2800 = vsel %vm466, %v2789, 0
        %v2803 = vsel %vm466, %v2790, 0
        %v2806 = vsel %vm466, %v2791, 0
        %v2809 = vsel %vm466, %v2792, 0
        %v2812 = vsel %vm466, %v2793, 0
        %v2815 = vsel %vm466, %v2794, 0
        %v2818 = vsel %vm466, %v2795, 0
        %v2821 = vsel %vm491, %v2658, 0
        %2823 = vmatpush.bf16.msra.mxu0 0
        %2824 = vmatpush.bf16.msra.mxu0 0
        %2825 = vmatpush.bf16.msra.mxu0 0
        %2826 = vmatpush.bf16.msra.mxu0 0
        %2827 = vmatpush.bf16.msra.mxu0 0
        %2828 = vmatpush.bf16.msra.mxu0 0
        %2829 = vmatpush.bf16.msra.mxu0 0
        %2830 = vmatpush.bf16.msra.mxu0 %v2821
        %2831 = vmatmul.bf16.gmra.mxu0 %v2797
        %v2832 = vpop.f32.mrf.mxu0
        %v2833 = vadd.f32 %v2679, %v2832
        %v2834 = vpop.f32.mrf.mxu0
        %v2835 = vadd.f32 %v2684, %v2834
        %2836 = vmatmul.bf16.gmra.mxu0 %v2800
        %v2837 = vpop.f32.mrf.mxu0
        %v2838 = vadd.f32 %v2689, %v2837
        %v2839 = vpop.f32.mrf.mxu0
        %v2840 = vadd.f32 %v2694, %v2839
        %2841 = vmatmul.bf16.gmra.mxu0 %v2803
        %v2842 = vpop.f32.mrf.mxu0
        %v2843 = vadd.f32 %v2699, %v2842
        %v2844 = vpop.f32.mrf.mxu0
        %v2845 = vadd.f32 %v2704, %v2844
        %2846 = vmatmul.bf16.gmra.mxu0 %v2806
        %v2847 = vpop.f32.mrf.mxu0
        %v2848 = vadd.f32 %v2709, %v2847
        %v2849 = vpop.f32.mrf.mxu0
        %v2850 = vadd.f32 %v2714, %v2849
        %2851 = vmatmul.bf16.gmra.mxu0 %v2809
        %v2852 = vpop.f32.mrf.mxu0
        %v2853 = vadd.f32 %v2719, %v2852
        %v2854 = vpop.f32.mrf.mxu0
        %v2855 = vadd.f32 %v2724, %v2854
        %2856 = vmatmul.bf16.gmra.mxu0 %v2812
        %v2857 = vpop.f32.mrf.mxu0
        %v2858 = vadd.f32 %v2729, %v2857
        %v2859 = vpop.f32.mrf.mxu0
        %v2860 = vadd.f32 %v2734, %v2859
        %2861 = vmatmul.bf16.gmra.mxu0 %v2815
        %v2862 = vpop.f32.mrf.mxu0
        %v2863 = vadd.f32 %v2739, %v2862
        %v2864 = vpop.f32.mrf.mxu0
        %v2865 = vadd.f32 %v2744, %v2864
        %2866 = vmatmul.bf16.gmra.mxu0 %v2818
        %v2867 = vpop.f32.mrf.mxu0
        %v2868 = vadd.f32 %v2749, %v2867
        %v2869 = vpop.f32.mrf.mxu0
        %v2870 = vadd.f32 %v2754, %v2869
        %2871 = vdwg.mxu0
        %v2872 = vmul.f32 %v2833, 0.01
        %v2873 = vmul.f32 %v2835, 0.01
        %v2874 = vmul.f32 %v2838, 0.01
        %v2875 = vmul.f32 %v2840, 0.01
        %v2876 = vmul.f32 %v2843, 0.01
        %v2877 = vmul.f32 %v2845, 0.01
        %v2878 = vmul.f32 %v2848, 0.01
        %v2879 = vmul.f32 %v2850, 0.01
        %v2880 = vmul.f32 %v2853, 0.01
        %v2881 = vmul.f32 %v2855, 0.01
        %v2882 = vmul.f32 %v2858, 0.01
        %v2883 = vmul.f32 %v2860, 0.01
        %v2884 = vmul.f32 %v2863, 0.01
        %v2885 = vmul.f32 %v2865, 0.01
        %v2886 = vmul.f32 %v2868, 0.01
        %v2887 = vmul.f32 %v2870, 0.01
        %v2888 = vmax.f32 %v2833, %v2872
        %v2889 = vmax.f32 %v2835, %v2873
        %v2890 = vmax.f32 %v2838, %v2874
        %v2891 = vmax.f32 %v2840, %v2875
        %v2892 = vmax.f32 %v2843, %v2876
        %v2893 = vmax.f32 %v2845, %v2877
        %v2894 = vmax.f32 %v2848, %v2878
        %v2895 = vmax.f32 %v2850, %v2879
        %v2896 = vmax.f32 %v2853, %v2880
        %v2897 = vmax.f32 %v2855, %v2881
        %v2898 = vmax.f32 %v2858, %v2882
        %v2899 = vmax.f32 %v2860, %v2883
        %v2900 = vmax.f32 %v2863, %v2884
        %v2901 = vmax.f32 %v2865, %v2885
        %v2902 = vmax.f32 %v2868, %v2886
        %v2903 = vmax.f32 %v2870, %v2887
        %s2904 = scalar_lea.vmem %s4, 64
        %v2905 = vld [vmem:[%s2904] sm:$0xf]
        %v2906 = vld [vmem:[%s2904 + $0x4] sm:$0xf]
        %v2907 = vld [vmem:[%s2904 + $0x8] sm:$0xf]
        %v2908 = vld [vmem:[%s2904 + $0xc] sm:$0xf]
        %v2909 = vld [vmem:[%s2904 + $0x10] sm:$0xf]
        %v2910 = vld [vmem:[%s2904 + $0x14] sm:$0xf]
        %v2911 = vld [vmem:[%s2904 + $0x18] sm:$0xf]
        %v2912 = vld [vmem:[%s2904 + $0x1c] sm:$0xf]
        %v2913 = vld [vmem:[%s2904 + $0x20] sm:$0xf]
        %v2914 = vld [vmem:[%s2904 + $0x24] sm:$0xf]
        %v2915 = vld [vmem:[%s2904 + $0x28] sm:$0xf]
        %v2916 = vld [vmem:[%s2904 + $0x2c] sm:$0xf]
        %v2917 = vld [vmem:[%s2904 + $0x30] sm:$0xf]
        %v2918 = vld [vmem:[%s2904 + $0x34] sm:$0xf]
        %v2919 = vld [vmem:[%s2904 + $0x38] sm:$0xf]
        %v2920 = vld [vmem:[%s2904 + $0x3c] sm:$0xf]
        %v2921 = vpack.c.bf16 %v2889, %v2888
        %v2922 = vpack.c.bf16 %v2891, %v2890
        %v2923 = vpack.c.bf16 %v2893, %v2892
        %v2924 = vpack.c.bf16 %v2895, %v2894
        %v2925 = vpack.c.bf16 %v2897, %v2896
        %v2926 = vpack.c.bf16 %v2899, %v2898
        %v2927 = vpack.c.bf16 %v2901, %v2900
        %v2928 = vpack.c.bf16 %v2903, %v2902
        %s2929 = scalar_lea.vmem %s5, 128
        %v2930 = vld [vmem:[%s2929] sm:$0xff]
        %v2931 = vld [vmem:[%s2929 + $0x8] sm:$0xff]
        %v2932 = vld [vmem:[%s2929 + $0x10] sm:$0xff]
        %v2933 = vld [vmem:[%s2929 + $0x18] sm:$0xff]
        %v2934 = vld [vmem:[%s2929 + $0x20] sm:$0xff]
        %v2935 = vld [vmem:[%s2929 + $0x28] sm:$0xff]
        %v2936 = vld [vmem:[%s2929 + $0x30] sm:$0xff]
        %v2937 = vld [vmem:[%s2929 + $0x38] sm:$0xff]
        %v2938 = vld [vmem:[%s2929 + $0x40] sm:$0xff]
        %v2939 = vld [vmem:[%s2929 + $0x48] sm:$0xff]
        %v2940 = vld [vmem:[%s2929 + $0x50] sm:$0xff]
        %v2941 = vld [vmem:[%s2929 + $0x58] sm:$0xff]
        %v2942 = vld [vmem:[%s2929 + $0x60] sm:$0xff]
        %v2943 = vld [vmem:[%s2929 + $0x68] sm:$0xff]
        %v2944 = vld [vmem:[%s2929 + $0x70] sm:$0xff]
        %v2945 = vld [vmem:[%s2929 + $0x78] sm:$0xff]
        %2947 = vset.pattern.permute.xlu0 0
        %2948 = vperm.xlu0 %2947, %v2930
        %v2949 = vpop.permute.xlu0 %2948
        %2952 = vset.pattern.permute.xlu0 0
        %2953 = vperm.xlu0 %2952, %v2931
        %v2954 = vpop.permute.xlu0 %2953
        %2957 = vset.pattern.permute.xlu0 0
        %2958 = vperm.xlu0 %2957, %v2932
        %v2959 = vpop.permute.xlu0 %2958
        %2962 = vset.pattern.permute.xlu0 0
        %2963 = vperm.xlu0 %2962, %v2933
        %v2964 = vpop.permute.xlu0 %2963
        %2967 = vset.pattern.permute.xlu0 0
        %2968 = vperm.xlu0 %2967, %v2934
        %v2969 = vpop.permute.xlu0 %2968
        %2972 = vset.pattern.permute.xlu0 0
        %2973 = vperm.xlu0 %2972, %v2935
        %v2974 = vpop.permute.xlu0 %2973
        %2977 = vset.pattern.permute.xlu0 0
        %2978 = vperm.xlu0 %2977, %v2936
        %v2979 = vpop.permute.xlu0 %2978
        %2982 = vset.pattern.permute.xlu0 0
        %2983 = vperm.xlu0 %2982, %v2937
        %v2984 = vpop.permute.xlu0 %2983
        %2987 = vset.pattern.permute.xlu0 0
        %2988 = vperm.xlu0 %2987, %v2938
        %v2989 = vpop.permute.xlu0 %2988
        %2992 = vset.pattern.permute.xlu0 0
        %2993 = vperm.xlu0 %2992, %v2939
        %v2994 = vpop.permute.xlu0 %2993
        %2997 = vset.pattern.permute.xlu0 0
        %2998 = vperm.xlu0 %2997, %v2940
        %v2999 = vpop.permute.xlu0 %2998
        %3002 = vset.pattern.permute.xlu0 0
        %3003 = vperm.xlu0 %3002, %v2941
        %v3004 = vpop.permute.xlu0 %3003
        %3007 = vset.pattern.permute.xlu0 0
        %3008 = vperm.xlu0 %3007, %v2942
        %v3009 = vpop.permute.xlu0 %3008
        %3012 = vset.pattern.permute.xlu0 0
        %3013 = vperm.xlu0 %3012, %v2943
        %v3014 = vpop.permute.xlu0 %3013
        %3017 = vset.pattern.permute.xlu0 0
        %3018 = vperm.xlu0 %3017, %v2944
        %v3019 = vpop.permute.xlu0 %3018
        %3022 = vset.pattern.permute.xlu0 0
        %3023 = vperm.xlu0 %3022, %v2945
        %v3024 = vpop.permute.xlu0 %3023
        %v3042 = vunpack.c.l.b16 %v2905
        %v3043 = vunpack.c.l.b16 %v2906
        %v3044 = vunpack.c.l.b16 %v2907
        %v3045 = vunpack.c.l.b16 %v2908
        %v3046 = vunpack.c.l.b16 %v2909
        %v3047 = vunpack.c.l.b16 %v2910
        %v3048 = vunpack.c.l.b16 %v2911
        %v3049 = vunpack.c.l.b16 %v2912
        %v3050 = vunpack.c.l.b16 %v2913
        %v3051 = vunpack.c.l.b16 %v2914
        %v3052 = vunpack.c.l.b16 %v2915
        %v3053 = vunpack.c.l.b16 %v2916
        %v3054 = vunpack.c.l.b16 %v2917
        %v3055 = vunpack.c.l.b16 %v2918
        %v3056 = vunpack.c.l.b16 %v2919
        %v3057 = vunpack.c.l.b16 %v2920
        %v3058 = vpack.c.b16 %v3043, %v3042
        %v3059 = vpack.c.b16 %v3045, %v3044
        %v3060 = vpack.c.b16 %v3047, %v3046
        %v3061 = vpack.c.b16 %v3049, %v3048
        %v3062 = vpack.c.b16 %v3051, %v3050
        %v3063 = vpack.c.b16 %v3053, %v3052
        %v3064 = vpack.c.b16 %v3055, %v3054
        %v3065 = vpack.c.b16 %v3057, %v3056
        %3074 = vmatpush.bf16.msra.mxu0 %v2928
        %3075 = vmatpush.bf16.msra.mxu0 %v2927
        %3076 = vmatpush.bf16.msra.mxu0 %v2926
        %3077 = vmatpush.bf16.msra.mxu0 %v2925
        %3078 = vmatpush.bf16.msra.mxu0 %v2924
        %3079 = vmatpush.bf16.msra.mxu0 %v2923
        %3080 = vmatpush.bf16.msra.mxu0 %v2922
        %3081 = vmatpush.bf16.msra.mxu0 %v2921
        %3082 = vmatmul.bf16.gmra.mxu0 %v3058
        %v3083 = vpop.f32.mrf.mxu0
        %v3084 = vadd.f32 %v2949, %v3083
        %v3085 = vpop.f32.mrf.mxu0
        %v3086 = vadd.f32 %v2954, %v3085
        %3087 = vmatmul.bf16.gmra.mxu0 %v3059
        %v3088 = vpop.f32.mrf.mxu0
        %v3089 = vadd.f32 %v2959, %v3088
        %v3090 = vpop.f32.mrf.mxu0
        %v3091 = vadd.f32 %v2964, %v3090
        %3092 = vmatmul.bf16.gmra.mxu0 %v3060
        %v3093 = vpop.f32.mrf.mxu0
        %v3094 = vadd.f32 %v2969, %v3093
        %v3095 = vpop.f32.mrf.mxu0
        %v3096 = vadd.f32 %v2974, %v3095
        %3097 = vmatmul.bf16.gmra.mxu0 %v3061
        %v3098 = vpop.f32.mrf.mxu0
        %v3099 = vadd.f32 %v2979, %v3098
        %v3100 = vpop.f32.mrf.mxu0
        %v3101 = vadd.f32 %v2984, %v3100
        %3102 = vmatmul.bf16.gmra.mxu0 %v3062
        %v3103 = vpop.f32.mrf.mxu0
        %v3104 = vadd.f32 %v2989, %v3103
        %v3105 = vpop.f32.mrf.mxu0
        %v3106 = vadd.f32 %v2994, %v3105
        %3107 = vmatmul.bf16.gmra.mxu0 %v3063
        %v3108 = vpop.f32.mrf.mxu0
        %v3109 = vadd.f32 %v2999, %v3108
        %v3110 = vpop.f32.mrf.mxu0
        %v3111 = vadd.f32 %v3004, %v3110
        %3112 = vmatmul.bf16.gmra.mxu0 %v3064
        %v3113 = vpop.f32.mrf.mxu0
        %v3114 = vadd.f32 %v3009, %v3113
        %v3115 = vpop.f32.mrf.mxu0
        %v3116 = vadd.f32 %v3014, %v3115
        %3117 = vmatmul.bf16.gmra.mxu0 %v3065
        %v3118 = vpop.f32.mrf.mxu0
        %v3119 = vadd.f32 %v3019, %v3118
        %v3120 = vpop.f32.mrf.mxu0
        %v3121 = vadd.f32 %v3024, %v3120
        %3122 = vdwg.mxu0
        %v3123 = vmul.f32 %v3084, 0.01
        %v3124 = vmul.f32 %v3086, 0.01
        %v3125 = vmul.f32 %v3089, 0.01
        %v3126 = vmul.f32 %v3091, 0.01
        %v3127 = vmul.f32 %v3094, 0.01
        %v3128 = vmul.f32 %v3096, 0.01
        %v3129 = vmul.f32 %v3099, 0.01
        %v3130 = vmul.f32 %v3101, 0.01
        %v3131 = vmul.f32 %v3104, 0.01
        %v3132 = vmul.f32 %v3106, 0.01
        %v3133 = vmul.f32 %v3109, 0.01
        %v3134 = vmul.f32 %v3111, 0.01
        %v3135 = vmul.f32 %v3114, 0.01
        %v3136 = vmul.f32 %v3116, 0.01
        %v3137 = vmul.f32 %v3119, 0.01
        %v3138 = vmul.f32 %v3121, 0.01
        %v3139 = vmax.f32 %v3084, %v3123
        %v3140 = vmax.f32 %v3086, %v3124
        %v3141 = vmax.f32 %v3089, %v3125
        %v3142 = vmax.f32 %v3091, %v3126
        %v3143 = vmax.f32 %v3094, %v3127
        %v3144 = vmax.f32 %v3096, %v3128
        %v3145 = vmax.f32 %v3099, %v3129
        %v3146 = vmax.f32 %v3101, %v3130
        %v3147 = vmax.f32 %v3104, %v3131
        %v3148 = vmax.f32 %v3106, %v3132
        %v3149 = vmax.f32 %v3109, %v3133
        %v3150 = vmax.f32 %v3111, %v3134
        %v3151 = vmax.f32 %v3114, %v3135
        %v3152 = vmax.f32 %v3116, %v3136
        %v3153 = vmax.f32 %v3119, %v3137
        %v3154 = vmax.f32 %v3121, %v3138
        %s3155 = scalar_lea.vmem %s6, 8
        %v3156 = vld [vmem:[%s3155] sm:$0xf]
        %v3157 = vld [vmem:[%s3155 + $0x4] sm:$0xf]
        %v3158 = vpack.c.bf16 %v3140, %v3139
        %v3159 = vpack.c.bf16 %v3142, %v3141
        %v3160 = vpack.c.bf16 %v3144, %v3143
        %v3161 = vpack.c.bf16 %v3146, %v3145
        %v3162 = vpack.c.bf16 %v3148, %v3147
        %v3163 = vpack.c.bf16 %v3150, %v3149
        %v3164 = vpack.c.bf16 %v3152, %v3151
        %v3165 = vpack.c.bf16 %v3154, %v3153
        %s3166 = scalar_lea.vmem %s7, 16
        %v3167 = vld [vmem:[%s3166] sm:$0xff]
        %v3168 = vld [vmem:[%s3166 + $0x8] sm:$0xff]
        %3170 = vset.pattern.permute.xlu0 0
        %3171 = vperm.xlu0 %3170, %v3167
        %v3172 = vpop.permute.xlu0 %3171
        %3175 = vset.pattern.permute.xlu0 0
        %3176 = vperm.xlu0 %3175, %v3168
        %v3177 = vpop.permute.xlu0 %3176
        %v3181 = vunpack.c.l.b16 %v3156
        %v3182 = vunpack.c.l.b16 %v3157
        %v3183 = vpack.c.b16 %v3182, %v3181
        %3185 = vmatpush.bf16.msra.mxu0 %v3165
        %3186 = vmatpush.bf16.msra.mxu0 %v3164
        %3187 = vmatpush.bf16.msra.mxu0 %v3163
        %3188 = vmatpush.bf16.msra.mxu0 %v3162
        %3189 = vmatpush.bf16.msra.mxu0 %v3161
        %3190 = vmatpush.bf16.msra.mxu0 %v3160
        %3191 = vmatpush.bf16.msra.mxu0 %v3159
        %3192 = vmatpush.bf16.msra.mxu0 %v3158
        %3193 = vmatmul.bf16.gmra.mxu0 %v3183
        %v3194 = vpop.f32.mrf.mxu0
        %v3195 = vadd.f32 %v3172, %v3194
        %v3196 = vpop.f32.mrf.mxu0
        %v3197 = vadd.f32 %v3177, %v3196
        %3198 = vdwg.mxu0
        %v3199 = vtanh.pop %v3197
        %v3200 = vsub.f32 %v2630, %v3199
        %3202 = vset.pattern.permute.xlu0 0
        %3203 = vperm.xlu0 %3202, %v2634
        %v3204 = vpop.permute.xlu0 %3203
        %v3206 = vmul.f32 %v3204, %v3200
        %v3207 = vsub.f32 0.0, %v3195
        %v3208 = vmul.f32 %v3207, 1.442695
        %v3209 = vpow.pop %v3208
        %v3210 = vmul.f32 %v3206, %v3209
        %v3211 = vadd.f32 %v3210, 1e-08
        %v3212 = vadd.f32 %v3211, %v2640
        %v3213 = vadd.f32 %v2631, %v3195
        %v3214 = vld [vmem:[%s1] sm:$0xff]
        %v3215 = vsub.f32 1.0, %v3214
        %3217 = vset.pattern.permute.xlu0 0
        %3218 = vperm.xlu0 %3217, %v3214
        %v3219 = vpop.permute.xlu0 %3218
        %v3221 = vmul.f32 %v3219, %v3212
        %v3222 = vld [vmem:[%s2] sm:$0xf]
        %v3223 = vld [vmem:[%s2 + $0x4] sm:$0xf]
        %v3224 = vld [vmem:[%s2 + $0x8] sm:$0xf]
        %v3225 = vld [vmem:[%s2 + $0xc] sm:$0xf]
        %v3226 = vld [vmem:[%s2 + $0x10] sm:$0xf]
        %v3227 = vld [vmem:[%s2 + $0x14] sm:$0xf]
        %v3228 = vld [vmem:[%s2 + $0x18] sm:$0xf]
        %v3229 = vld [vmem:[%s2 + $0x1c] sm:$0xf]
        %v3230 = vld [vmem:[%s2 + $0x20] sm:$0xf]
        %v3231 = vld [vmem:[%s2 + $0x24] sm:$0xf]
        %v3232 = vld [vmem:[%s2 + $0x28] sm:$0xf]
        %v3233 = vld [vmem:[%s2 + $0x2c] sm:$0xf]
        %v3234 = vld [vmem:[%s2 + $0x30] sm:$0xf]
        %v3235 = vld [vmem:[%s2 + $0x34] sm:$0xf]
        %v3236 = vld [vmem:[%s2 + $0x38] sm:$0xf]
        %v3237 = vld [vmem:[%s2 + $0x3c] sm:$0xf]
        %v3238 = vpack.c.bf16 %v3221, %v3221
        %v3239 = vld [vmem:[%s3] sm:$0xff]
        %v3240 = vld [vmem:[%s3 + $0x8] sm:$0xff]
        %v3241 = vld [vmem:[%s3 + $0x10] sm:$0xff]
        %v3242 = vld [vmem:[%s3 + $0x18] sm:$0xff]
        %v3243 = vld [vmem:[%s3 + $0x20] sm:$0xff]
        %v3244 = vld [vmem:[%s3 + $0x28] sm:$0xff]
        %v3245 = vld [vmem:[%s3 + $0x30] sm:$0xff]
        %v3246 = vld [vmem:[%s3 + $0x38] sm:$0xff]
        %v3247 = vld [vmem:[%s3 + $0x40] sm:$0xff]
        %v3248 = vld [vmem:[%s3 + $0x48] sm:$0xff]
        %v3249 = vld [vmem:[%s3 + $0x50] sm:$0xff]
        %v3250 = vld [vmem:[%s3 + $0x58] sm:$0xff]
        %v3251 = vld [vmem:[%s3 + $0x60] sm:$0xff]
        %v3252 = vld [vmem:[%s3 + $0x68] sm:$0xff]
        %v3253 = vld [vmem:[%s3 + $0x70] sm:$0xff]
        %v3254 = vld [vmem:[%s3 + $0x78] sm:$0xff]
        %3256 = vset.pattern.permute.xlu0 0
        %3257 = vperm.xlu0 %3256, %v3239
        %v3258 = vpop.permute.xlu0 %3257
        %3261 = vset.pattern.permute.xlu0 0
        %3262 = vperm.xlu0 %3261, %v3240
        %v3263 = vpop.permute.xlu0 %3262
        %3266 = vset.pattern.permute.xlu0 0
        %3267 = vperm.xlu0 %3266, %v3241
        %v3268 = vpop.permute.xlu0 %3267
        %3271 = vset.pattern.permute.xlu0 0
        %3272 = vperm.xlu0 %3271, %v3242
        %v3273 = vpop.permute.xlu0 %3272
        %3276 = vset.pattern.permute.xlu0 0
        %3277 = vperm.xlu0 %3276, %v3243
        %v3278 = vpop.permute.xlu0 %3277
        %3281 = vset.pattern.permute.xlu0 0
        %3282 = vperm.xlu0 %3281, %v3244
        %v3283 = vpop.permute.xlu0 %3282
        %3286 = vset.pattern.permute.xlu0 0
        %3287 = vperm.xlu0 %3286, %v3245
        %v3288 = vpop.permute.xlu0 %3287
        %3291 = vset.pattern.permute.xlu0 0
        %3292 = vperm.xlu0 %3291, %v3246
        %v3293 = vpop.permute.xlu0 %3292
        %3296 = vset.pattern.permute.xlu0 0
        %3297 = vperm.xlu0 %3296, %v3247
        %v3298 = vpop.permute.xlu0 %3297
        %3301 = vset.pattern.permute.xlu0 0
        %3302 = vperm.xlu0 %3301, %v3248
        %v3303 = vpop.permute.xlu0 %3302
        %3306 = vset.pattern.permute.xlu0 0
        %3307 = vperm.xlu0 %3306, %v3249
        %v3308 = vpop.permute.xlu0 %3307
        %3311 = vset.pattern.permute.xlu0 0
        %3312 = vperm.xlu0 %3311, %v3250
        %v3313 = vpop.permute.xlu0 %3312
        %3316 = vset.pattern.permute.xlu0 0
        %3317 = vperm.xlu0 %3316, %v3251
        %v3318 = vpop.permute.xlu0 %3317
        %3321 = vset.pattern.permute.xlu0 0
        %3322 = vperm.xlu0 %3321, %v3252
        %v3323 = vpop.permute.xlu0 %3322
        %3326 = vset.pattern.permute.xlu0 0
        %3327 = vperm.xlu0 %3326, %v3253
        %v3328 = vpop.permute.xlu0 %3327
        %3331 = vset.pattern.permute.xlu0 0
        %3332 = vperm.xlu0 %3331, %v3254
        %v3333 = vpop.permute.xlu0 %3332
        %v3351 = vunpack.c.l.b16 %v3222
        %v3352 = vunpack.c.l.b16 %v3223
        %v3353 = vunpack.c.l.b16 %v3224
        %v3354 = vunpack.c.l.b16 %v3225
        %v3355 = vunpack.c.l.b16 %v3226
        %v3356 = vunpack.c.l.b16 %v3227
        %v3357 = vunpack.c.l.b16 %v3228
        %v3358 = vunpack.c.l.b16 %v3229
        %v3359 = vunpack.c.l.b16 %v3230
        %v3360 = vunpack.c.l.b16 %v3231
        %v3361 = vunpack.c.l.b16 %v3232
        %v3362 = vunpack.c.l.b16 %v3233
        %v3363 = vunpack.c.l.b16 %v3234
        %v3364 = vunpack.c.l.b16 %v3235
        %v3365 = vunpack.c.l.b16 %v3236
        %v3366 = vunpack.c.l.b16 %v3237
        %v3367 = vpack.c.b16 %v3352, %v3351
        %v3368 = vpack.c.b16 %v3354, %v3353
        %v3369 = vpack.c.b16 %v3356, %v3355
        %v3370 = vpack.c.b16 %v3358, %v3357
        %v3371 = vpack.c.b16 %v3360, %v3359
        %v3372 = vpack.c.b16 %v3362, %v3361
        %v3373 = vpack.c.b16 %v3364, %v3363
        %v3374 = vpack.c.b16 %v3366, %v3365
        %v3376 = vsel %vm466, %v3367, 0
        %v3379 = vsel %vm466, %v3368, 0
        %v3382 = vsel %vm466, %v3369, 0
        %v3385 = vsel %vm466, %v3370, 0
        %v3388 = vsel %vm466, %v3371, 0
        %v3391 = vsel %vm466, %v3372, 0
        %v3394 = vsel %vm466, %v3373, 0
        %v3397 = vsel %vm466, %v3374, 0
        %v3400 = vsel %vm491, %v3238, 0
        %3402 = vmatpush.bf16.msra.mxu0 0
        %3403 = vmatpush.bf16.msra.mxu0 0
        %3404 = vmatpush.bf16.msra.mxu0 0
        %3405 = vmatpush.bf16.msra.mxu0 0
        %3406 = vmatpush.bf16.msra.mxu0 0
        %3407 = vmatpush.bf16.msra.mxu0 0
        %3408 = vmatpush.bf16.msra.mxu0 0
        %3409 = vmatpush.bf16.msra.mxu0 %v3400
        %3410 = vmatmul.bf16.gmra.mxu0 %v3376
        %v3411 = vpop.f32.mrf.mxu0
        %v3412 = vadd.f32 %v3258, %v3411
        %v3413 = vpop.f32.mrf.mxu0
        %v3414 = vadd.f32 %v3263, %v3413
        %3415 = vmatmul.bf16.gmra.mxu0 %v3379
        %v3416 = vpop.f32.mrf.mxu0
        %v3417 = vadd.f32 %v3268, %v3416
        %v3418 = vpop.f32.mrf.mxu0
        %v3419 = vadd.f32 %v3273, %v3418
        %3420 = vmatmul.bf16.gmra.mxu0 %v3382
        %v3421 = vpop.f32.mrf.mxu0
        %v3422 = vadd.f32 %v3278, %v3421
        %v3423 = vpop.f32.mrf.mxu0
        %v3424 = vadd.f32 %v3283, %v3423
        %3425 = vmatmul.bf16.gmra.mxu0 %v3385
        %v3426 = vpop.f32.mrf.mxu0
        %v3427 = vadd.f32 %v3288, %v3426
        %v3428 = vpop.f32.mrf.mxu0
        %v3429 = vadd.f32 %v3293, %v3428
        %3430 = vmatmul.bf16.gmra.mxu0 %v3388
        %v3431 = vpop.f32.mrf.mxu0
        %v3432 = vadd.f32 %v3298, %v3431
        %v3433 = vpop.f32.mrf.mxu0
        %v3434 = vadd.f32 %v3303, %v3433
        %3435 = vmatmul.bf16.gmra.mxu0 %v3391
        %v3436 = vpop.f32.mrf.mxu0
        %v3437 = vadd.f32 %v3308, %v3436
        %v3438 = vpop.f32.mrf.mxu0
        %v3439 = vadd.f32 %v3313, %v3438
        %3440 = vmatmul.bf16.gmra.mxu0 %v3394
        %v3441 = vpop.f32.mrf.mxu0
        %v3442 = vadd.f32 %v3318, %v3441
        %v3443 = vpop.f32.mrf.mxu0
        %v3444 = vadd.f32 %v3323, %v3443
        %3445 = vmatmul.bf16.gmra.mxu0 %v3397
        %v3446 = vpop.f32.mrf.mxu0
        %v3447 = vadd.f32 %v3328, %v3446
        %v3448 = vpop.f32.mrf.mxu0
        %v3449 = vadd.f32 %v3333, %v3448
        %3450 = vdwg.mxu0
        %v3451 = vmul.f32 %v3412, 0.01
        %v3452 = vmul.f32 %v3414, 0.01
        %v3453 = vmul.f32 %v3417, 0.01
        %v3454 = vmul.f32 %v3419, 0.01
        %v3455 = vmul.f32 %v3422, 0.01
        %v3456 = vmul.f32 %v3424, 0.01
        %v3457 = vmul.f32 %v3427, 0.01
        %v3458 = vmul.f32 %v3429, 0.01
        %v3459 = vmul.f32 %v3432, 0.01
        %v3460 = vmul.f32 %v3434, 0.01
        %v3461 = vmul.f32 %v3437, 0.01
        %v3462 = vmul.f32 %v3439, 0.01
        %v3463 = vmul.f32 %v3442, 0.01
        %v3464 = vmul.f32 %v3444, 0.01
        %v3465 = vmul.f32 %v3447, 0.01
        %v3466 = vmul.f32 %v3449, 0.01
        %v3467 = vmax.f32 %v3412, %v3451
        %v3468 = vmax.f32 %v3414, %v3452
        %v3469 = vmax.f32 %v3417, %v3453
        %v3470 = vmax.f32 %v3419, %v3454
        %v3471 = vmax.f32 %v3422, %v3455
        %v3472 = vmax.f32 %v3424, %v3456
        %v3473 = vmax.f32 %v3427, %v3457
        %v3474 = vmax.f32 %v3429, %v3458
        %v3475 = vmax.f32 %v3432, %v3459
        %v3476 = vmax.f32 %v3434, %v3460
        %v3477 = vmax.f32 %v3437, %v3461
        %v3478 = vmax.f32 %v3439, %v3462
        %v3479 = vmax.f32 %v3442, %v3463
        %v3480 = vmax.f32 %v3444, %v3464
        %v3481 = vmax.f32 %v3447, %v3465
        %v3482 = vmax.f32 %v3449, %v3466
        %v3483 = vld [vmem:[%s4] sm:$0xf]
        %v3484 = vld [vmem:[%s4 + $0x4] sm:$0xf]
        %v3485 = vld [vmem:[%s4 + $0x8] sm:$0xf]
        %v3486 = vld [vmem:[%s4 + $0xc] sm:$0xf]
        %v3487 = vld [vmem:[%s4 + $0x10] sm:$0xf]
        %v3488 = vld [vmem:[%s4 + $0x14] sm:$0xf]
        %v3489 = vld [vmem:[%s4 + $0x18] sm:$0xf]
        %v3490 = vld [vmem:[%s4 + $0x1c] sm:$0xf]
        %v3491 = vld [vmem:[%s4 + $0x20] sm:$0xf]
        %v3492 = vld [vmem:[%s4 + $0x24] sm:$0xf]
        %v3493 = vld [vmem:[%s4 + $0x28] sm:$0xf]
        %v3494 = vld [vmem:[%s4 + $0x2c] sm:$0xf]
        %v3495 = vld [vmem:[%s4 + $0x30] sm:$0xf]
        %v3496 = vld [vmem:[%s4 + $0x34] sm:$0xf]
        %v3497 = vld [vmem:[%s4 + $0x38] sm:$0xf]
        %v3498 = vld [vmem:[%s4 + $0x3c] sm:$0xf]
        %v3499 = vpack.c.bf16 %v3468, %v3467
        %v3500 = vpack.c.bf16 %v3470, %v3469
        %v3501 = vpack.c.bf16 %v3472, %v3471
        %v3502 = vpack.c.bf16 %v3474, %v3473
        %v3503 = vpack.c.bf16 %v3476, %v3475
        %v3504 = vpack.c.bf16 %v3478, %v3477
        %v3505 = vpack.c.bf16 %v3480, %v3479
        %v3506 = vpack.c.bf16 %v3482, %v3481
        %v3507 = vld [vmem:[%s5] sm:$0xff]
        %v3508 = vld [vmem:[%s5 + $0x8] sm:$0xff]
        %v3509 = vld [vmem:[%s5 + $0x10] sm:$0xff]
        %v3510 = vld [vmem:[%s5 + $0x18] sm:$0xff]
        %v3511 = vld [vmem:[%s5 + $0x20] sm:$0xff]
        %v3512 = vld [vmem:[%s5 + $0x28] sm:$0xff]
        %v3513 = vld [vmem:[%s5 + $0x30] sm:$0xff]
        %v3514 = vld [vmem:[%s5 + $0x38] sm:$0xff]
        %v3515 = vld [vmem:[%s5 + $0x40] sm:$0xff]
        %v3516 = vld [vmem:[%s5 + $0x48] sm:$0xff]
        %v3517 = vld [vmem:[%s5 + $0x50] sm:$0xff]
        %v3518 = vld [vmem:[%s5 + $0x58] sm:$0xff]
        %v3519 = vld [vmem:[%s5 + $0x60] sm:$0xff]
        %v3520 = vld [vmem:[%s5 + $0x68] sm:$0xff]
        %v3521 = vld [vmem:[%s5 + $0x70] sm:$0xff]
        %v3522 = vld [vmem:[%s5 + $0x78] sm:$0xff]
        %3524 = vset.pattern.permute.xlu0 0
        %3525 = vperm.xlu0 %3524, %v3507
        %v3526 = vpop.permute.xlu0 %3525
        %3529 = vset.pattern.permute.xlu0 0
        %3530 = vperm.xlu0 %3529, %v3508
        %v3531 = vpop.permute.xlu0 %3530
        %3534 = vset.pattern.permute.xlu0 0
        %3535 = vperm.xlu0 %3534, %v3509
        %v3536 = vpop.permute.xlu0 %3535
        %3539 = vset.pattern.permute.xlu0 0
        %3540 = vperm.xlu0 %3539, %v3510
        %v3541 = vpop.permute.xlu0 %3540
        %3544 = vset.pattern.permute.xlu0 0
        %3545 = vperm.xlu0 %3544, %v3511
        %v3546 = vpop.permute.xlu0 %3545
        %3549 = vset.pattern.permute.xlu0 0
        %3550 = vperm.xlu0 %3549, %v3512
        %v3551 = vpop.permute.xlu0 %3550
        %3554 = vset.pattern.permute.xlu0 0
        %3555 = vperm.xlu0 %3554, %v3513
        %v3556 = vpop.permute.xlu0 %3555
        %3559 = vset.pattern.permute.xlu0 0
        %3560 = vperm.xlu0 %3559, %v3514
        %v3561 = vpop.permute.xlu0 %3560
        %3564 = vset.pattern.permute.xlu0 0
        %3565 = vperm.xlu0 %3564, %v3515
        %v3566 = vpop.permute.xlu0 %3565
        %3569 = vset.pattern.permute.xlu0 0
        %3570 = vperm.xlu0 %3569, %v3516
        %v3571 = vpop.permute.xlu0 %3570
        %3574 = vset.pattern.permute.xlu0 0
        %3575 = vperm.xlu0 %3574, %v3517
        %v3576 = vpop.permute.xlu0 %3575
        %3579 = vset.pattern.permute.xlu0 0
        %3580 = vperm.xlu0 %3579, %v3518
        %v3581 = vpop.permute.xlu0 %3580
        %3584 = vset.pattern.permute.xlu0 0
        %3585 = vperm.xlu0 %3584, %v3519
        %v3586 = vpop.permute.xlu0 %3585
        %3589 = vset.pattern.permute.xlu0 0
        %3590 = vperm.xlu0 %3589, %v3520
        %v3591 = vpop.permute.xlu0 %3590
        %3594 = vset.pattern.permute.xlu0 0
        %3595 = vperm.xlu0 %3594, %v3521
        %v3596 = vpop.permute.xlu0 %3595
        %3599 = vset.pattern.permute.xlu0 0
        %3600 = vperm.xlu0 %3599, %v3522
        %v3601 = vpop.permute.xlu0 %3600
        %v3619 = vunpack.c.l.b16 %v3483
        %v3620 = vunpack.c.l.b16 %v3484
        %v3621 = vunpack.c.l.b16 %v3485
        %v3622 = vunpack.c.l.b16 %v3486
        %v3623 = vunpack.c.l.b16 %v3487
        %v3624 = vunpack.c.l.b16 %v3488
        %v3625 = vunpack.c.l.b16 %v3489
        %v3626 = vunpack.c.l.b16 %v3490
        %v3627 = vunpack.c.l.b16 %v3491
        %v3628 = vunpack.c.l.b16 %v3492
        %v3629 = vunpack.c.l.b16 %v3493
        %v3630 = vunpack.c.l.b16 %v3494
        %v3631 = vunpack.c.l.b16 %v3495
        %v3632 = vunpack.c.l.b16 %v3496
        %v3633 = vunpack.c.l.b16 %v3497
        %v3634 = vunpack.c.l.b16 %v3498
        %v3635 = vpack.c.b16 %v3620, %v3619
        %v3636 = vpack.c.b16 %v3622, %v3621
        %v3637 = vpack.c.b16 %v3624, %v3623
        %v3638 = vpack.c.b16 %v3626, %v3625
        %v3639 = vpack.c.b16 %v3628, %v3627
        %v3640 = vpack.c.b16 %v3630, %v3629
        %v3641 = vpack.c.b16 %v3632, %v3631
        %v3642 = vpack.c.b16 %v3634, %v3633
        %3651 = vmatpush.bf16.msra.mxu0 %v3506
        %3652 = vmatpush.bf16.msra.mxu0 %v3505
        %3653 = vmatpush.bf16.msra.mxu0 %v3504
        %3654 = vmatpush.bf16.msra.mxu0 %v3503
        %3655 = vmatpush.bf16.msra.mxu0 %v3502
        %3656 = vmatpush.bf16.msra.mxu0 %v3501
        %3657 = vmatpush.bf16.msra.mxu0 %v3500
        %3658 = vmatpush.bf16.msra.mxu0 %v3499
        %3659 = vmatmul.bf16.gmra.mxu0 %v3635
        %v3660 = vpop.f32.mrf.mxu0
        %v3661 = vadd.f32 %v3526, %v3660
        %v3662 = vpop.f32.mrf.mxu0
        %v3663 = vadd.f32 %v3531, %v3662
        %3664 = vmatmul.bf16.gmra.mxu0 %v3636
        %v3665 = vpop.f32.mrf.mxu0
        %v3666 = vadd.f32 %v3536, %v3665
        %v3667 = vpop.f32.mrf.mxu0
        %v3668 = vadd.f32 %v3541, %v3667
        %3669 = vmatmul.bf16.gmra.mxu0 %v3637
        %v3670 = vpop.f32.mrf.mxu0
        %v3671 = vadd.f32 %v3546, %v3670
        %v3672 = vpop.f32.mrf.mxu0
        %v3673 = vadd.f32 %v3551, %v3672
        %3674 = vmatmul.bf16.gmra.mxu0 %v3638
        %v3675 = vpop.f32.mrf.mxu0
        %v3676 = vadd.f32 %v3556, %v3675
        %v3677 = vpop.f32.mrf.mxu0
        %v3678 = vadd.f32 %v3561, %v3677
        %3679 = vmatmul.bf16.gmra.mxu0 %v3639
        %v3680 = vpop.f32.mrf.mxu0
        %v3681 = vadd.f32 %v3566, %v3680
        %v3682 = vpop.f32.mrf.mxu0
        %v3683 = vadd.f32 %v3571, %v3682
        %3684 = vmatmul.bf16.gmra.mxu0 %v3640
        %v3685 = vpop.f32.mrf.mxu0
        %v3686 = vadd.f32 %v3576, %v3685
        %v3687 = vpop.f32.mrf.mxu0
        %v3688 = vadd.f32 %v3581, %v3687
        %3689 = vmatmul.bf16.gmra.mxu0 %v3641
        %v3690 = vpop.f32.mrf.mxu0
        %v3691 = vadd.f32 %v3586, %v3690
        %v3692 = vpop.f32.mrf.mxu0
        %v3693 = vadd.f32 %v3591, %v3692
        %3694 = vmatmul.bf16.gmra.mxu0 %v3642
        %v3695 = vpop.f32.mrf.mxu0
        %v3696 = vadd.f32 %v3596, %v3695
        %v3697 = vpop.f32.mrf.mxu0
        %v3698 = vadd.f32 %v3601, %v3697
        %3699 = vdwg.mxu0
        %v3700 = vmul.f32 %v3661, 0.01
        %v3701 = vmul.f32 %v3663, 0.01
        %v3702 = vmul.f32 %v3666, 0.01
        %v3703 = vmul.f32 %v3668, 0.01
        %v3704 = vmul.f32 %v3671, 0.01
        %v3705 = vmul.f32 %v3673, 0.01
        %v3706 = vmul.f32 %v3676, 0.01
        %v3707 = vmul.f32 %v3678, 0.01
        %v3708 = vmul.f32 %v3681, 0.01
        %v3709 = vmul.f32 %v3683, 0.01
        %v3710 = vmul.f32 %v3686, 0.01
        %v3711 = vmul.f32 %v3688, 0.01
        %v3712 = vmul.f32 %v3691, 0.01
        %v3713 = vmul.f32 %v3693, 0.01
        %v3714 = vmul.f32 %v3696, 0.01
        %v3715 = vmul.f32 %v3698, 0.01
        %v3716 = vmax.f32 %v3661, %v3700
        %v3717 = vmax.f32 %v3663, %v3701
        %v3718 = vmax.f32 %v3666, %v3702
        %v3719 = vmax.f32 %v3668, %v3703
        %v3720 = vmax.f32 %v3671, %v3704
        %v3721 = vmax.f32 %v3673, %v3705
        %v3722 = vmax.f32 %v3676, %v3706
        %v3723 = vmax.f32 %v3678, %v3707
        %v3724 = vmax.f32 %v3681, %v3708
        %v3725 = vmax.f32 %v3683, %v3709
        %v3726 = vmax.f32 %v3686, %v3710
        %v3727 = vmax.f32 %v3688, %v3711
        %v3728 = vmax.f32 %v3691, %v3712
        %v3729 = vmax.f32 %v3693, %v3713
        %v3730 = vmax.f32 %v3696, %v3714
        %v3731 = vmax.f32 %v3698, %v3715
        %v3732 = vld [vmem:[%s6] sm:$0xf]
        %v3733 = vld [vmem:[%s6 + $0x4] sm:$0xf]
        %v3734 = vpack.c.bf16 %v3717, %v3716
        %v3735 = vpack.c.bf16 %v3719, %v3718
        %v3736 = vpack.c.bf16 %v3721, %v3720
        %v3737 = vpack.c.bf16 %v3723, %v3722
        %v3738 = vpack.c.bf16 %v3725, %v3724
        %v3739 = vpack.c.bf16 %v3727, %v3726
        %v3740 = vpack.c.bf16 %v3729, %v3728
        %v3741 = vpack.c.bf16 %v3731, %v3730
        %v3742 = vld [vmem:[%s7] sm:$0xff]
        %v3743 = vld [vmem:[%s7 + $0x8] sm:$0xff]
        %3745 = vset.pattern.permute.xlu0 0
        %3746 = vperm.xlu0 %3745, %v3742
        %v3747 = vpop.permute.xlu0 %3746
        %3750 = vset.pattern.permute.xlu0 0
        %3751 = vperm.xlu0 %3750, %v3743
        %v3752 = vpop.permute.xlu0 %3751
        %v3756 = vunpack.c.l.b16 %v3732
        %v3757 = vunpack.c.l.b16 %v3733
        %v3758 = vpack.c.b16 %v3757, %v3756
        %3760 = vmatpush.bf16.msra.mxu0 %v3741
        %3761 = vmatpush.bf16.msra.mxu0 %v3740
        %3762 = vmatpush.bf16.msra.mxu0 %v3739
        %3763 = vmatpush.bf16.msra.mxu0 %v3738
        %3764 = vmatpush.bf16.msra.mxu0 %v3737
        %3765 = vmatpush.bf16.msra.mxu0 %v3736
        %3766 = vmatpush.bf16.msra.mxu0 %v3735
        %3767 = vmatpush.bf16.msra.mxu0 %v3734
        %3768 = vmatmul.bf16.gmra.mxu0 %v3758
        %v3769 = vpop.f32.mrf.mxu0
        %v3770 = vadd.f32 %v3747, %v3769
        %v3771 = vpop.f32.mrf.mxu0
        %v3772 = vadd.f32 %v3752, %v3771
        %3773 = vdwg.mxu0
        %v3774 = vtanh.pop %v3772
        %v3775 = vsub.f32 %v3212, %v3774
        %3777 = vset.pattern.permute.xlu0 0
        %3778 = vperm.xlu0 %3777, %v3215
        %v3779 = vpop.permute.xlu0 %3778
        %v3781 = vmul.f32 %v3779, %v3775
        %v3782 = vsub.f32 0.0, %v3770
        %v3783 = vmul.f32 %v3782, 1.442695
        %v3784 = vpow.pop %v3783
        %v3785 = vmul.f32 %v3781, %v3784
        %v3786 = vadd.f32 %v3785, 1e-08
        %v3787 = vadd.f32 %v3786, %v3221
        %v3788 = vadd.f32 %v3213, %v3770
        %v3789 = vrot.slane %v3788, 4
        %v3790 = vadd.f32 %v3788, %v3789
        %v3791 = vrot.slane %v3790, 2
        %v3792 = vadd.f32 %v3790, %v3791
        %v3793 = vrot.slane %v3792, 1
        %v3794 = vadd.f32 %v3792, %v3793
        %v3795 = vsub.f32 0.0, %v3794
        %vm3796 = vcmp.ne.f32.partialorder %v3787, %v3787
        %v3797 = vsel %vm3796, 0.0, %v3787
        %vm3798 = vcmp.eq.f32.partialorder %v3797, inf
        %v3799 = vsel %vm3798, 3.4028235e+38, %v3797
        %vm3800 = vcmp.eq.f32.partialorder %v3799, -inf
        %v3801 = vsel %vm3800, -3.4028235e+38, %v3799
        %v3802 = vmul.f32 %v3801, %v3801
        %v3803 = vrot.slane %v3802, 4
        %v3804 = vadd.f32 %v3802, %v3803
        %v3805 = vrot.slane %v3804, 2
        %v3806 = vadd.f32 %v3804, %v3805
        %v3807 = vrot.slane %v3806, 1
        %v3808 = vadd.f32 %v3806, %v3807
        %v3809 = vmul.f32 %v3808, -0.5
        %v3810 = vsub.f32 %v3809, 7.351508
        %v3811 = vadd.f32 %v3810, %v3795
        %vm3812 = vcmp.ne.f32.partialorder %v3811, %v3811
        %v3813 = vsel %vm3812, 0.0, %v3811
        %vm3814 = vcmp.eq.f32.partialorder %v3813, inf
        %v3815 = vsel %vm3814, 3.4028235e+38, %v3813
        %vm3816 = vcmp.eq.f32.partialorder %v3815, -inf
        %v3817 = vsel %vm3816, -3.4028235e+38, %v3815
        %3818 = vst [vmem:[%s295] sm:$0x1] %v3817
        %s3819 = sand.u32 %s203, 1
        %s3820 = scalar_lea.sflag [#allocation3], %s3819
        %s3821 = sand.u32 %s203, 1
        %s3822 = scalar_lea.vmem [#allocation2], %s3821
        // Predicated region
        $region53: #{tpu_custom_call.1} parent=51 // pred_check
          %p3823 = pneg %p213
        $region54: #{tpu_custom_call.1} parent=51 // pred_check_branch
          %3825 = sbr.rel (%p3823) target = $region56
        $region55: #{tpu_custom_call.1} parent=51 // pred_region
          %3827 = vsyncadd %s3820, 0
          %s3828 = scalar_lea.hbm %s8, %s22
          %s3830 = sshll.u32 %s3822, 4
          %s3831 = int_to_ptr.vmem [resolvable:$true] %s3830
          %s3832 = sshll.u32 %s3828, 4
          %s3833 = int_to_ptr.hbm [resolvable:$true] %s3832
          %3835 = dma.vmem_to_hbm [thread:$0]  %s3831, 16, %s3833, %s3820
        $region56: #{tpu_custom_call.1} parent=51 // pred_fallthru
          _
      $region52: #{tpu_custom_call.1} parent=5 // pred_fallthru
        _
      %p3836 = scmp.le.s32.totalorder 2, %s17
      // Predicated region
      $region57: #{tpu_custom_call.1} parent=5 // pred_check
        %p3837 = pneg %p3836
      $region58: #{tpu_custom_call.1} parent=5 // pred_check_branch
        %3839 = sbr.rel (%p3837) target = $region60
      $region59: #{tpu_custom_call.1} parent=5 // pred_region
        %s3840 = ssub.s32 %s17, 2
        // Predicated region
        $region61: #{tpu_custom_call.1} parent=59 // pred_check
          %p3841 = pneg %p219
        $region62: #{tpu_custom_call.1} parent=59 // pred_check_branch
          %3843 = sbr.rel (%p3841) target = $region64
        $region63: #{tpu_custom_call.1} parent=59 // pred_region
          %s3844 = sand.u32 %s204, 1
          %s3845 = scalar_lea.sflag [#allocation3], %s3844
          %s3846 = sand.u32 %s204, 1
          %s3847 = scalar_lea.vmem [#allocation2], %s3846
          %3849 = dma.done %s3845, 16
        $region64: #{tpu_custom_call.1} parent=59 // pred_fallthru
          _
      $region60: #{tpu_custom_call.1} parent=5 // pred_fallthru
        _
    $region6: #{tpu_custom_call.1} parent=1 // loop_footer
      %s21 = sadd.s32 1, %s17
    $region7: #{tpu_custom_call.1} parent=1 // loop_footer_branch
      %16 = sbr.rel target = $region3
    $region8: #{tpu_custom_call.1} parent=1 // loop_exit
      _
    %3850 = vsyncpa [#allocation3], 1
    %s3851 = scalar_lea.sflag [#allocation3], 1
    %3852 = vsyncpa %s3851, 1

</llo_original>
